<compile_context>
chip_gen: v7x
topology: tpu7x:2x2x1
jax: 0.10.0
libtpu: 0.0.40
codegen_flags: <defaults>
</compile_context>

<pallas_src>
import functools

import jax
import jax.numpy as jnp
from jax import lax
from jax.experimental import pallas as pl
from jax.experimental.pallas import tpu as pltpu


def _layernorm(x, g, b, eps):
    mu = jnp.mean(x, axis=-1, keepdims=True)
    c = x - mu
    var = jnp.mean(c * c, axis=-1, keepdims=True)
    return c * lax.rsqrt(var + eps) * g + b          # rsqrt -> EUP slot


def _transformer_e_kernel(x_ref, ln1g_ref, ln1b_ref, wqkv_ref, wo_ref, bo_ref,
                          ln2g_ref, ln2b_ref, w1_ref, b1_ref, w2_ref, b2_ref,
                          o_ref, *, depth, heads, dim_head, batch, seq, eps,
                          mm_dtype):
    """Full Transformer_E forward on one VMEM-resident token slab.

    x_ref    : (B*N, D) f32 — tokens flattened BATCH-MAJOR by the wrapper; the
               (H, B*N, dh) -> (H*B, N, dh) reshapes below rely on that ordering
               (do not change one without the other).
    wqkv_ref : (depth, heads, D, 3*dh) per-head [q|k|v] weight strips, softmax scale
               already folded into the q columns.  dtype = mm_dtype.
    wo_ref   : (depth, heads, dh, D)   per-head output-projection weights (mm_dtype).
    w1_ref   : (depth, D, mlp); w2_ref : (depth, mlp, D)  (mm_dtype)
    bo_ref / ln*_ref / b2_ref : (depth, 1, D) f32;  b1_ref : (depth, 1, mlp) f32
    o_ref    : (B*N, D)
    """
    f32 = jnp.float32
    tokens, d_model = x_ref.shape
    dh = dim_head
    mm = lambda t: t.astype(mm_dtype)      # matmul-operand cast; identity in f32 parity mode

    x = x_ref[...].astype(f32)

    for l in range(depth):                 # static unroll over layers (depth == 2)
        # ---------------- Residual(PreNorm(Attention)) ----------------
        xn = _layernorm(x, ln1g_ref[l], ln1b_ref[l], eps)               # (BN, D) f32

        # One batched matmul per head emits q|k|v as a 48-lane strip: 3 matmuls/layer
        # (was 9); the q/k/v split is an in-tile static lane slice.
        xn_h = jnp.broadcast_to(mm(xn), (heads, tokens, d_model))       # (H, BN, D)
        qkv = jnp.einsum('hnd,hdk->hnk', xn_h, wqkv_ref[l],
                         preferred_element_type=f32)                    # (H, BN, 3*dh) f32
        q = qkv[:, :, 0 * dh:1 * dh]
        k = qkv[:, :, 1 * dh:2 * dh]
        v = qkv[:, :, 2 * dh:3 * dh]

        # Tokens are batch-major, so merging (head, batch) into one batched-matmul axis
        # never mixes batches; seq is a multiple of the 8-sublane tile so the reshape is
        # layout-preserving.
        qg = mm(q.reshape(heads * batch, seq, dh))
        kg = mm(k.reshape(heads * batch, seq, dh))
        vg = mm(v.reshape(heads * batch, seq, dh))

        # TODO(synk): per perf review, check MLIR for per-group XLU transposes of kg in this
        # q.k^T einsum and hoist a single batched transpose only if they show up exposed.
        s = jnp.einsum('gnd,gmd->gnm', qg, kg,
                       preferred_element_type=f32)                      # (H*B, N, N) f32
        m = jnp.max(s, axis=-1, keepdims=True)
        p = jnp.exp(s - m)
        attn = p * pl.reciprocal(jnp.sum(p, axis=-1, keepdims=True),
                                 approx=True)                           # EUP vrcp
        og = jnp.einsum('gnm,gmd->gnd', mm(attn), vg,
                        preferred_element_type=f32)                     # (H*B, N, dh) f32

        # Per-head output projection accumulated straight into a single (BN, D) slab:
        # plain 2-D dots, no (H, BN, D) batched intermediate and no cross-head sum op.
        oh = og.reshape(heads, tokens, dh)                              # leading-axis reshape
        wo_l = wo_ref[l]                                                # (H, dh, D)
        attn_out = bo_ref[l]                                            # (1, D) out-proj bias
        for h in range(heads):
            attn_out = attn_out + jnp.dot(mm(oh[h]), wo_l[h],
                                          preferred_element_type=f32)   # (BN, D)
        x = x + attn_out                                                # residual

        # ---------------- Residual(PreNorm(FeedForward)) ----------------
        xn = _layernorm(x, ln2g_ref[l], ln2b_ref[l], eps)
        h1 = jnp.dot(mm(xn), w1_ref[l], preferred_element_type=f32) + b1_ref[l]
        h1 = jnp.maximum(h1, 0.01 * h1)      # LeakyReLU(0.01); dropout = identity (eval)
        x = x + jnp.dot(mm(h1), w2_ref[l], preferred_element_type=f32) + b2_ref[l]

    # NOTE: with D=32 this is inherently a 32-of-128-lane store; fixed by the model dim and
    # not on the critical path at this size (per review: not worth an in-kernel relayout).
    o_ref[...] = x.astype(o_ref.dtype)


def transformer_e_pallas(x, params, *, heads, dim_head, eps=1e-5,
                         matmul_dtype=jnp.bfloat16):
    """x: (B, N, D) float32; params: list (len=depth) of per-layer weight dicts.

    matmul_dtype=jnp.bfloat16 : MXU-native operands, f32 accumulation (fast path).
    matmul_dtype=jnp.float32  : exact-parity baseline with the f32 PyTorch module.
    """
    B, N, D = x.shape
    depth = len(params)
    dh = dim_head
    scale = dim_head ** (-0.5)
    mlp = params[0]['w_ff1'].shape[1]

    def stack(name):
        return jnp.stack([p[name] for p in params], axis=0)

    w_qkv = stack('w_qkv')                                    # (L, D, 3*inner)
    wq, wk, wv = jnp.split(w_qkv, 3, axis=-1)                 # each (L, D, inner)
    wq = wq * scale                                           # fold softmax scale into W_q

    def head_major(w):                                        # (L, D, H*dh) -> (L, H, D, dh)
        return w.reshape(depth, D, heads, dh).transpose(0, 2, 1, 3)

    # Per-head [q|k|v] strips: (L, H, D, 3*dh); matmul weights pre-cast once in the wrapper.
    wqkv_h = jnp.concatenate([head_major(wq), head_major(wk), head_major(wv)],
                             axis=-1).astype(matmul_dtype)
    wo_h = stack('w_out').reshape(depth, heads, dh, D).astype(matmul_dtype)

    args = (
        # Flattened batch-major token slab; the kernel's (H, B*N, dh) -> (H*B, N, dh)
        # reshapes depend on this batch-major ordering.
        x.reshape(B * N, D),
        stack('ln1_g').reshape(depth, 1, D),
        stack('ln1_b').reshape(depth, 1, D),
        wqkv_h,
        wo_h,
        stack('b_out').reshape(depth, 1, D),
        stack('ln2_g').reshape(depth, 1, D),
        stack('ln2_b').reshape(depth, 1, D),
        stack('w_ff1').astype(matmul_dtype),                  # (L, D, mlp)
        stack('b_ff1').reshape(depth, 1, mlp),
        stack('w_ff2').astype(matmul_dtype),                  # (L, mlp, D)
        stack('b_ff2').reshape(depth, 1, D),
    )

    kernel = functools.partial(_transformer_e_kernel, depth=depth, heads=heads,
                               dim_head=dh, batch=B, seq=N, eps=eps,
                               mm_dtype=matmul_dtype)

    out = pl.pallas_call(
        kernel,
        out_shape=jax.ShapeDtypeStruct((B * N, D), x.dtype),
        # Grid-less call: the whole (tiny) problem is one VMEM-resident block, so the
        # per-grid-step overhead is paid once and constant weights are never
        # double-buffered (there is no pipeline).
        in_specs=[pl.BlockSpec(memory_space=pltpu.MemorySpace.VMEM)] * len(args),
        out_specs=pl.BlockSpec(memory_space=pltpu.MemorySpace.VMEM),
        # TODO(synk): for realistic B*N, switch to a token-row grid (flash-style online
        # softmax), mark that axis "parallel" with an even tile count so v7x's two
        # TensorCores split the rows, keep weights at a constant block index, and set
        # pltpu.CompilerParams(vmem_limit_bytes=...) re-derived for v7x's 64 MiB VMEM.
    )(*args)
    return out.reshape(B, N, D)


def transformer_e_reference(x, params, *, heads, dim_head, eps=1e-5):
    """Pure-JAX forward mirroring the PyTorch module (mask=None, eval mode), all f32."""
    B, N, D = x.shape
    inner = heads * dim_head
    scale = dim_head ** (-0.5)

    def layernorm(t, g, b):
        mu = jnp.mean(t, axis=-1, keepdims=True)
        var = jnp.mean((t - mu) ** 2, axis=-1, keepdims=True)
        return (t - mu) / jnp.sqrt(var + eps) * g + b

    def to_heads(t):
        return t.reshape(B, N, heads, dim_head).transpose(0, 2, 1, 3)

    for p in params:
        xn = layernorm(x, p['ln1_g'], p['ln1_b'])
        qkv = jnp.einsum('bnd,de->bne', xn, p['w_qkv'])
        q, k, v = map(to_heads, jnp.split(qkv, 3, axis=-1))
        dots = jnp.einsum('bhid,bhjd->bhij', q, k) * scale
        attn = jax.nn.softmax(dots, axis=-1)
        o = jnp.einsum('bhij,bhjd->bhid', attn, v)
        o = o.transpose(0, 2, 1, 3).reshape(B, N, inner)
        x = x + jnp.einsum('bne,ed->bnd', o, p['w_out']) + p['b_out']

        xn = layernorm(x, p['ln2_g'], p['ln2_b'])
        h = jnp.einsum('bnd,dm->bnm', xn, p['w_ff1']) + p['b_ff1']
        h = jnp.where(h > 0, h, 0.01 * h)
        x = x + jnp.einsum('bnm,md->bnd', h, p['w_ff2']) + p['b_ff2']
    return x


if __name__ == "__main__":
    # Small shapes consistent with the module: batch=2, seq=8, hidden dim=32,
    # with the module defaults depth=2, heads=3, dim_head=16, mlp_dim=48.
    B, N, D = 2, 8, 32
    depth, heads, dim_head, mlp_dim = 2, 3, 16, 48
    inner = heads * dim_head

    root = jax.random.PRNGKey(0)
    kx, kp = jax.random.split(root)
    x = jax.random.normal(kx, (B, N, D), dtype=jnp.float32)

    def uniform(k, shape, fan_in):
        bound = fan_in ** (-0.5)
        return jax.random.uniform(k, shape, jnp.float32, -bound, bound)

    params = []
    for lk in jax.random.split(kp, depth):
        ks = jax.random.split(lk, 12)
        params.append(dict(
            ln1_g=1.0 + 0.1 * jax.random.normal(ks[0], (D,), jnp.float32),
            ln1_b=0.1 * jax.random.normal(ks[1], (D,), jnp.float32),
            w_qkv=uniform(ks[2], (D, 3 * inner), D),
            w_out=uniform(ks[3], (inner, D), inner),
            b_out=uniform(ks[4], (D,), inner),
            ln2_g=1.0 + 0.1 * jax.random.normal(ks[5], (D,), jnp.float32),
            ln2_b=0.1 * jax.random.normal(ks[6], (D,), jnp.float32),
            w_ff1=uniform(ks[7], (D, mlp_dim), D),
            b_ff1=uniform(ks[8], (mlp_dim,), D),
            w_ff2=uniform(ks[9], (mlp_dim, D), mlp_dim),
            b_ff2=uniform(ks[10], (D,), mlp_dim),
        ))

    ref = transformer_e_reference(x, params, heads=heads, dim_head=dim_head)

    # 1) f32 parity mode: exact-math baseline; only the EUP approximate softmax
    #    reciprocal separates it from the pure-JAX reference.
    out_f32 = transformer_e_pallas(x, params, heads=heads, dim_head=dim_head,
                                   matmul_dtype=jnp.float32)
    out_f32 = jax.block_until_ready(out_f32)
    assert out_f32.shape == (B, N, D)
    err_f32 = float(jnp.max(jnp.abs(out_f32 - ref)))
    assert jnp.allclose(out_f32, ref, atol=2e-3, rtol=2e-3), \
        f"f32-parity mismatch vs reference: {err_f32}"

    # 2) bf16-operand fast path (MXU-native operands, f32 accumulation): looser parity
    #    with the f32 PyTorch module by design, per the perf review.
    out_bf16 = transformer_e_pallas(x, params, heads=heads, dim_head=dim_head,
                                    matmul_dtype=jnp.bfloat16)
    out_bf16 = jax.block_until_ready(out_bf16)
    assert out_bf16.shape == (B, N, D)
    err_bf16 = float(jnp.max(jnp.abs(out_bf16 - ref)))
    assert jnp.allclose(out_bf16, ref, atol=5e-2, rtol=5e-2), \
        f"bf16 fast-path mismatch vs reference: {err_bf16}"

    # TODO(synk): the optional `mask` path (F.pad + masked_fill) is not implemented; the
    # module's default call uses mask=None. Dropout is identity in eval mode and the
    # module's `pos_embedding` parameter is unused in its forward.
    print("KERNEL_OK")
</pallas_src>

<mosaic_0001>
module attributes {stable_mosaic.version = 11 : i64} {
  func.func @_transformer_e_kernel(%arg0: memref<16x32xf32, #tpu.memory_space<vmem>>, %arg1: memref<2x1x32xf32, #tpu.memory_space<vmem>>, %arg2: memref<2x1x32xf32, #tpu.memory_space<vmem>>, %arg3: memref<2x3x32x48xf32, #tpu.memory_space<vmem>>, %arg4: memref<2x3x16x32xf32, #tpu.memory_space<vmem>>, %arg5: memref<2x1x32xf32, #tpu.memory_space<vmem>>, %arg6: memref<2x1x32xf32, #tpu.memory_space<vmem>>, %arg7: memref<2x1x32xf32, #tpu.memory_space<vmem>>, %arg8: memref<2x32x48xf32, #tpu.memory_space<vmem>>, %arg9: memref<2x1x48xf32, #tpu.memory_space<vmem>>, %arg10: memref<2x48x32xf32, #tpu.memory_space<vmem>>, %arg11: memref<2x1x32xf32, #tpu.memory_space<vmem>>, %arg12: memref<16x32xf32, #tpu.memory_space<vmem>>) attributes {dimension_semantics = [], scalar_prefetch = 0 : i64, scratch_operands = 0 : i64, tpu.core_type = #tpu.core_type<tc>} {
    %c0 = arith.constant 0 : index
    %c0_0 = arith.constant 0 : index
    %0 = vector.load %arg0[%c0, %c0_0] : memref<16x32xf32, #tpu.memory_space<vmem>>, vector<16x32xf32>
    %c0_1 = arith.constant 0 : index
    %c0_2 = arith.constant 0 : index
    %c0_3 = arith.constant 0 : index
    %1 = vector.load %arg1[%c0_1, %c0_2, %c0_3] : memref<2x1x32xf32, #tpu.memory_space<vmem>>, vector<1x1x32xf32>
    %2 = vector.shape_cast %1 : vector<1x1x32xf32> to vector<1x32xf32>
    %c0_4 = arith.constant 0 : index
    %c0_5 = arith.constant 0 : index
    %c0_6 = arith.constant 0 : index
    %3 = vector.load %arg2[%c0_4, %c0_5, %c0_6] : memref<2x1x32xf32, #tpu.memory_space<vmem>>, vector<1x1x32xf32>
    %4 = vector.shape_cast %3 : vector<1x1x32xf32> to vector<1x32xf32>
    %cst = arith.constant dense<0.000000e+00> : vector<16xf32>
    %5 = vector.multi_reduction <add>, %0, %cst [1] : vector<16x32xf32> to vector<16xf32>
    %6 = vector.shape_cast %5 : vector<16xf32> to vector<16x1xf32>
    %cst_7 = arith.constant 3.200000e+01 : f32
    %7 = vector.broadcast %cst_7 : f32 to vector<16x1xf32>
    %8 = arith.divf %6, %7 : vector<16x1xf32>
    %9 = vector.broadcast %8 : vector<16x1xf32> to vector<16x32xf32>
    %10 = arith.subf %0, %9 : vector<16x32xf32>
    %11 = arith.mulf %10, %10 : vector<16x32xf32>
    %cst_8 = arith.constant dense<0.000000e+00> : vector<16xf32>
    %12 = vector.multi_reduction <add>, %11, %cst_8 [1] : vector<16x32xf32> to vector<16xf32>
    %13 = vector.shape_cast %12 : vector<16xf32> to vector<16x1xf32>
    %cst_9 = arith.constant 3.200000e+01 : f32
    %14 = vector.broadcast %cst_9 : f32 to vector<16x1xf32>
    %15 = arith.divf %13, %14 : vector<16x1xf32>
    %cst_10 = arith.constant 9.99999974E-6 : f32
    %16 = vector.broadcast %cst_10 : f32 to vector<16x1xf32>
    %17 = arith.addf %15, %16 : vector<16x1xf32>
    %18 = math.rsqrt %17 : vector<16x1xf32>
    %19 = vector.broadcast %18 : vector<16x1xf32> to vector<16x32xf32>
    %20 = arith.mulf %10, %19 : vector<16x32xf32>
    %21 = vector.broadcast %2 : vector<1x32xf32> to vector<16x32xf32>
    %22 = arith.mulf %20, %21 : vector<16x32xf32>
    %23 = vector.broadcast %4 : vector<1x32xf32> to vector<16x32xf32>
    %24 = arith.addf %22, %23 : vector<16x32xf32>
    %25 = vector.shape_cast %24 : vector<16x32xf32> to vector<1x16x32xf32>
    %26 = vector.broadcast %25 : vector<1x16x32xf32> to vector<3x16x32xf32>
    %c0_11 = arith.constant 0 : index
    %c0_12 = arith.constant 0 : index
    %c0_13 = arith.constant 0 : index
    %c0_14 = arith.constant 0 : index
    %27 = vector.load %arg3[%c0_11, %c0_12, %c0_13, %c0_14] : memref<2x3x32x48xf32, #tpu.memory_space<vmem>>, vector<1x3x32x48xf32>
    %28 = vector.shape_cast %27 : vector<1x3x32x48xf32> to vector<3x32x48xf32>
    "tpu.trace_start"() <{level = 10 : i32, message = "hnd,hdk->hnk"}> : () -> ()
    %cst_15 = arith.constant dense<0.000000e+00> : vector<3x16x48xf32>
    %29 = tpu.matmul %26, %28, %cst_15 {dimension_numbers = #tpu.dot_dimension_numbers<[2], [1], [1], [2], [0, 0, 0, 1, 1, 2], [0], [0]>} : vector<3x16x32xf32>, vector<3x32x48xf32>, vector<3x16x48xf32> -> vector<3x16x48xf32>
    "tpu.trace_stop"() : () -> ()
    %30 = vector.extract_strided_slice %29 {offsets = [0, 0, 0], sizes = [3, 16, 16], strides = [1, 1, 1]} : vector<3x16x48xf32> to vector<3x16x16xf32>
    %31 = vector.extract_strided_slice %29 {offsets = [0, 0, 16], sizes = [3, 16, 16], strides = [1, 1, 1]} : vector<3x16x48xf32> to vector<3x16x16xf32>
    %32 = vector.extract_strided_slice %29 {offsets = [0, 0, 32], sizes = [3, 16, 16], strides = [1, 1, 1]} : vector<3x16x48xf32> to vector<3x16x16xf32>
    %33 = vector.shape_cast %30 : vector<3x16x16xf32> to vector<6x8x16xf32>
    %34 = vector.shape_cast %31 : vector<3x16x16xf32> to vector<6x8x16xf32>
    %35 = vector.shape_cast %32 : vector<3x16x16xf32> to vector<6x8x16xf32>
    "tpu.trace_start"() <{level = 10 : i32, message = "gnd,gmd->gnm"}> : () -> ()
    %cst_16 = arith.constant dense<0.000000e+00> : vector<6x8x8xf32>
    %36 = tpu.matmul %33, %34, %cst_16 {dimension_numbers = #tpu.dot_dimension_numbers<[2], [2], [1], [1], [0, 0, 0, 1, 1, 1], [0], [0]>} : vector<6x8x16xf32>, vector<6x8x16xf32>, vector<6x8x8xf32> -> vector<6x8x8xf32>
    "tpu.trace_stop"() : () -> ()
    %cst_17 = arith.constant dense<0xFF800000> : vector<6x8xf32>
    %37 = vector.multi_reduction <maximumf>, %36, %cst_17 [2] : vector<6x8x8xf32> to vector<6x8xf32>
    %38 = vector.shape_cast %37 : vector<6x8xf32> to vector<6x8x1xf32>
    %39 = vector.broadcast %38 : vector<6x8x1xf32> to vector<6x8x8xf32>
    %40 = arith.subf %36, %39 : vector<6x8x8xf32>
    %41 = math.exp %40 : vector<6x8x8xf32>
    %cst_18 = arith.constant dense<0.000000e+00> : vector<6x8xf32>
    %42 = vector.multi_reduction <add>, %41, %cst_18 [2] : vector<6x8x8xf32> to vector<6x8xf32>
    %43 = vector.shape_cast %42 : vector<6x8xf32> to vector<6x8x1xf32>
    %44 = tpu.reciprocal %43 {approx = true} : vector<6x8x1xf32> -> vector<6x8x1xf32>
    %45 = vector.broadcast %44 : vector<6x8x1xf32> to vector<6x8x8xf32>
    %46 = arith.mulf %41, %45 : vector<6x8x8xf32>
    "tpu.trace_start"() <{level = 10 : i32, message = "gnm,gmd->gnd"}> : () -> ()
    %cst_19 = arith.constant dense<0.000000e+00> : vector<6x8x16xf32>
    %47 = tpu.matmul %46, %35, %cst_19 {dimension_numbers = #tpu.dot_dimension_numbers<[2], [1], [1], [2], [0, 0, 0, 1, 1, 2], [0], [0]>} : vector<6x8x8xf32>, vector<6x8x16xf32>, vector<6x8x16xf32> -> vector<6x8x16xf32>
    "tpu.trace_stop"() : () -> ()
    %48 = vector.shape_cast %47 : vector<6x8x16xf32> to vector<3x16x16xf32>
    %c0_20 = arith.constant 0 : index
    %c0_21 = arith.constant 0 : index
    %c0_22 = arith.constant 0 : index
    %c0_23 = arith.constant 0 : index
    %49 = vector.load %arg4[%c0_20, %c0_21, %c0_22, %c0_23] : memref<2x3x16x32xf32, #tpu.memory_space<vmem>>, vector<1x3x16x32xf32>
    %50 = vector.shape_cast %49 : vector<1x3x16x32xf32> to vector<3x16x32xf32>
    %c0_24 = arith.constant 0 : index
    %c0_25 = arith.constant 0 : index
    %c0_26 = arith.constant 0 : index
    %51 = vector.load %arg5[%c0_24, %c0_25, %c0_26] : memref<2x1x32xf32, #tpu.memory_space<vmem>>, vector<1x1x32xf32>
    %52 = vector.shape_cast %51 : vector<1x1x32xf32> to vector<1x32xf32>
    %53 = vector.extract_strided_slice %48 {offsets = [0, 0, 0], sizes = [1, 16, 16], strides = [1, 1, 1]} : vector<3x16x16xf32> to vector<1x16x16xf32>
    %54 = vector.shape_cast %53 : vector<1x16x16xf32> to vector<16x16xf32>
    %55 = vector.extract_strided_slice %50 {offsets = [0, 0, 0], sizes = [1, 16, 32], strides = [1, 1, 1]} : vector<3x16x32xf32> to vector<1x16x32xf32>
    %56 = vector.shape_cast %55 : vector<1x16x32xf32> to vector<16x32xf32>
    %cst_27 = arith.constant dense<0.000000e+00> : vector<16x32xf32>
    %57 = tpu.matmul %54, %56, %cst_27 {dimension_numbers = #tpu.dot_dimension_numbers<[1], [0], [0], [1], [0, 0, 1, 1], [], []>} : vector<16x16xf32>, vector<16x32xf32>, vector<16x32xf32> -> vector<16x32xf32>
    %58 = vector.broadcast %52 : vector<1x32xf32> to vector<16x32xf32>
    %59 = arith.addf %58, %57 : vector<16x32xf32>
    %60 = vector.extract_strided_slice %48 {offsets = [1, 0, 0], sizes = [1, 16, 16], strides = [1, 1, 1]} : vector<3x16x16xf32> to vector<1x16x16xf32>
    %61 = vector.shape_cast %60 : vector<1x16x16xf32> to vector<16x16xf32>
    %62 = vector.extract_strided_slice %50 {offsets = [1, 0, 0], sizes = [1, 16, 32], strides = [1, 1, 1]} : vector<3x16x32xf32> to vector<1x16x32xf32>
    %63 = vector.shape_cast %62 : vector<1x16x32xf32> to vector<16x32xf32>
    %cst_28 = arith.constant dense<0.000000e+00> : vector<16x32xf32>
    %64 = tpu.matmul %61, %63, %cst_28 {dimension_numbers = #tpu.dot_dimension_numbers<[1], [0], [0], [1], [0, 0, 1, 1], [], []>} : vector<16x16xf32>, vector<16x32xf32>, vector<16x32xf32> -> vector<16x32xf32>
    %65 = arith.addf %59, %64 : vector<16x32xf32>
    %66 = vector.extract_strided_slice %48 {offsets = [2, 0, 0], sizes = [1, 16, 16], strides = [1, 1, 1]} : vector<3x16x16xf32> to vector<1x16x16xf32>
    %67 = vector.shape_cast %66 : vector<1x16x16xf32> to vector<16x16xf32>
    %68 = vector.extract_strided_slice %50 {offsets = [2, 0, 0], sizes = [1, 16, 32], strides = [1, 1, 1]} : vector<3x16x32xf32> to vector<1x16x32xf32>
    %69 = vector.shape_cast %68 : vector<1x16x32xf32> to vector<16x32xf32>
    %cst_29 = arith.constant dense<0.000000e+00> : vector<16x32xf32>
    %70 = tpu.matmul %67, %69, %cst_29 {dimension_numbers = #tpu.dot_dimension_numbers<[1], [0], [0], [1], [0, 0, 1, 1], [], []>} : vector<16x16xf32>, vector<16x32xf32>, vector<16x32xf32> -> vector<16x32xf32>
    %71 = arith.addf %65, %70 : vector<16x32xf32>
    %72 = arith.addf %0, %71 : vector<16x32xf32>
    %c0_30 = arith.constant 0 : index
    %c0_31 = arith.constant 0 : index
    %c0_32 = arith.constant 0 : index
    %73 = vector.load %arg6[%c0_30, %c0_31, %c0_32] : memref<2x1x32xf32, #tpu.memory_space<vmem>>, vector<1x1x32xf32>
    %74 = vector.shape_cast %73 : vector<1x1x32xf32> to vector<1x32xf32>
    %c0_33 = arith.constant 0 : index
    %c0_34 = arith.constant 0 : index
    %c0_35 = arith.constant 0 : index
    %75 = vector.load %arg7[%c0_33, %c0_34, %c0_35] : memref<2x1x32xf32, #tpu.memory_space<vmem>>, vector<1x1x32xf32>
    %76 = vector.shape_cast %75 : vector<1x1x32xf32> to vector<1x32xf32>
    %cst_36 = arith.constant dense<0.000000e+00> : vector<16xf32>
    %77 = vector.multi_reduction <add>, %72, %cst_36 [1] : vector<16x32xf32> to vector<16xf32>
    %78 = vector.shape_cast %77 : vector<16xf32> to vector<16x1xf32>
    %cst_37 = arith.constant 3.200000e+01 : f32
    %79 = vector.broadcast %cst_37 : f32 to vector<16x1xf32>
    %80 = arith.divf %78, %79 : vector<16x1xf32>
    %81 = vector.broadcast %80 : vector<16x1xf32> to vector<16x32xf32>
    %82 = arith.subf %72, %81 : vector<16x32xf32>
    %83 = arith.mulf %82, %82 : vector<16x32xf32>
    %cst_38 = arith.constant dense<0.000000e+00> : vector<16xf32>
    %84 = vector.multi_reduction <add>, %83, %cst_38 [1] : vector<16x32xf32> to vector<16xf32>
    %85 = vector.shape_cast %84 : vector<16xf32> to vector<16x1xf32>
    %cst_39 = arith.constant 3.200000e+01 : f32
    %86 = vector.broadcast %cst_39 : f32 to vector<16x1xf32>
    %87 = arith.divf %85, %86 : vector<16x1xf32>
    %cst_40 = arith.constant 9.99999974E-6 : f32
    %88 = vector.broadcast %cst_40 : f32 to vector<16x1xf32>
    %89 = arith.addf %87, %88 : vector<16x1xf32>
    %90 = math.rsqrt %89 : vector<16x1xf32>
    %91 = vector.broadcast %90 : vector<16x1xf32> to vector<16x32xf32>
    %92 = arith.mulf %82, %91 : vector<16x32xf32>
    %93 = vector.broadcast %74 : vector<1x32xf32> to vector<16x32xf32>
    %94 = arith.mulf %92, %93 : vector<16x32xf32>
    %95 = vector.broadcast %76 : vector<1x32xf32> to vector<16x32xf32>
    %96 = arith.addf %94, %95 : vector<16x32xf32>
    %c0_41 = arith.constant 0 : index
    %c0_42 = arith.constant 0 : index
    %c0_43 = arith.constant 0 : index
    %97 = vector.load %arg8[%c0_41, %c0_42, %c0_43] : memref<2x32x48xf32, #tpu.memory_space<vmem>>, vector<1x32x48xf32>
    %98 = vector.shape_cast %97 : vector<1x32x48xf32> to vector<32x48xf32>
    %cst_44 = arith.constant dense<0.000000e+00> : vector<16x48xf32>
    %99 = tpu.matmul %96, %98, %cst_44 {dimension_numbers = #tpu.dot_dimension_numbers<[1], [0], [0], [1], [0, 0, 1, 1], [], []>} : vector<16x32xf32>, vector<32x48xf32>, vector<16x48xf32> -> vector<16x48xf32>
    %c0_45 = arith.constant 0 : index
    %c0_46 = arith.constant 0 : index
    %c0_47 = arith.constant 0 : index
    %100 = vector.load %arg9[%c0_45, %c0_46, %c0_47] : memref<2x1x48xf32, #tpu.memory_space<vmem>>, vector<1x1x48xf32>
    %101 = vector.shape_cast %100 : vector<1x1x48xf32> to vector<1x48xf32>
    %102 = vector.broadcast %101 : vector<1x48xf32> to vector<16x48xf32>
    %103 = arith.addf %99, %102 : vector<16x48xf32>
    %cst_48 = arith.constant 0.00999999977 : f32
    %104 = vector.broadcast %cst_48 : f32 to vector<16x48xf32>
    %105 = arith.mulf %104, %103 : vector<16x48xf32>
    %106 = arith.maximumf %103, %105 : vector<16x48xf32>
    %c0_49 = arith.constant 0 : index
    %c0_50 = arith.constant 0 : index
    %c0_51 = arith.constant 0 : index
    %107 = vector.load %arg10[%c0_49, %c0_50, %c0_51] : memref<2x48x32xf32, #tpu.memory_space<vmem>>, vector<1x48x32xf32>
    %108 = vector.shape_cast %107 : vector<1x48x32xf32> to vector<48x32xf32>
    %cst_52 = arith.constant dense<0.000000e+00> : vector<16x32xf32>
    %109 = tpu.matmul %106, %108, %cst_52 {dimension_numbers = #tpu.dot_dimension_numbers<[1], [0], [0], [1], [0, 0, 1, 1], [], []>} : vector<16x48xf32>, vector<48x32xf32>, vector<16x32xf32> -> vector<16x32xf32>
    %110 = arith.addf %72, %109 : vector<16x32xf32>
    %c0_53 = arith.constant 0 : index
    %c0_54 = arith.constant 0 : index
    %c0_55 = arith.constant 0 : index
    %111 = vector.load %arg11[%c0_53, %c0_54, %c0_55] : memref<2x1x32xf32, #tpu.memory_space<vmem>>, vector<1x1x32xf32>
    %112 = vector.shape_cast %111 : vector<1x1x32xf32> to vector<1x32xf32>
    %113 = vector.broadcast %112 : vector<1x32xf32> to vector<16x32xf32>
    %114 = arith.addf %110, %113 : vector<16x32xf32>
    %c1 = arith.constant 1 : index
    %c0_56 = arith.constant 0 : index
    %c0_57 = arith.constant 0 : index
    %115 = vector.load %arg1[%c1, %c0_56, %c0_57] : memref<2x1x32xf32, #tpu.memory_space<vmem>>, vector<1x1x32xf32>
    %116 = vector.shape_cast %115 : vector<1x1x32xf32> to vector<1x32xf32>
    %c1_58 = arith.constant 1 : index
    %c0_59 = arith.constant 0 : index
    %c0_60 = arith.constant 0 : index
    %117 = vector.load %arg2[%c1_58, %c0_59, %c0_60] : memref<2x1x32xf32, #tpu.memory_space<vmem>>, vector<1x1x32xf32>
    %118 = vector.shape_cast %117 : vector<1x1x32xf32> to vector<1x32xf32>
    %cst_61 = arith.constant dense<0.000000e+00> : vector<16xf32>
    %119 = vector.multi_reduction <add>, %114, %cst_61 [1] : vector<16x32xf32> to vector<16xf32>
    %120 = vector.shape_cast %119 : vector<16xf32> to vector<16x1xf32>
    %cst_62 = arith.constant 3.200000e+01 : f32
    %121 = vector.broadcast %cst_62 : f32 to vector<16x1xf32>
    %122 = arith.divf %120, %121 : vector<16x1xf32>
    %123 = vector.broadcast %122 : vector<16x1xf32> to vector<16x32xf32>
    %124 = arith.subf %114, %123 : vector<16x32xf32>
    %125 = arith.mulf %124, %124 : vector<16x32xf32>
    %cst_63 = arith.constant dense<0.000000e+00> : vector<16xf32>
    %126 = vector.multi_reduction <add>, %125, %cst_63 [1] : vector<16x32xf32> to vector<16xf32>
    %127 = vector.shape_cast %126 : vector<16xf32> to vector<16x1xf32>
    %cst_64 = arith.constant 3.200000e+01 : f32
    %128 = vector.broadcast %cst_64 : f32 to vector<16x1xf32>
    %129 = arith.divf %127, %128 : vector<16x1xf32>
    %cst_65 = arith.constant 9.99999974E-6 : f32
    %130 = vector.broadcast %cst_65 : f32 to vector<16x1xf32>
    %131 = arith.addf %129, %130 : vector<16x1xf32>
    %132 = math.rsqrt %131 : vector<16x1xf32>
    %133 = vector.broadcast %132 : vector<16x1xf32> to vector<16x32xf32>
    %134 = arith.mulf %124, %133 : vector<16x32xf32>
    %135 = vector.broadcast %116 : vector<1x32xf32> to vector<16x32xf32>
    %136 = arith.mulf %134, %135 : vector<16x32xf32>
    %137 = vector.broadcast %118 : vector<1x32xf32> to vector<16x32xf32>
    %138 = arith.addf %136, %137 : vector<16x32xf32>
    %139 = vector.shape_cast %138 : vector<16x32xf32> to vector<1x16x32xf32>
    %140 = vector.broadcast %139 : vector<1x16x32xf32> to vector<3x16x32xf32>
    %c1_66 = arith.constant 1 : index
    %c0_67 = arith.constant 0 : index
    %c0_68 = arith.constant 0 : index
    %c0_69 = arith.constant 0 : index
    %141 = vector.load %arg3[%c1_66, %c0_67, %c0_68, %c0_69] : memref<2x3x32x48xf32, #tpu.memory_space<vmem>>, vector<1x3x32x48xf32>
    %142 = vector.shape_cast %141 : vector<1x3x32x48xf32> to vector<3x32x48xf32>
    "tpu.trace_start"() <{level = 10 : i32, message = "hnd,hdk->hnk"}> : () -> ()
    %cst_70 = arith.constant dense<0.000000e+00> : vector<3x16x48xf32>
    %143 = tpu.matmul %140, %142, %cst_70 {dimension_numbers = #tpu.dot_dimension_numbers<[2], [1], [1], [2], [0, 0, 0, 1, 1, 2], [0], [0]>} : vector<3x16x32xf32>, vector<3x32x48xf32>, vector<3x16x48xf32> -> vector<3x16x48xf32>
    "tpu.trace_stop"() : () -> ()
    %144 = vector.extract_strided_slice %143 {offsets = [0, 0, 0], sizes = [3, 16, 16], strides = [1, 1, 1]} : vector<3x16x48xf32> to vector<3x16x16xf32>
    %145 = vector.extract_strided_slice %143 {offsets = [0, 0, 16], sizes = [3, 16, 16], strides = [1, 1, 1]} : vector<3x16x48xf32> to vector<3x16x16xf32>
    %146 = vector.extract_strided_slice %143 {offsets = [0, 0, 32], sizes = [3, 16, 16], strides = [1, 1, 1]} : vector<3x16x48xf32> to vector<3x16x16xf32>
    %147 = vector.shape_cast %144 : vector<3x16x16xf32> to vector<6x8x16xf32>
    %148 = vector.shape_cast %145 : vector<3x16x16xf32> to vector<6x8x16xf32>
    %149 = vector.shape_cast %146 : vector<3x16x16xf32> to vector<6x8x16xf32>
    "tpu.trace_start"() <{level = 10 : i32, message = "gnd,gmd->gnm"}> : () -> ()
    %cst_71 = arith.constant dense<0.000000e+00> : vector<6x8x8xf32>
    %150 = tpu.matmul %147, %148, %cst_71 {dimension_numbers = #tpu.dot_dimension_numbers<[2], [2], [1], [1], [0, 0, 0, 1, 1, 1], [0], [0]>} : vector<6x8x16xf32>, vector<6x8x16xf32>, vector<6x8x8xf32> -> vector<6x8x8xf32>
    "tpu.trace_stop"() : () -> ()
    %cst_72 = arith.constant dense<0xFF800000> : vector<6x8xf32>
    %151 = vector.multi_reduction <maximumf>, %150, %cst_72 [2] : vector<6x8x8xf32> to vector<6x8xf32>
    %152 = vector.shape_cast %151 : vector<6x8xf32> to vector<6x8x1xf32>
    %153 = vector.broadcast %152 : vector<6x8x1xf32> to vector<6x8x8xf32>
    %154 = arith.subf %150, %153 : vector<6x8x8xf32>
    %155 = math.exp %154 : vector<6x8x8xf32>
    %cst_73 = arith.constant dense<0.000000e+00> : vector<6x8xf32>
    %156 = vector.multi_reduction <add>, %155, %cst_73 [2] : vector<6x8x8xf32> to vector<6x8xf32>
    %157 = vector.shape_cast %156 : vector<6x8xf32> to vector<6x8x1xf32>
    %158 = tpu.reciprocal %157 {approx = true} : vector<6x8x1xf32> -> vector<6x8x1xf32>
    %159 = vector.broadcast %158 : vector<6x8x1xf32> to vector<6x8x8xf32>
    %160 = arith.mulf %155, %159 : vector<6x8x8xf32>
    "tpu.trace_start"() <{level = 10 : i32, message = "gnm,gmd->gnd"}> : () -> ()
    %cst_74 = arith.constant dense<0.000000e+00> : vector<6x8x16xf32>
    %161 = tpu.matmul %160, %149, %cst_74 {dimension_numbers = #tpu.dot_dimension_numbers<[2], [1], [1], [2], [0, 0, 0, 1, 1, 2], [0], [0]>} : vector<6x8x8xf32>, vector<6x8x16xf32>, vector<6x8x16xf32> -> vector<6x8x16xf32>
    "tpu.trace_stop"() : () -> ()
    %162 = vector.shape_cast %161 : vector<6x8x16xf32> to vector<3x16x16xf32>
    %c1_75 = arith.constant 1 : index
    %c0_76 = arith.constant 0 : index
    %c0_77 = arith.constant 0 : index
    %c0_78 = arith.constant 0 : index
    %163 = vector.load %arg4[%c1_75, %c0_76, %c0_77, %c0_78] : memref<2x3x16x32xf32, #tpu.memory_space<vmem>>, vector<1x3x16x32xf32>
    %164 = vector.shape_cast %163 : vector<1x3x16x32xf32> to vector<3x16x32xf32>
    %c1_79 = arith.constant 1 : index
    %c0_80 = arith.constant 0 : index
    %c0_81 = arith.constant 0 : index
    %165 = vector.load %arg5[%c1_79, %c0_80, %c0_81] : memref<2x1x32xf32, #tpu.memory_space<vmem>>, vector<1x1x32xf32>
    %166 = vector.shape_cast %165 : vector<1x1x32xf32> to vector<1x32xf32>
    %167 = vector.extract_strided_slice %162 {offsets = [0, 0, 0], sizes = [1, 16, 16], strides = [1, 1, 1]} : vector<3x16x16xf32> to vector<1x16x16xf32>
    %168 = vector.shape_cast %167 : vector<1x16x16xf32> to vector<16x16xf32>
    %169 = vector.extract_strided_slice %164 {offsets = [0, 0, 0], sizes = [1, 16, 32], strides = [1, 1, 1]} : vector<3x16x32xf32> to vector<1x16x32xf32>
    %170 = vector.shape_cast %169 : vector<1x16x32xf32> to vector<16x32xf32>
    %cst_82 = arith.constant dense<0.000000e+00> : vector<16x32xf32>
    %171 = tpu.matmul %168, %170, %cst_82 {dimension_numbers = #tpu.dot_dimension_numbers<[1], [0], [0], [1], [0, 0, 1, 1], [], []>} : vector<16x16xf32>, vector<16x32xf32>, vector<16x32xf32> -> vector<16x32xf32>
    %172 = vector.broadcast %166 : vector<1x32xf32> to vector<16x32xf32>
    %173 = arith.addf %172, %171 : vector<16x32xf32>
    %174 = vector.extract_strided_slice %162 {offsets = [1, 0, 0], sizes = [1, 16, 16], strides = [1, 1, 1]} : vector<3x16x16xf32> to vector<1x16x16xf32>
    %175 = vector.shape_cast %174 : vector<1x16x16xf32> to vector<16x16xf32>
    %176 = vector.extract_strided_slice %164 {offsets = [1, 0, 0], sizes = [1, 16, 32], strides = [1, 1, 1]} : vector<3x16x32xf32> to vector<1x16x32xf32>
    %177 = vector.shape_cast %176 : vector<1x16x32xf32> to vector<16x32xf32>
    %cst_83 = arith.constant dense<0.000000e+00> : vector<16x32xf32>
    %178 = tpu.matmul %175, %177, %cst_83 {dimension_numbers = #tpu.dot_dimension_numbers<[1], [0], [0], [1], [0, 0, 1, 1], [], []>} : vector<16x16xf32>, vector<16x32xf32>, vector<16x32xf32> -> vector<16x32xf32>
    %179 = arith.addf %173, %178 : vector<16x32xf32>
    %180 = vector.extract_strided_slice %162 {offsets = [2, 0, 0], sizes = [1, 16, 16], strides = [1, 1, 1]} : vector<3x16x16xf32> to vector<1x16x16xf32>
    %181 = vector.shape_cast %180 : vector<1x16x16xf32> to vector<16x16xf32>
    %182 = vector.extract_strided_slice %164 {offsets = [2, 0, 0], sizes = [1, 16, 32], strides = [1, 1, 1]} : vector<3x16x32xf32> to vector<1x16x32xf32>
    %183 = vector.shape_cast %182 : vector<1x16x32xf32> to vector<16x32xf32>
    %cst_84 = arith.constant dense<0.000000e+00> : vector<16x32xf32>
    %184 = tpu.matmul %181, %183, %cst_84 {dimension_numbers = #tpu.dot_dimension_numbers<[1], [0], [0], [1], [0, 0, 1, 1], [], []>} : vector<16x16xf32>, vector<16x32xf32>, vector<16x32xf32> -> vector<16x32xf32>
    %185 = arith.addf %179, %184 : vector<16x32xf32>
    %186 = arith.addf %114, %185 : vector<16x32xf32>
    %c1_85 = arith.constant 1 : index
    %c0_86 = arith.constant 0 : index
    %c0_87 = arith.constant 0 : index
    %187 = vector.load %arg6[%c1_85, %c0_86, %c0_87] : memref<2x1x32xf32, #tpu.memory_space<vmem>>, vector<1x1x32xf32>
    %188 = vector.shape_cast %187 : vector<1x1x32xf32> to vector<1x32xf32>
    %c1_88 = arith.constant 1 : index
    %c0_89 = arith.constant 0 : index
    %c0_90 = arith.constant 0 : index
    %189 = vector.load %arg7[%c1_88, %c0_89, %c0_90] : memref<2x1x32xf32, #tpu.memory_space<vmem>>, vector<1x1x32xf32>
    %190 = vector.shape_cast %189 : vector<1x1x32xf32> to vector<1x32xf32>
    %cst_91 = arith.constant dense<0.000000e+00> : vector<16xf32>
    %191 = vector.multi_reduction <add>, %186, %cst_91 [1] : vector<16x32xf32> to vector<16xf32>
    %192 = vector.shape_cast %191 : vector<16xf32> to vector<16x1xf32>
    %cst_92 = arith.constant 3.200000e+01 : f32
    %193 = vector.broadcast %cst_92 : f32 to vector<16x1xf32>
    %194 = arith.divf %192, %193 : vector<16x1xf32>
    %195 = vector.broadcast %194 : vector<16x1xf32> to vector<16x32xf32>
    %196 = arith.subf %186, %195 : vector<16x32xf32>
    %197 = arith.mulf %196, %196 : vector<16x32xf32>
    %cst_93 = arith.constant dense<0.000000e+00> : vector<16xf32>
    %198 = vector.multi_reduction <add>, %197, %cst_93 [1] : vector<16x32xf32> to vector<16xf32>
    %199 = vector.shape_cast %198 : vector<16xf32> to vector<16x1xf32>
    %cst_94 = arith.constant 3.200000e+01 : f32
    %200 = vector.broadcast %cst_94 : f32 to vector<16x1xf32>
    %201 = arith.divf %199, %200 : vector<16x1xf32>
    %cst_95 = arith.constant 9.99999974E-6 : f32
    %202 = vector.broadcast %cst_95 : f32 to vector<16x1xf32>
    %203 = arith.addf %201, %202 : vector<16x1xf32>
    %204 = math.rsqrt %203 : vector<16x1xf32>
    %205 = vector.broadcast %204 : vector<16x1xf32> to vector<16x32xf32>
    %206 = arith.mulf %196, %205 : vector<16x32xf32>
    %207 = vector.broadcast %188 : vector<1x32xf32> to vector<16x32xf32>
    %208 = arith.mulf %206, %207 : vector<16x32xf32>
    %209 = vector.broadcast %190 : vector<1x32xf32> to vector<16x32xf32>
    %210 = arith.addf %208, %209 : vector<16x32xf32>
    %c1_96 = arith.constant 1 : index
    %c0_97 = arith.constant 0 : index
    %c0_98 = arith.constant 0 : index
    %211 = vector.load %arg8[%c1_96, %c0_97, %c0_98] : memref<2x32x48xf32, #tpu.memory_space<vmem>>, vector<1x32x48xf32>
    %212 = vector.shape_cast %211 : vector<1x32x48xf32> to vector<32x48xf32>
    %cst_99 = arith.constant dense<0.000000e+00> : vector<16x48xf32>
    %213 = tpu.matmul %210, %212, %cst_99 {dimension_numbers = #tpu.dot_dimension_numbers<[1], [0], [0], [1], [0, 0, 1, 1], [], []>} : vector<16x32xf32>, vector<32x48xf32>, vector<16x48xf32> -> vector<16x48xf32>
    %c1_100 = arith.constant 1 : index
    %c0_101 = arith.constant 0 : index
    %c0_102 = arith.constant 0 : index
    %214 = vector.load %arg9[%c1_100, %c0_101, %c0_102] : memref<2x1x48xf32, #tpu.memory_space<vmem>>, vector<1x1x48xf32>
    %215 = vector.shape_cast %214 : vector<1x1x48xf32> to vector<1x48xf32>
    %216 = vector.broadcast %215 : vector<1x48xf32> to vector<16x48xf32>
    %217 = arith.addf %213, %216 : vector<16x48xf32>
    %cst_103 = arith.constant 0.00999999977 : f32
    %218 = vector.broadcast %cst_103 : f32 to vector<16x48xf32>
    %219 = arith.mulf %218, %217 : vector<16x48xf32>
    %220 = arith.maximumf %217, %219 : vector<16x48xf32>
    %c1_104 = arith.constant 1 : index
    %c0_105 = arith.constant 0 : index
    %c0_106 = arith.constant 0 : index
    %221 = vector.load %arg10[%c1_104, %c0_105, %c0_106] : memref<2x48x32xf32, #tpu.memory_space<vmem>>, vector<1x48x32xf32>
    %222 = vector.shape_cast %221 : vector<1x48x32xf32> to vector<48x32xf32>
    %cst_107 = arith.constant dense<0.000000e+00> : vector<16x32xf32>
    %223 = tpu.matmul %220, %222, %cst_107 {dimension_numbers = #tpu.dot_dimension_numbers<[1], [0], [0], [1], [0, 0, 1, 1], [], []>} : vector<16x48xf32>, vector<48x32xf32>, vector<16x32xf32> -> vector<16x32xf32>
    %224 = arith.addf %186, %223 : vector<16x32xf32>
    %c1_108 = arith.constant 1 : index
    %c0_109 = arith.constant 0 : index
    %c0_110 = arith.constant 0 : index
    %225 = vector.load %arg11[%c1_108, %c0_109, %c0_110] : memref<2x1x32xf32, #tpu.memory_space<vmem>>, vector<1x1x32xf32>
    %226 = vector.shape_cast %225 : vector<1x1x32xf32> to vector<1x32xf32>
    %227 = vector.broadcast %226 : vector<1x32xf32> to vector<16x32xf32>
    %228 = arith.addf %224, %227 : vector<16x32xf32>
    %c0_111 = arith.constant 0 : index
    %c0_112 = arith.constant 0 : index
    %229 = vector.load %arg12[%c0_111, %c0_112] : memref<16x32xf32, #tpu.memory_space<vmem>>, vector<16x32xf32>
    tpu.vector_store %arg12[%c0_111, %c0_112], %228 {strides = array<i32>} : memref<16x32xf32, #tpu.memory_space<vmem>>, vector<16x32xf32>,
    return
  }
}

</mosaic_0001>

<llo_original>
// kernel: tpu_custom_call.1
$region0: #{tpu_custom_call.1}
  #allocation0 [shape = 'u32[]', space=smem, size = 0x4, offset = 0x4, fixed_abs, tag = 'smem constant byte address 0x4 - core index']
  #allocation1 [shape = 'u32[144,128]{1,0:T(1,128)}', space=vmem, size = 0x12000, scoped, tag = 'internal scratch']
  %s0 = inlined_call_operand.hbm [shape: f32[16,32], index: 0, kind: input, shape index: {}]
  %s1 = inlined_call_operand.vmem [shape: f32[2,1,32], index: 1, kind: input, shape index: {}]
  %s2 = inlined_call_operand.vmem [shape: f32[2,1,32], index: 2, kind: input, shape index: {}]
  %s3 = inlined_call_operand.hbm [shape: f32[2,3,32,48], index: 3, kind: input, shape index: {}]
  %s4 = inlined_call_operand.vmem [shape: f32[2,3,16,32], index: 4, kind: input, shape index: {}]
  %s5 = inlined_call_operand.vmem [shape: f32[2,1,32], index: 5, kind: input, shape index: {}]
  %s6 = inlined_call_operand.vmem [shape: f32[2,1,32], index: 6, kind: input, shape index: {}]
  %s7 = inlined_call_operand.vmem [shape: f32[2,1,32], index: 7, kind: input, shape index: {}]
  %s8 = inlined_call_operand.vmem [shape: f32[2,32,48], index: 8, kind: input, shape index: {}]
  %s9 = inlined_call_operand.vmem [shape: f32[2,1,48], index: 9, kind: input, shape index: {}]
  %s10 = inlined_call_operand.vmem [shape: f32[2,48,32], index: 10, kind: input, shape index: {}]
  %s11 = inlined_call_operand.vmem [shape: f32[2,1,32], index: 11, kind: input, shape index: {}]
  %s12 = inlined_call_operand.hbm [shape: f32[16,32], index: 12, kind: output, shape index: {}]
  %s13 = sld [smem:[#allocation0]]
  $region66: #{tpu_custom_call.1} parent=0
    _
  %s15 = ssub.s32 1, %s13
  %s16 = scalar_select 0, %s15, %s13
  $region1: #{tpu_custom_call.1} parent=0
    #allocation2 [shape = 'u8[8192]{0}', space=vmem, size = 0x2000, scoped, tag = 'input window, operand 0, single buffered']
    #allocation3 [shape = 's32[1]{0}', space=sflag, size = 0x4, scoped, tag = 'scoped memory for tpu_custom_call.1']
    #allocation4 [shape = 's32[1]{0}', space=sflag, size = 0x4, scoped, tag = 'scoped memory for tpu_custom_call.1']
    #allocation5 [shape = 'u8[98304]{0}', space=vmem, size = 0x18000, scoped, tag = 'input window, operand 3, single buffered']
    #allocation6 [shape = 's32[1]{0}', space=sflag, size = 0x4, scoped, tag = 'scoped memory for tpu_custom_call.1']
    #allocation7 [shape = 'u8[8192]{0}', space=vmem, size = 0x2000, scoped, tag = 'output window, operand 0, single buffered']
    %17 = vsyncpa [#allocation3], 0
    %18 = vsyncpa [#allocation6], 0
    %19 = vsyncpa [#allocation4], 0
    // Predicated region
    $region2: #{tpu_custom_call.1} parent=1 // pred_check
      _
    $region3: #{tpu_custom_call.1} parent=1 // pred_check_branch
      %21 = sbr.rel (0) target = $region5
    $region4: #{tpu_custom_call.1} parent=1 // pred_region
      %s23 = ssub.s32 256, 256
      %24 = vsyncadd [#allocation3], %s23
      %s25 = sshll.u32 [#allocation2], 4
      %s26 = int_to_ptr.vmem [resolvable:$true] %s25
      %31 = dma.hbm_to_vmem [thread:$0]  %s0, 256, %s26, [#allocation3], 128, 128, 8
    $region5: #{tpu_custom_call.1} parent=1 // pred_fallthru
      _
    // Predicated region
    $region6: #{tpu_custom_call.1} parent=1 // pred_check
      _
    $region7: #{tpu_custom_call.1} parent=1 // pred_check_branch
      %33 = sbr.rel (0) target = $region9
    $region8: #{tpu_custom_call.1} parent=1 // pred_region
      _
    $region9: #{tpu_custom_call.1} parent=1 // pred_fallthru
      _
    // Predicated region
    $region10: #{tpu_custom_call.1} parent=1 // pred_check
      _
    $region11: #{tpu_custom_call.1} parent=1 // pred_check_branch
      %35 = sbr.rel (0) target = $region13
    $region12: #{tpu_custom_call.1} parent=1 // pred_region
      _
    $region13: #{tpu_custom_call.1} parent=1 // pred_fallthru
      _
    // Predicated region
    $region14: #{tpu_custom_call.1} parent=1 // pred_check
      _
    $region15: #{tpu_custom_call.1} parent=1 // pred_check_branch
      %37 = sbr.rel (0) target = $region17
    $region16: #{tpu_custom_call.1} parent=1 // pred_region
      %s39 = ssub.s32 3072, 3072
      %40 = vsyncadd [#allocation6], %s39
      %s41 = sshll.u32 [#allocation5], 4
      %s42 = int_to_ptr.vmem [resolvable:$true] %s41
      %47 = dma.hbm_to_vmem [thread:$0]  %s3, 3072, %s42, [#allocation6], 128, 128, 8
    $region17: #{tpu_custom_call.1} parent=1 // pred_fallthru
      _
    // Predicated region
    $region18: #{tpu_custom_call.1} parent=1 // pred_check
      _
    $region19: #{tpu_custom_call.1} parent=1 // pred_check_branch
      %49 = sbr.rel (0) target = $region21
    $region20: #{tpu_custom_call.1} parent=1 // pred_region
      _
    $region21: #{tpu_custom_call.1} parent=1 // pred_fallthru
      _
    // Predicated region
    $region22: #{tpu_custom_call.1} parent=1 // pred_check
      _
    $region23: #{tpu_custom_call.1} parent=1 // pred_check_branch
      %51 = sbr.rel (0) target = $region25
    $region24: #{tpu_custom_call.1} parent=1 // pred_region
      _
    $region25: #{tpu_custom_call.1} parent=1 // pred_fallthru
      _
    // Predicated region
    $region26: #{tpu_custom_call.1} parent=1 // pred_check
      _
    $region27: #{tpu_custom_call.1} parent=1 // pred_check_branch
      %53 = sbr.rel (0) target = $region29
    $region28: #{tpu_custom_call.1} parent=1 // pred_region
      _
    $region29: #{tpu_custom_call.1} parent=1 // pred_fallthru
      _
    // Predicated region
    $region30: #{tpu_custom_call.1} parent=1 // pred_check
      _
    $region31: #{tpu_custom_call.1} parent=1 // pred_check_branch
      %55 = sbr.rel (0) target = $region33
    $region32: #{tpu_custom_call.1} parent=1 // pred_region
      _
    $region33: #{tpu_custom_call.1} parent=1 // pred_fallthru
      _
    // Predicated region
    $region34: #{tpu_custom_call.1} parent=1 // pred_check
      _
    $region35: #{tpu_custom_call.1} parent=1 // pred_check_branch
      %57 = sbr.rel (0) target = $region37
    $region36: #{tpu_custom_call.1} parent=1 // pred_region
      _
    $region37: #{tpu_custom_call.1} parent=1 // pred_fallthru
      _
    // Predicated region
    $region38: #{tpu_custom_call.1} parent=1 // pred_check
      _
    $region39: #{tpu_custom_call.1} parent=1 // pred_check_branch
      %59 = sbr.rel (0) target = $region41
    $region40: #{tpu_custom_call.1} parent=1 // pred_region
      _
    $region41: #{tpu_custom_call.1} parent=1 // pred_fallthru
      _
    // Predicated region
    $region42: #{tpu_custom_call.1} parent=1 // pred_check
      _
    $region43: #{tpu_custom_call.1} parent=1 // pred_check_branch
      %61 = sbr.rel (0) target = $region45
    $region44: #{tpu_custom_call.1} parent=1 // pred_region
      _
    $region45: #{tpu_custom_call.1} parent=1 // pred_fallthru
      _
    // Predicated region
    $region46: #{tpu_custom_call.1} parent=1 // pred_check
      _
    $region47: #{tpu_custom_call.1} parent=1 // pred_check_branch
      %63 = sbr.rel (0) target = $region49
    $region48: #{tpu_custom_call.1} parent=1 // pred_region
      _
    $region49: #{tpu_custom_call.1} parent=1 // pred_fallthru
      _
    // Predicated region
    $region50: #{tpu_custom_call.1} parent=1 // pred_check
      _
    $region51: #{tpu_custom_call.1} parent=1 // pred_check_branch
      %65 = sbr.rel (0) target = $region53
    $region52: #{tpu_custom_call.1} parent=1 // pred_region
      %66 = dma.done [#allocation3], 256
    $region53: #{tpu_custom_call.1} parent=1 // pred_fallthru
      _
    // Predicated region
    $region54: #{tpu_custom_call.1} parent=1 // pred_check
      _
    $region55: #{tpu_custom_call.1} parent=1 // pred_check_branch
      %68 = sbr.rel (0) target = $region57
    $region56: #{tpu_custom_call.1} parent=1 // pred_region
      %69 = dma.done [#allocation6], 3072
    $region57: #{tpu_custom_call.1} parent=1 // pred_fallthru
      _
    %v70 = vld [vmem:[#allocation2] sm:$0xff]
    %v71 = vld [vmem:[#allocation2 + $0x8] sm:$0xff]
    %v72 = vld [vmem:[%s1] sm:$0x1]
    %v73 = vld [vmem:[%s2] sm:$0x1]
    %vm74 = vcmask 261120
    %v75 = vsel %vm74, %v70, 0.0
    %76 = vadd.xlane.f32.xlu0 %v75
    %v77 = vpop.xlane.xlu0 %76
    %v78 = vsel %vm74, %v71, 0.0
    %79 = vadd.xlane.f32.xlu0 %v78
    %v80 = vpop.xlane.xlu0 %79
    %v81 = vrcp.pop 32.0
    %v82 = vmul.f32 %v77, %v81
    %v83 = vmul.f32 %v80, %v81
    %v84 = vsub.f32 %v70, %v82
    %v85 = vsub.f32 %v71, %v83
    %v86 = vmul.f32 %v84, %v84
    %v87 = vmul.f32 %v85, %v85
    %v88 = vsel %vm74, %v86, 0.0
    %89 = vadd.xlane.f32.xlu0 %v88
    %v90 = vpop.xlane.xlu0 %89
    %v91 = vsel %vm74, %v87, 0.0
    %92 = vadd.xlane.f32.xlu0 %v91
    %v93 = vpop.xlane.xlu0 %92
    %v94 = vmul.f32 %v90, %v81
    %v95 = vmul.f32 %v93, %v81
    %v96 = vadd.f32 %v94, 1e-05
    %v97 = vadd.f32 %v95, 1e-05
    %v98 = vrsqrt.pop %v96
    %v99 = vrsqrt.pop %v97
    %v100 = vmul.f32 %v84, %v98
    %v101 = vmul.f32 %v85, %v99
    %v103 = vlaneseq
    %v104 = vshrl.u32 %v103, 7
    %v105 = vsub.s32 0, %v104
    %v106 = vrot.slane %v72, %v105
    %v108 = vmul.f32 %v100, %v106
    %v109 = vmul.f32 %v101, %v106
    %v111 = vlaneseq
    %v112 = vshrl.u32 %v111, 7
    %v113 = vsub.s32 0, %v112
    %v114 = vrot.slane %v73, %v113
    %v116 = vadd.f32 %v108, %v114
    %v117 = vadd.f32 %v109, %v114
    %v118 = vld [vmem:[#allocation5] sm:$0xff]
    %v119 = vld [vmem:[#allocation5 + $0x8] sm:$0xff]
    %v120 = vld [vmem:[#allocation5 + $0x10] sm:$0xff]
    %v121 = vld [vmem:[#allocation5 + $0x18] sm:$0xff]
    %v122 = vld [vmem:[#allocation5 + $0x20] sm:$0xff]
    %v123 = vld [vmem:[#allocation5 + $0x28] sm:$0xff]
    %v124 = vld [vmem:[#allocation5 + $0x30] sm:$0xff]
    %v125 = vld [vmem:[#allocation5 + $0x38] sm:$0xff]
    %v126 = vld [vmem:[#allocation5 + $0x40] sm:$0xff]
    %v127 = vld [vmem:[#allocation5 + $0x48] sm:$0xff]
    %v128 = vld [vmem:[#allocation5 + $0x50] sm:$0xff]
    %v129 = vld [vmem:[#allocation5 + $0x58] sm:$0xff]
    %v131 = vsel %vm74, %v116, 0
    %v134 = vsel %vm74, %v117, 0
    %136 = vmatprep.subr.mxu0 0.0
    %137 = vmatpush1.msra.mxu0 %v118
    %138 = vmatprep.subr.mxu0 0.0
    %139 = vmatpush1.msra.mxu0 %v119
    %140 = vmatprep.subr.mxu0 0.0
    %141 = vmatpush1.msra.mxu0 %v120
    %142 = vmatprep.subr.mxu0 0.0
    %143 = vmatpush1.msra.mxu0 %v121
    %144 = vmatprep.subr.mxu0 0.0
    %145 = vmatpush1.msra.mxu0 0.0
    %146 = vmatprep.subr.mxu0 0.0
    %147 = vmatpush1.msra.mxu0 0.0
    %148 = vmatprep.subr.mxu0 0.0
    %149 = vmatpush1.msra.mxu0 0.0
    %150 = vmatprep.subr.mxu0 0.0
    %151 = vmatpush1.msra.mxu0 0.0
    %152 = vmatprep.subr.mxu0 0.0
    %153 = vmatpush1.msra.mxu0 0.0
    %154 = vmatprep.subr.mxu0 0.0
    %155 = vmatpush1.msra.mxu0 0.0
    %156 = vmatprep.subr.mxu0 0.0
    %157 = vmatpush1.msra.mxu0 0.0
    %158 = vmatprep.subr.mxu0 0.0
    %159 = vmatpush1.msra.mxu0 0.0
    %160 = vmatprep.subr.mxu0 0.0
    %161 = vmatpush1.msra.mxu0 0.0
    %162 = vmatprep.subr.mxu0 0.0
    %163 = vmatpush1.msra.mxu0 0.0
    %164 = vmatprep.subr.mxu0 0.0
    %165 = vmatpush1.msra.mxu0 0.0
    %166 = vmatprep.subr.mxu0 0.0
    %167 = vmatpush1.msra.mxu0 0.0
    %168 = vmatprep.subr.mxu0 0.0
    %169 = vmatpush1.msra.mxu0 0.0
    %170 = vmatprep.subr.mxu0 0.0
    %171 = vmatpush1.msra.mxu0 0.0
    %172 = vmatprep.subr.mxu0 0.0
    %173 = vmatpush1.msra.mxu0 0.0
    %174 = vmatprep.subr.mxu0 0.0
    %175 = vmatpush1.msra.mxu0 0.0
    %176 = vmatprep.subr.mxu0 0.0
    %177 = vmatpush1.msra.mxu0 0.0
    %178 = vmatprep.subr.mxu0 0.0
    %179 = vmatpush1.msra.mxu0 0.0
    %180 = vmatprep.subr.mxu0 0.0
    %181 = vmatpush1.msra.mxu0 0.0
    %182 = vmatprep.subr.mxu0 0.0
    %183 = vmatpush1.msra.mxu0 0.0
    %184 = vmatprep.subr.mxu0 0.0
    %185 = vmatpush1.msra.mxu0 0.0
    %186 = vmatprep.subr.mxu0 0.0
    %187 = vmatpush1.msra.mxu0 0.0
    %188 = vmatprep.subr.mxu0 0.0
    %189 = vmatpush1.msra.mxu0 0.0
    %190 = vmatprep.subr.mxu0 0.0
    %191 = vmatpush1.msra.mxu0 0.0
    %192 = vmatprep.subr.mxu0 0.0
    %193 = vmatpush1.msra.mxu0 0.0
    %194 = vmatprep.subr.mxu0 0.0
    %195 = vmatpush1.msra.mxu0 0.0
    %196 = vmatprep.subr.mxu0 0.0
    %197 = vmatpush1.msra.mxu0 0.0
    %198 = vmatprep.subr.mxu0 0.0
    %199 = vmatpush1.msra.mxu0 0.0
    %200 = vmatprep.mubr.f32.mxu0 0.0
    %201 = vmatmul.mubr.f32.gmra.mrb[0].mxu0 %v131
    %v202 = vpop.f32.mrb[0].mxu0
    %v203 = vadd.f32 0.0, %v202
    %v204 = vpop.f32.mrb[0].mxu0
    %205 = vmatprep.mubr.f32.mxu0 0.0
    %206 = vmatmul.mubr.f32.gmra.mrb[0].mxu0 %v134
    %v207 = vpop.f32.mrb[0].mxu0
    %v208 = vadd.f32 0.0, %v207
    %v209 = vpop.f32.mrb[0].mxu0
    %210 = vdwg.mxu0
    %211 = vmatprep.subr.mxu0 0.0
    %212 = vmatpush1.msra.mxu0 %v122
    %213 = vmatprep.subr.mxu0 0.0
    %214 = vmatpush1.msra.mxu0 %v123
    %215 = vmatprep.subr.mxu0 0.0
    %216 = vmatpush1.msra.mxu0 %v124
    %217 = vmatprep.subr.mxu0 0.0
    %218 = vmatpush1.msra.mxu0 %v125
    %219 = vmatprep.subr.mxu0 0.0
    %220 = vmatpush1.msra.mxu0 0.0
    %221 = vmatprep.subr.mxu0 0.0
    %222 = vmatpush1.msra.mxu0 0.0
    %223 = vmatprep.subr.mxu0 0.0
    %224 = vmatpush1.msra.mxu0 0.0
    %225 = vmatprep.subr.mxu0 0.0
    %226 = vmatpush1.msra.mxu0 0.0
    %227 = vmatprep.subr.mxu0 0.0
    %228 = vmatpush1.msra.mxu0 0.0
    %229 = vmatprep.subr.mxu0 0.0
    %230 = vmatpush1.msra.mxu0 0.0
    %231 = vmatprep.subr.mxu0 0.0
    %232 = vmatpush1.msra.mxu0 0.0
    %233 = vmatprep.subr.mxu0 0.0
    %234 = vmatpush1.msra.mxu0 0.0
    %235 = vmatprep.subr.mxu0 0.0
    %236 = vmatpush1.msra.mxu0 0.0
    %237 = vmatprep.subr.mxu0 0.0
    %238 = vmatpush1.msra.mxu0 0.0
    %239 = vmatprep.subr.mxu0 0.0
    %240 = vmatpush1.msra.mxu0 0.0
    %241 = vmatprep.subr.mxu0 0.0
    %242 = vmatpush1.msra.mxu0 0.0
    %243 = vmatprep.subr.mxu0 0.0
    %244 = vmatpush1.msra.mxu0 0.0
    %245 = vmatprep.subr.mxu0 0.0
    %246 = vmatpush1.msra.mxu0 0.0
    %247 = vmatprep.subr.mxu0 0.0
    %248 = vmatpush1.msra.mxu0 0.0
    %249 = vmatprep.subr.mxu0 0.0
    %250 = vmatpush1.msra.mxu0 0.0
    %251 = vmatprep.subr.mxu0 0.0
    %252 = vmatpush1.msra.mxu0 0.0
    %253 = vmatprep.subr.mxu0 0.0
    %254 = vmatpush1.msra.mxu0 0.0
    %255 = vmatprep.subr.mxu0 0.0
    %256 = vmatpush1.msra.mxu0 0.0
    %257 = vmatprep.subr.mxu0 0.0
    %258 = vmatpush1.msra.mxu0 0.0
    %259 = vmatprep.subr.mxu0 0.0
    %260 = vmatpush1.msra.mxu0 0.0
    %261 = vmatprep.subr.mxu0 0.0
    %262 = vmatpush1.msra.mxu0 0.0
    %263 = vmatprep.subr.mxu0 0.0
    %264 = vmatpush1.msra.mxu0 0.0
    %265 = vmatprep.subr.mxu0 0.0
    %266 = vmatpush1.msra.mxu0 0.0
    %267 = vmatprep.subr.mxu0 0.0
    %268 = vmatpush1.msra.mxu0 0.0
    %269 = vmatprep.subr.mxu0 0.0
    %270 = vmatpush1.msra.mxu0 0.0
    %271 = vmatprep.subr.mxu0 0.0
    %272 = vmatpush1.msra.mxu0 0.0
    %273 = vmatprep.subr.mxu0 0.0
    %274 = vmatpush1.msra.mxu0 0.0
    %275 = vmatprep.mubr.f32.mxu0 0.0
    %276 = vmatmul.mubr.f32.gmra.mrb[0].mxu0 %v131
    %v277 = vpop.f32.mrb[0].mxu0
    %v278 = vadd.f32 0.0, %v277
    %v279 = vpop.f32.mrb[0].mxu0
    %280 = vmatprep.mubr.f32.mxu0 0.0
    %281 = vmatmul.mubr.f32.gmra.mrb[0].mxu0 %v134
    %v282 = vpop.f32.mrb[0].mxu0
    %v283 = vadd.f32 0.0, %v282
    %v284 = vpop.f32.mrb[0].mxu0
    %285 = vdwg.mxu0
    %286 = vmatprep.subr.mxu0 0.0
    %287 = vmatpush1.msra.mxu0 %v126
    %288 = vmatprep.subr.mxu0 0.0
    %289 = vmatpush1.msra.mxu0 %v127
    %290 = vmatprep.subr.mxu0 0.0
    %291 = vmatpush1.msra.mxu0 %v128
    %292 = vmatprep.subr.mxu0 0.0
    %293 = vmatpush1.msra.mxu0 %v129
    %294 = vmatprep.subr.mxu0 0.0
    %295 = vmatpush1.msra.mxu0 0.0
    %296 = vmatprep.subr.mxu0 0.0
    %297 = vmatpush1.msra.mxu0 0.0
    %298 = vmatprep.subr.mxu0 0.0
    %299 = vmatpush1.msra.mxu0 0.0
    %300 = vmatprep.subr.mxu0 0.0
    %301 = vmatpush1.msra.mxu0 0.0
    %302 = vmatprep.subr.mxu0 0.0
    %303 = vmatpush1.msra.mxu0 0.0
    %304 = vmatprep.subr.mxu0 0.0
    %305 = vmatpush1.msra.mxu0 0.0
    %306 = vmatprep.subr.mxu0 0.0
    %307 = vmatpush1.msra.mxu0 0.0
    %308 = vmatprep.subr.mxu0 0.0
    %309 = vmatpush1.msra.mxu0 0.0
    %310 = vmatprep.subr.mxu0 0.0
    %311 = vmatpush1.msra.mxu0 0.0
    %312 = vmatprep.subr.mxu0 0.0
    %313 = vmatpush1.msra.mxu0 0.0
    %314 = vmatprep.subr.mxu0 0.0
    %315 = vmatpush1.msra.mxu0 0.0
    %316 = vmatprep.subr.mxu0 0.0
    %317 = vmatpush1.msra.mxu0 0.0
    %318 = vmatprep.subr.mxu0 0.0
    %319 = vmatpush1.msra.mxu0 0.0
    %320 = vmatprep.subr.mxu0 0.0
    %321 = vmatpush1.msra.mxu0 0.0
    %322 = vmatprep.subr.mxu0 0.0
    %323 = vmatpush1.msra.mxu0 0.0
    %324 = vmatprep.subr.mxu0 0.0
    %325 = vmatpush1.msra.mxu0 0.0
    %326 = vmatprep.subr.mxu0 0.0
    %327 = vmatpush1.msra.mxu0 0.0
    %328 = vmatprep.subr.mxu0 0.0
    %329 = vmatpush1.msra.mxu0 0.0
    %330 = vmatprep.subr.mxu0 0.0
    %331 = vmatpush1.msra.mxu0 0.0
    %332 = vmatprep.subr.mxu0 0.0
    %333 = vmatpush1.msra.mxu0 0.0
    %334 = vmatprep.subr.mxu0 0.0
    %335 = vmatpush1.msra.mxu0 0.0
    %336 = vmatprep.subr.mxu0 0.0
    %337 = vmatpush1.msra.mxu0 0.0
    %338 = vmatprep.subr.mxu0 0.0
    %339 = vmatpush1.msra.mxu0 0.0
    %340 = vmatprep.subr.mxu0 0.0
    %341 = vmatpush1.msra.mxu0 0.0
    %342 = vmatprep.subr.mxu0 0.0
    %343 = vmatpush1.msra.mxu0 0.0
    %344 = vmatprep.subr.mxu0 0.0
    %345 = vmatpush1.msra.mxu0 0.0
    %346 = vmatprep.subr.mxu0 0.0
    %347 = vmatpush1.msra.mxu0 0.0
    %348 = vmatprep.subr.mxu0 0.0
    %349 = vmatpush1.msra.mxu0 0.0
    %350 = vmatprep.mubr.f32.mxu0 0.0
    %351 = vmatmul.mubr.f32.gmra.mrb[0].mxu0 %v131
    %v352 = vpop.f32.mrb[0].mxu0
    %v353 = vadd.f32 0.0, %v352
    %v354 = vpop.f32.mrb[0].mxu0
    %355 = vmatprep.mubr.f32.mxu0 0.0
    %356 = vmatmul.mubr.f32.gmra.mrb[0].mxu0 %v134
    %v357 = vpop.f32.mrb[0].mxu0
    %v358 = vadd.f32 0.0, %v357
    %v359 = vpop.f32.mrb[0].mxu0
    %360 = vdwg.mxu0
    %362 = vrot.lane.b32.xlu0 %v203, 112
    %v363 = vpop.permute.xlu0 %362
    %vm364 = vcmask 130048
    %v365 = vsel %vm364, %v203, 0
    %v367 = vsel %vm364, %v363, 0
    %369 = vmatprep.subr.mxu0 0.0
    %370 = vmatpush1.xpose.msra.mxu0 %v367
    %371 = vmatprep.subr.mxu0 0.0
    %372 = vmatpush1.xpose.msra.mxu0 0.0
    %373 = vmatprep.subr.mxu0 0.0
    %374 = vmatpush1.xpose.msra.mxu0 0.0
    %375 = vmatprep.subr.mxu0 0.0
    %376 = vmatpush1.xpose.msra.mxu0 0.0
    %377 = vmatprep.subr.mxu0 0.0
    %378 = vmatpush1.xpose.msra.mxu0 0.0
    %379 = vmatprep.subr.mxu0 0.0
    %380 = vmatpush1.xpose.msra.mxu0 0.0
    %381 = vmatprep.subr.mxu0 0.0
    %382 = vmatpush1.xpose.msra.mxu0 0.0
    %383 = vmatprep.subr.mxu0 0.0
    %384 = vmatpush1.xpose.msra.mxu0 0.0
    %385 = vmatprep.subr.mxu0 0.0
    %386 = vmatpush1.xpose.msra.mxu0 0.0
    %387 = vmatprep.subr.mxu0 0.0
    %388 = vmatpush1.xpose.msra.mxu0 0.0
    %389 = vmatprep.subr.mxu0 0.0
    %390 = vmatpush1.xpose.msra.mxu0 0.0
    %391 = vmatprep.subr.mxu0 0.0
    %392 = vmatpush1.xpose.msra.mxu0 0.0
    %393 = vmatprep.subr.mxu0 0.0
    %394 = vmatpush1.xpose.msra.mxu0 0.0
    %395 = vmatprep.subr.mxu0 0.0
    %396 = vmatpush1.xpose.msra.mxu0 0.0
    %397 = vmatprep.subr.mxu0 0.0
    %398 = vmatpush1.xpose.msra.mxu0 0.0
    %399 = vmatprep.subr.mxu0 0.0
    %400 = vmatpush1.xpose.msra.mxu0 0.0
    %401 = vmatprep.subr.mxu0 0.0
    %402 = vmatpush1.xpose.msra.mxu0 0.0
    %403 = vmatprep.subr.mxu0 0.0
    %404 = vmatpush1.xpose.msra.mxu0 0.0
    %405 = vmatprep.subr.mxu0 0.0
    %406 = vmatpush1.xpose.msra.mxu0 0.0
    %407 = vmatprep.subr.mxu0 0.0
    %408 = vmatpush1.xpose.msra.mxu0 0.0
    %409 = vmatprep.subr.mxu0 0.0
    %410 = vmatpush1.xpose.msra.mxu0 0.0
    %411 = vmatprep.subr.mxu0 0.0
    %412 = vmatpush1.xpose.msra.mxu0 0.0
    %413 = vmatprep.subr.mxu0 0.0
    %414 = vmatpush1.xpose.msra.mxu0 0.0
    %415 = vmatprep.subr.mxu0 0.0
    %416 = vmatpush1.xpose.msra.mxu0 0.0
    %417 = vmatprep.subr.mxu0 0.0
    %418 = vmatpush1.xpose.msra.mxu0 0.0
    %419 = vmatprep.subr.mxu0 0.0
    %420 = vmatpush1.xpose.msra.mxu0 0.0
    %421 = vmatprep.subr.mxu0 0.0
    %422 = vmatpush1.xpose.msra.mxu0 0.0
    %423 = vmatprep.subr.mxu0 0.0
    %424 = vmatpush1.xpose.msra.mxu0 0.0
    %425 = vmatprep.subr.mxu0 0.0
    %426 = vmatpush1.xpose.msra.mxu0 0.0
    %427 = vmatprep.subr.mxu0 0.0
    %428 = vmatpush1.xpose.msra.mxu0 0.0
    %429 = vmatprep.subr.mxu0 0.0
    %430 = vmatpush1.xpose.msra.mxu0 0.0
    %431 = vmatprep.subr.mxu0 0.0
    %432 = vmatpush1.xpose.msra.mxu0 0.0
    %433 = vmatprep.mubr.f32.mxu0 0.0
    %434 = vmatmul.mubr.f32.gmra.mrb[0].mxu0 %v365
    %v435 = vpop.f32.mrb[0].mxu0
    %v436 = vadd.f32 0.0, %v435
    %v437 = vpop.f32.mrb[0].mxu0
    %438 = vdwg.mxu0
    %440 = vrot.lane.b32.xlu0 %v208, 112
    %v441 = vpop.permute.xlu0 %440
    %v442 = vsel %vm364, %v208, 0
    %v444 = vsel %vm364, %v441, 0
    %446 = vmatprep.subr.mxu0 0.0
    %447 = vmatpush1.xpose.msra.mxu0 %v444
    %448 = vmatprep.subr.mxu0 0.0
    %449 = vmatpush1.xpose.msra.mxu0 0.0
    %450 = vmatprep.subr.mxu0 0.0
    %451 = vmatpush1.xpose.msra.mxu0 0.0
    %452 = vmatprep.subr.mxu0 0.0
    %453 = vmatpush1.xpose.msra.mxu0 0.0
    %454 = vmatprep.subr.mxu0 0.0
    %455 = vmatpush1.xpose.msra.mxu0 0.0
    %456 = vmatprep.subr.mxu0 0.0
    %457 = vmatpush1.xpose.msra.mxu0 0.0
    %458 = vmatprep.subr.mxu0 0.0
    %459 = vmatpush1.xpose.msra.mxu0 0.0
    %460 = vmatprep.subr.mxu0 0.0
    %461 = vmatpush1.xpose.msra.mxu0 0.0
    %462 = vmatprep.subr.mxu0 0.0
    %463 = vmatpush1.xpose.msra.mxu0 0.0
    %464 = vmatprep.subr.mxu0 0.0
    %465 = vmatpush1.xpose.msra.mxu0 0.0
    %466 = vmatprep.subr.mxu0 0.0
    %467 = vmatpush1.xpose.msra.mxu0 0.0
    %468 = vmatprep.subr.mxu0 0.0
    %469 = vmatpush1.xpose.msra.mxu0 0.0
    %470 = vmatprep.subr.mxu0 0.0
    %471 = vmatpush1.xpose.msra.mxu0 0.0
    %472 = vmatprep.subr.mxu0 0.0
    %473 = vmatpush1.xpose.msra.mxu0 0.0
    %474 = vmatprep.subr.mxu0 0.0
    %475 = vmatpush1.xpose.msra.mxu0 0.0
    %476 = vmatprep.subr.mxu0 0.0
    %477 = vmatpush1.xpose.msra.mxu0 0.0
    %478 = vmatprep.subr.mxu0 0.0
    %479 = vmatpush1.xpose.msra.mxu0 0.0
    %480 = vmatprep.subr.mxu0 0.0
    %481 = vmatpush1.xpose.msra.mxu0 0.0
    %482 = vmatprep.subr.mxu0 0.0
    %483 = vmatpush1.xpose.msra.mxu0 0.0
    %484 = vmatprep.subr.mxu0 0.0
    %485 = vmatpush1.xpose.msra.mxu0 0.0
    %486 = vmatprep.subr.mxu0 0.0
    %487 = vmatpush1.xpose.msra.mxu0 0.0
    %488 = vmatprep.subr.mxu0 0.0
    %489 = vmatpush1.xpose.msra.mxu0 0.0
    %490 = vmatprep.subr.mxu0 0.0
    %491 = vmatpush1.xpose.msra.mxu0 0.0
    %492 = vmatprep.subr.mxu0 0.0
    %493 = vmatpush1.xpose.msra.mxu0 0.0
    %494 = vmatprep.subr.mxu0 0.0
    %495 = vmatpush1.xpose.msra.mxu0 0.0
    %496 = vmatprep.subr.mxu0 0.0
    %497 = vmatpush1.xpose.msra.mxu0 0.0
    %498 = vmatprep.subr.mxu0 0.0
    %499 = vmatpush1.xpose.msra.mxu0 0.0
    %500 = vmatprep.subr.mxu0 0.0
    %501 = vmatpush1.xpose.msra.mxu0 0.0
    %502 = vmatprep.subr.mxu0 0.0
    %503 = vmatpush1.xpose.msra.mxu0 0.0
    %504 = vmatprep.subr.mxu0 0.0
    %505 = vmatpush1.xpose.msra.mxu0 0.0
    %506 = vmatprep.subr.mxu0 0.0
    %507 = vmatpush1.xpose.msra.mxu0 0.0
    %508 = vmatprep.subr.mxu0 0.0
    %509 = vmatpush1.xpose.msra.mxu0 0.0
    %510 = vmatprep.mubr.f32.mxu0 0.0
    %511 = vmatmul.mubr.f32.gmra.mrb[0].mxu0 %v442
    %v512 = vpop.f32.mrb[0].mxu0
    %v513 = vadd.f32 0.0, %v512
    %v514 = vpop.f32.mrb[0].mxu0
    %515 = vdwg.mxu0
    %517 = vrot.lane.b32.xlu0 %v278, 112
    %v518 = vpop.permute.xlu0 %517
    %v519 = vsel %vm364, %v278, 0
    %v521 = vsel %vm364, %v518, 0
    %523 = vmatprep.subr.mxu0 0.0
    %524 = vmatpush1.xpose.msra.mxu0 %v521
    %525 = vmatprep.subr.mxu0 0.0
    %526 = vmatpush1.xpose.msra.mxu0 0.0
    %527 = vmatprep.subr.mxu0 0.0
    %528 = vmatpush1.xpose.msra.mxu0 0.0
    %529 = vmatprep.subr.mxu0 0.0
    %530 = vmatpush1.xpose.msra.mxu0 0.0
    %531 = vmatprep.subr.mxu0 0.0
    %532 = vmatpush1.xpose.msra.mxu0 0.0
    %533 = vmatprep.subr.mxu0 0.0
    %534 = vmatpush1.xpose.msra.mxu0 0.0
    %535 = vmatprep.subr.mxu0 0.0
    %536 = vmatpush1.xpose.msra.mxu0 0.0
    %537 = vmatprep.subr.mxu0 0.0
    %538 = vmatpush1.xpose.msra.mxu0 0.0
    %539 = vmatprep.subr.mxu0 0.0
    %540 = vmatpush1.xpose.msra.mxu0 0.0
    %541 = vmatprep.subr.mxu0 0.0
    %542 = vmatpush1.xpose.msra.mxu0 0.0
    %543 = vmatprep.subr.mxu0 0.0
    %544 = vmatpush1.xpose.msra.mxu0 0.0
    %545 = vmatprep.subr.mxu0 0.0
    %546 = vmatpush1.xpose.msra.mxu0 0.0
    %547 = vmatprep.subr.mxu0 0.0
    %548 = vmatpush1.xpose.msra.mxu0 0.0
    %549 = vmatprep.subr.mxu0 0.0
    %550 = vmatpush1.xpose.msra.mxu0 0.0
    %551 = vmatprep.subr.mxu0 0.0
    %552 = vmatpush1.xpose.msra.mxu0 0.0
    %553 = vmatprep.subr.mxu0 0.0
    %554 = vmatpush1.xpose.msra.mxu0 0.0
    %555 = vmatprep.subr.mxu0 0.0
    %556 = vmatpush1.xpose.msra.mxu0 0.0
    %557 = vmatprep.subr.mxu0 0.0
    %558 = vmatpush1.xpose.msra.mxu0 0.0
    %559 = vmatprep.subr.mxu0 0.0
    %560 = vmatpush1.xpose.msra.mxu0 0.0
    %561 = vmatprep.subr.mxu0 0.0
    %562 = vmatpush1.xpose.msra.mxu0 0.0
    %563 = vmatprep.subr.mxu0 0.0
    %564 = vmatpush1.xpose.msra.mxu0 0.0
    %565 = vmatprep.subr.mxu0 0.0
    %566 = vmatpush1.xpose.msra.mxu0 0.0
    %567 = vmatprep.subr.mxu0 0.0
    %568 = vmatpush1.xpose.msra.mxu0 0.0
    %569 = vmatprep.subr.mxu0 0.0
    %570 = vmatpush1.xpose.msra.mxu0 0.0
    %571 = vmatprep.subr.mxu0 0.0
    %572 = vmatpush1.xpose.msra.mxu0 0.0
    %573 = vmatprep.subr.mxu0 0.0
    %574 = vmatpush1.xpose.msra.mxu0 0.0
    %575 = vmatprep.subr.mxu0 0.0
    %576 = vmatpush1.xpose.msra.mxu0 0.0
    %577 = vmatprep.subr.mxu0 0.0
    %578 = vmatpush1.xpose.msra.mxu0 0.0
    %579 = vmatprep.subr.mxu0 0.0
    %580 = vmatpush1.xpose.msra.mxu0 0.0
    %581 = vmatprep.subr.mxu0 0.0
    %582 = vmatpush1.xpose.msra.mxu0 0.0
    %583 = vmatprep.subr.mxu0 0.0
    %584 = vmatpush1.xpose.msra.mxu0 0.0
    %585 = vmatprep.subr.mxu0 0.0
    %586 = vmatpush1.xpose.msra.mxu0 0.0
    %587 = vmatprep.mubr.f32.mxu0 0.0
    %588 = vmatmul.mubr.f32.gmra.mrb[0].mxu0 %v519
    %v589 = vpop.f32.mrb[0].mxu0
    %v590 = vadd.f32 0.0, %v589
    %v591 = vpop.f32.mrb[0].mxu0
    %592 = vdwg.mxu0
    %594 = vrot.lane.b32.xlu0 %v283, 112
    %v595 = vpop.permute.xlu0 %594
    %v596 = vsel %vm364, %v283, 0
    %v598 = vsel %vm364, %v595, 0
    %600 = vmatprep.subr.mxu0 0.0
    %601 = vmatpush1.xpose.msra.mxu0 %v598
    %602 = vmatprep.subr.mxu0 0.0
    %603 = vmatpush1.xpose.msra.mxu0 0.0
    %604 = vmatprep.subr.mxu0 0.0
    %605 = vmatpush1.xpose.msra.mxu0 0.0
    %606 = vmatprep.subr.mxu0 0.0
    %607 = vmatpush1.xpose.msra.mxu0 0.0
    %608 = vmatprep.subr.mxu0 0.0
    %609 = vmatpush1.xpose.msra.mxu0 0.0
    %610 = vmatprep.subr.mxu0 0.0
    %611 = vmatpush1.xpose.msra.mxu0 0.0
    %612 = vmatprep.subr.mxu0 0.0
    %613 = vmatpush1.xpose.msra.mxu0 0.0
    %614 = vmatprep.subr.mxu0 0.0
    %615 = vmatpush1.xpose.msra.mxu0 0.0
    %616 = vmatprep.subr.mxu0 0.0
    %617 = vmatpush1.xpose.msra.mxu0 0.0
    %618 = vmatprep.subr.mxu0 0.0
    %619 = vmatpush1.xpose.msra.mxu0 0.0
    %620 = vmatprep.subr.mxu0 0.0
    %621 = vmatpush1.xpose.msra.mxu0 0.0
    %622 = vmatprep.subr.mxu0 0.0
    %623 = vmatpush1.xpose.msra.mxu0 0.0
    %624 = vmatprep.subr.mxu0 0.0
    %625 = vmatpush1.xpose.msra.mxu0 0.0
    %626 = vmatprep.subr.mxu0 0.0
    %627 = vmatpush1.xpose.msra.mxu0 0.0
    %628 = vmatprep.subr.mxu0 0.0
    %629 = vmatpush1.xpose.msra.mxu0 0.0
    %630 = vmatprep.subr.mxu0 0.0
    %631 = vmatpush1.xpose.msra.mxu0 0.0
    %632 = vmatprep.subr.mxu0 0.0
    %633 = vmatpush1.xpose.msra.mxu0 0.0
    %634 = vmatprep.subr.mxu0 0.0
    %635 = vmatpush1.xpose.msra.mxu0 0.0
    %636 = vmatprep.subr.mxu0 0.0
    %637 = vmatpush1.xpose.msra.mxu0 0.0
    %638 = vmatprep.subr.mxu0 0.0
    %639 = vmatpush1.xpose.msra.mxu0 0.0
    %640 = vmatprep.subr.mxu0 0.0
    %641 = vmatpush1.xpose.msra.mxu0 0.0
    %642 = vmatprep.subr.mxu0 0.0
    %643 = vmatpush1.xpose.msra.mxu0 0.0
    %644 = vmatprep.subr.mxu0 0.0
    %645 = vmatpush1.xpose.msra.mxu0 0.0
    %646 = vmatprep.subr.mxu0 0.0
    %647 = vmatpush1.xpose.msra.mxu0 0.0
    %648 = vmatprep.subr.mxu0 0.0
    %649 = vmatpush1.xpose.msra.mxu0 0.0
    %650 = vmatprep.subr.mxu0 0.0
    %651 = vmatpush1.xpose.msra.mxu0 0.0
    %652 = vmatprep.subr.mxu0 0.0
    %653 = vmatpush1.xpose.msra.mxu0 0.0
    %654 = vmatprep.subr.mxu0 0.0
    %655 = vmatpush1.xpose.msra.mxu0 0.0
    %656 = vmatprep.subr.mxu0 0.0
    %657 = vmatpush1.xpose.msra.mxu0 0.0
    %658 = vmatprep.subr.mxu0 0.0
    %659 = vmatpush1.xpose.msra.mxu0 0.0
    %660 = vmatprep.subr.mxu0 0.0
    %661 = vmatpush1.xpose.msra.mxu0 0.0
    %662 = vmatprep.subr.mxu0 0.0
    %663 = vmatpush1.xpose.msra.mxu0 0.0
    %664 = vmatprep.mubr.f32.mxu0 0.0
    %665 = vmatmul.mubr.f32.gmra.mrb[0].mxu0 %v596
    %v666 = vpop.f32.mrb[0].mxu0
    %v667 = vadd.f32 0.0, %v666
    %v668 = vpop.f32.mrb[0].mxu0
    %669 = vdwg.mxu0
    %671 = vrot.lane.b32.xlu0 %v353, 112
    %v672 = vpop.permute.xlu0 %671
    %v673 = vsel %vm364, %v353, 0
    %v675 = vsel %vm364, %v672, 0
    %677 = vmatprep.subr.mxu0 0.0
    %678 = vmatpush1.xpose.msra.mxu0 %v675
    %679 = vmatprep.subr.mxu0 0.0
    %680 = vmatpush1.xpose.msra.mxu0 0.0
    %681 = vmatprep.subr.mxu0 0.0
    %682 = vmatpush1.xpose.msra.mxu0 0.0
    %683 = vmatprep.subr.mxu0 0.0
    %684 = vmatpush1.xpose.msra.mxu0 0.0
    %685 = vmatprep.subr.mxu0 0.0
    %686 = vmatpush1.xpose.msra.mxu0 0.0
    %687 = vmatprep.subr.mxu0 0.0
    %688 = vmatpush1.xpose.msra.mxu0 0.0
    %689 = vmatprep.subr.mxu0 0.0
    %690 = vmatpush1.xpose.msra.mxu0 0.0
    %691 = vmatprep.subr.mxu0 0.0
    %692 = vmatpush1.xpose.msra.mxu0 0.0
    %693 = vmatprep.subr.mxu0 0.0
    %694 = vmatpush1.xpose.msra.mxu0 0.0
    %695 = vmatprep.subr.mxu0 0.0
    %696 = vmatpush1.xpose.msra.mxu0 0.0
    %697 = vmatprep.subr.mxu0 0.0
    %698 = vmatpush1.xpose.msra.mxu0 0.0
    %699 = vmatprep.subr.mxu0 0.0
    %700 = vmatpush1.xpose.msra.mxu0 0.0
    %701 = vmatprep.subr.mxu0 0.0
    %702 = vmatpush1.xpose.msra.mxu0 0.0
    %703 = vmatprep.subr.mxu0 0.0
    %704 = vmatpush1.xpose.msra.mxu0 0.0
    %705 = vmatprep.subr.mxu0 0.0
    %706 = vmatpush1.xpose.msra.mxu0 0.0
    %707 = vmatprep.subr.mxu0 0.0
    %708 = vmatpush1.xpose.msra.mxu0 0.0
    %709 = vmatprep.subr.mxu0 0.0
    %710 = vmatpush1.xpose.msra.mxu0 0.0
    %711 = vmatprep.subr.mxu0 0.0
    %712 = vmatpush1.xpose.msra.mxu0 0.0
    %713 = vmatprep.subr.mxu0 0.0
    %714 = vmatpush1.xpose.msra.mxu0 0.0
    %715 = vmatprep.subr.mxu0 0.0
    %716 = vmatpush1.xpose.msra.mxu0 0.0
    %717 = vmatprep.subr.mxu0 0.0
    %718 = vmatpush1.xpose.msra.mxu0 0.0
    %719 = vmatprep.subr.mxu0 0.0
    %720 = vmatpush1.xpose.msra.mxu0 0.0
    %721 = vmatprep.subr.mxu0 0.0
    %722 = vmatpush1.xpose.msra.mxu0 0.0
    %723 = vmatprep.subr.mxu0 0.0
    %724 = vmatpush1.xpose.msra.mxu0 0.0
    %725 = vmatprep.subr.mxu0 0.0
    %726 = vmatpush1.xpose.msra.mxu0 0.0
    %727 = vmatprep.subr.mxu0 0.0
    %728 = vmatpush1.xpose.msra.mxu0 0.0
    %729 = vmatprep.subr.mxu0 0.0
    %730 = vmatpush1.xpose.msra.mxu0 0.0
    %731 = vmatprep.subr.mxu0 0.0
    %732 = vmatpush1.xpose.msra.mxu0 0.0
    %733 = vmatprep.subr.mxu0 0.0
    %734 = vmatpush1.xpose.msra.mxu0 0.0
    %735 = vmatprep.subr.mxu0 0.0
    %736 = vmatpush1.xpose.msra.mxu0 0.0
    %737 = vmatprep.subr.mxu0 0.0
    %738 = vmatpush1.xpose.msra.mxu0 0.0
    %739 = vmatprep.subr.mxu0 0.0
    %740 = vmatpush1.xpose.msra.mxu0 0.0
    %741 = vmatprep.mubr.f32.mxu0 0.0
    %742 = vmatmul.mubr.f32.gmra.mrb[0].mxu0 %v673
    %v743 = vpop.f32.mrb[0].mxu0
    %v744 = vadd.f32 0.0, %v743
    %v745 = vpop.f32.mrb[0].mxu0
    %746 = vdwg.mxu0
    %748 = vrot.lane.b32.xlu0 %v358, 112
    %v749 = vpop.permute.xlu0 %748
    %v750 = vsel %vm364, %v358, 0
    %v752 = vsel %vm364, %v749, 0
    %754 = vmatprep.subr.mxu0 0.0
    %755 = vmatpush1.xpose.msra.mxu0 %v752
    %756 = vmatprep.subr.mxu0 0.0
    %757 = vmatpush1.xpose.msra.mxu0 0.0
    %758 = vmatprep.subr.mxu0 0.0
    %759 = vmatpush1.xpose.msra.mxu0 0.0
    %760 = vmatprep.subr.mxu0 0.0
    %761 = vmatpush1.xpose.msra.mxu0 0.0
    %762 = vmatprep.subr.mxu0 0.0
    %763 = vmatpush1.xpose.msra.mxu0 0.0
    %764 = vmatprep.subr.mxu0 0.0
    %765 = vmatpush1.xpose.msra.mxu0 0.0
    %766 = vmatprep.subr.mxu0 0.0
    %767 = vmatpush1.xpose.msra.mxu0 0.0
    %768 = vmatprep.subr.mxu0 0.0
    %769 = vmatpush1.xpose.msra.mxu0 0.0
    %770 = vmatprep.subr.mxu0 0.0
    %771 = vmatpush1.xpose.msra.mxu0 0.0
    %772 = vmatprep.subr.mxu0 0.0
    %773 = vmatpush1.xpose.msra.mxu0 0.0
    %774 = vmatprep.subr.mxu0 0.0
    %775 = vmatpush1.xpose.msra.mxu0 0.0
    %776 = vmatprep.subr.mxu0 0.0
    %777 = vmatpush1.xpose.msra.mxu0 0.0
    %778 = vmatprep.subr.mxu0 0.0
    %779 = vmatpush1.xpose.msra.mxu0 0.0
    %780 = vmatprep.subr.mxu0 0.0
    %781 = vmatpush1.xpose.msra.mxu0 0.0
    %782 = vmatprep.subr.mxu0 0.0
    %783 = vmatpush1.xpose.msra.mxu0 0.0
    %784 = vmatprep.subr.mxu0 0.0
    %785 = vmatpush1.xpose.msra.mxu0 0.0
    %786 = vmatprep.subr.mxu0 0.0
    %787 = vmatpush1.xpose.msra.mxu0 0.0
    %788 = vmatprep.subr.mxu0 0.0
    %789 = vmatpush1.xpose.msra.mxu0 0.0
    %790 = vmatprep.subr.mxu0 0.0
    %791 = vmatpush1.xpose.msra.mxu0 0.0
    %792 = vmatprep.subr.mxu0 0.0
    %793 = vmatpush1.xpose.msra.mxu0 0.0
    %794 = vmatprep.subr.mxu0 0.0
    %795 = vmatpush1.xpose.msra.mxu0 0.0
    %796 = vmatprep.subr.mxu0 0.0
    %797 = vmatpush1.xpose.msra.mxu0 0.0
    %798 = vmatprep.subr.mxu0 0.0
    %799 = vmatpush1.xpose.msra.mxu0 0.0
    %800 = vmatprep.subr.mxu0 0.0
    %801 = vmatpush1.xpose.msra.mxu0 0.0
    %802 = vmatprep.subr.mxu0 0.0
    %803 = vmatpush1.xpose.msra.mxu0 0.0
    %804 = vmatprep.subr.mxu0 0.0
    %805 = vmatpush1.xpose.msra.mxu0 0.0
    %806 = vmatprep.subr.mxu0 0.0
    %807 = vmatpush1.xpose.msra.mxu0 0.0
    %808 = vmatprep.subr.mxu0 0.0
    %809 = vmatpush1.xpose.msra.mxu0 0.0
    %810 = vmatprep.subr.mxu0 0.0
    %811 = vmatpush1.xpose.msra.mxu0 0.0
    %812 = vmatprep.subr.mxu0 0.0
    %813 = vmatpush1.xpose.msra.mxu0 0.0
    %814 = vmatprep.subr.mxu0 0.0
    %815 = vmatpush1.xpose.msra.mxu0 0.0
    %816 = vmatprep.subr.mxu0 0.0
    %817 = vmatpush1.xpose.msra.mxu0 0.0
    %818 = vmatprep.mubr.f32.mxu0 0.0
    %819 = vmatmul.mubr.f32.gmra.mrb[0].mxu0 %v750
    %v820 = vpop.f32.mrb[0].mxu0
    %v821 = vadd.f32 0.0, %v820
    %v822 = vpop.f32.mrb[0].mxu0
    %823 = vdwg.mxu0
    %vm824 = vcmask 64512
    %v825 = vsel %vm824, %v436, -inf
    %826 = vmax.xlane.f32.xlu0 %v825
    %v827 = vpop.xlane.xlu0 %826
    %v828 = vsel %vm824, %v513, -inf
    %829 = vmax.xlane.f32.xlu0 %v828
    %v830 = vpop.xlane.xlu0 %829
    %v831 = vsel %vm824, %v590, -inf
    %832 = vmax.xlane.f32.xlu0 %v831
    %v833 = vpop.xlane.xlu0 %832
    %v834 = vsel %vm824, %v667, -inf
    %835 = vmax.xlane.f32.xlu0 %v834
    %v836 = vpop.xlane.xlu0 %835
    %v837 = vsel %vm824, %v744, -inf
    %838 = vmax.xlane.f32.xlu0 %v837
    %v839 = vpop.xlane.xlu0 %838
    %v840 = vsel %vm824, %v821, -inf
    %841 = vmax.xlane.f32.xlu0 %v840
    %v842 = vpop.xlane.xlu0 %841
    %v843 = vsub.f32 %v436, %v827
    %v844 = vsub.f32 %v513, %v830
    %v845 = vsub.f32 %v590, %v833
    %v846 = vsub.f32 %v667, %v836
    %v847 = vsub.f32 %v744, %v839
    %v848 = vsub.f32 %v821, %v842
    %v849 = vmul.f32 %v843, 1.442695
    %v850 = vpow.pop %v849
    %v851 = vmul.f32 %v844, 1.442695
    %v852 = vpow.pop %v851
    %v853 = vmul.f32 %v845, 1.442695
    %v854 = vpow.pop %v853
    %v855 = vmul.f32 %v846, 1.442695
    %v856 = vpow.pop %v855
    %v857 = vmul.f32 %v847, 1.442695
    %v858 = vpow.pop %v857
    %v859 = vmul.f32 %v848, 1.442695
    %v860 = vpow.pop %v859
    %v861 = vsel %vm824, %v850, 0.0
    %862 = vadd.xlane.f32.xlu0 %v861
    %v863 = vpop.xlane.xlu0 %862
    %v864 = vsel %vm824, %v852, 0.0
    %865 = vadd.xlane.f32.xlu0 %v864
    %v866 = vpop.xlane.xlu0 %865
    %v867 = vsel %vm824, %v854, 0.0
    %868 = vadd.xlane.f32.xlu0 %v867
    %v869 = vpop.xlane.xlu0 %868
    %v870 = vsel %vm824, %v856, 0.0
    %871 = vadd.xlane.f32.xlu0 %v870
    %v872 = vpop.xlane.xlu0 %871
    %v873 = vsel %vm824, %v858, 0.0
    %874 = vadd.xlane.f32.xlu0 %v873
    %v875 = vpop.xlane.xlu0 %874
    %v876 = vsel %vm824, %v860, 0.0
    %877 = vadd.xlane.f32.xlu0 %v876
    %v878 = vpop.xlane.xlu0 %877
    %v879 = vrcp.pop %v863
    %v880 = vrcp.pop %v866
    %v881 = vrcp.pop %v869
    %v882 = vrcp.pop %v872
    %v883 = vrcp.pop %v875
    %v884 = vrcp.pop %v878
    %v885 = vmul.f32 %v850, %v879
    %v886 = vmul.f32 %v852, %v880
    %v887 = vmul.f32 %v854, %v881
    %v888 = vmul.f32 %v856, %v882
    %v889 = vmul.f32 %v858, %v883
    %v890 = vmul.f32 %v860, %v884
    %891 = vrot.lane.b32.xlu0 %v203, 96
    %v892 = vpop.permute.xlu0 %891
    %v895 = vsel %vm824, %v885, 0
    %897 = vmatprep.subr.mxu0 0.0
    %898 = vmatpush1.msra.mxu0 %v892
    %899 = vmatprep.subr.mxu0 0.0
    %900 = vmatpush1.msra.mxu0 0.0
    %901 = vmatprep.subr.mxu0 0.0
    %902 = vmatpush1.msra.mxu0 0.0
    %903 = vmatprep.subr.mxu0 0.0
    %904 = vmatpush1.msra.mxu0 0.0
    %905 = vmatprep.subr.mxu0 0.0
    %906 = vmatpush1.msra.mxu0 0.0
    %907 = vmatprep.subr.mxu0 0.0
    %908 = vmatpush1.msra.mxu0 0.0
    %909 = vmatprep.subr.mxu0 0.0
    %910 = vmatpush1.msra.mxu0 0.0
    %911 = vmatprep.subr.mxu0 0.0
    %912 = vmatpush1.msra.mxu0 0.0
    %913 = vmatprep.subr.mxu0 0.0
    %914 = vmatpush1.msra.mxu0 0.0
    %915 = vmatprep.subr.mxu0 0.0
    %916 = vmatpush1.msra.mxu0 0.0
    %917 = vmatprep.subr.mxu0 0.0
    %918 = vmatpush1.msra.mxu0 0.0
    %919 = vmatprep.subr.mxu0 0.0
    %920 = vmatpush1.msra.mxu0 0.0
    %921 = vmatprep.subr.mxu0 0.0
    %922 = vmatpush1.msra.mxu0 0.0
    %923 = vmatprep.subr.mxu0 0.0
    %924 = vmatpush1.msra.mxu0 0.0
    %925 = vmatprep.subr.mxu0 0.0
    %926 = vmatpush1.msra.mxu0 0.0
    %927 = vmatprep.subr.mxu0 0.0
    %928 = vmatpush1.msra.mxu0 0.0
    %929 = vmatprep.subr.mxu0 0.0
    %930 = vmatpush1.msra.mxu0 0.0
    %931 = vmatprep.subr.mxu0 0.0
    %932 = vmatpush1.msra.mxu0 0.0
    %933 = vmatprep.subr.mxu0 0.0
    %934 = vmatpush1.msra.mxu0 0.0
    %935 = vmatprep.subr.mxu0 0.0
    %936 = vmatpush1.msra.mxu0 0.0
    %937 = vmatprep.subr.mxu0 0.0
    %938 = vmatpush1.msra.mxu0 0.0
    %939 = vmatprep.subr.mxu0 0.0
    %940 = vmatpush1.msra.mxu0 0.0
    %941 = vmatprep.subr.mxu0 0.0
    %942 = vmatpush1.msra.mxu0 0.0
    %943 = vmatprep.subr.mxu0 0.0
    %944 = vmatpush1.msra.mxu0 0.0
    %945 = vmatprep.subr.mxu0 0.0
    %946 = vmatpush1.msra.mxu0 0.0
    %947 = vmatprep.subr.mxu0 0.0
    %948 = vmatpush1.msra.mxu0 0.0
    %949 = vmatprep.subr.mxu0 0.0
    %950 = vmatpush1.msra.mxu0 0.0
    %951 = vmatprep.subr.mxu0 0.0
    %952 = vmatpush1.msra.mxu0 0.0
    %953 = vmatprep.subr.mxu0 0.0
    %954 = vmatpush1.msra.mxu0 0.0
    %955 = vmatprep.subr.mxu0 0.0
    %956 = vmatpush1.msra.mxu0 0.0
    %957 = vmatprep.subr.mxu0 0.0
    %958 = vmatpush1.msra.mxu0 0.0
    %959 = vmatprep.subr.mxu0 0.0
    %960 = vmatpush1.msra.mxu0 0.0
    %961 = vmatprep.mubr.f32.mxu0 0.0
    %962 = vmatmul.mubr.f32.gmra.mrb[0].mxu0 %v895
    %v963 = vpop.f32.mrb[0].mxu0
    %v964 = vadd.f32 0.0, %v963
    %v965 = vpop.f32.mrb[0].mxu0
    %966 = vdwg.mxu0
    %967 = vrot.lane.b32.xlu0 %v208, 96
    %v968 = vpop.permute.xlu0 %967
    %v971 = vsel %vm824, %v886, 0
    %973 = vmatprep.subr.mxu0 0.0
    %974 = vmatpush1.msra.mxu0 %v968
    %975 = vmatprep.subr.mxu0 0.0
    %976 = vmatpush1.msra.mxu0 0.0
    %977 = vmatprep.subr.mxu0 0.0
    %978 = vmatpush1.msra.mxu0 0.0
    %979 = vmatprep.subr.mxu0 0.0
    %980 = vmatpush1.msra.mxu0 0.0
    %981 = vmatprep.subr.mxu0 0.0
    %982 = vmatpush1.msra.mxu0 0.0
    %983 = vmatprep.subr.mxu0 0.0
    %984 = vmatpush1.msra.mxu0 0.0
    %985 = vmatprep.subr.mxu0 0.0
    %986 = vmatpush1.msra.mxu0 0.0
    %987 = vmatprep.subr.mxu0 0.0
    %988 = vmatpush1.msra.mxu0 0.0
    %989 = vmatprep.subr.mxu0 0.0
    %990 = vmatpush1.msra.mxu0 0.0
    %991 = vmatprep.subr.mxu0 0.0
    %992 = vmatpush1.msra.mxu0 0.0
    %993 = vmatprep.subr.mxu0 0.0
    %994 = vmatpush1.msra.mxu0 0.0
    %995 = vmatprep.subr.mxu0 0.0
    %996 = vmatpush1.msra.mxu0 0.0
    %997 = vmatprep.subr.mxu0 0.0
    %998 = vmatpush1.msra.mxu0 0.0
    %999 = vmatprep.subr.mxu0 0.0
    %1000 = vmatpush1.msra.mxu0 0.0
    %1001 = vmatprep.subr.mxu0 0.0
    %1002 = vmatpush1.msra.mxu0 0.0
    %1003 = vmatprep.subr.mxu0 0.0
    %1004 = vmatpush1.msra.mxu0 0.0
    %1005 = vmatprep.subr.mxu0 0.0
    %1006 = vmatpush1.msra.mxu0 0.0
    %1007 = vmatprep.subr.mxu0 0.0
    %1008 = vmatpush1.msra.mxu0 0.0
    %1009 = vmatprep.subr.mxu0 0.0
    %1010 = vmatpush1.msra.mxu0 0.0
    %1011 = vmatprep.subr.mxu0 0.0
    %1012 = vmatpush1.msra.mxu0 0.0
    %1013 = vmatprep.subr.mxu0 0.0
    %1014 = vmatpush1.msra.mxu0 0.0
    %1015 = vmatprep.subr.mxu0 0.0
    %1016 = vmatpush1.msra.mxu0 0.0
    %1017 = vmatprep.subr.mxu0 0.0
    %1018 = vmatpush1.msra.mxu0 0.0
    %1019 = vmatprep.subr.mxu0 0.0
    %1020 = vmatpush1.msra.mxu0 0.0
    %1021 = vmatprep.subr.mxu0 0.0
    %1022 = vmatpush1.msra.mxu0 0.0
    %1023 = vmatprep.subr.mxu0 0.0
    %1024 = vmatpush1.msra.mxu0 0.0
    %1025 = vmatprep.subr.mxu0 0.0
    %1026 = vmatpush1.msra.mxu0 0.0
    %1027 = vmatprep.subr.mxu0 0.0
    %1028 = vmatpush1.msra.mxu0 0.0
    %1029 = vmatprep.subr.mxu0 0.0
    %1030 = vmatpush1.msra.mxu0 0.0
    %1031 = vmatprep.subr.mxu0 0.0
    %1032 = vmatpush1.msra.mxu0 0.0
    %1033 = vmatprep.subr.mxu0 0.0
    %1034 = vmatpush1.msra.mxu0 0.0
    %1035 = vmatprep.subr.mxu0 0.0
    %1036 = vmatpush1.msra.mxu0 0.0
    %1037 = vmatprep.mubr.f32.mxu0 0.0
    %1038 = vmatmul.mubr.f32.gmra.mrb[0].mxu0 %v971
    %v1039 = vpop.f32.mrb[0].mxu0
    %v1040 = vadd.f32 0.0, %v1039
    %v1041 = vpop.f32.mrb[0].mxu0
    %1042 = vdwg.mxu0
    %1043 = vrot.lane.b32.xlu0 %v278, 96
    %v1044 = vpop.permute.xlu0 %1043
    %v1047 = vsel %vm824, %v887, 0
    %1049 = vmatprep.subr.mxu0 0.0
    %1050 = vmatpush1.msra.mxu0 %v1044
    %1051 = vmatprep.subr.mxu0 0.0
    %1052 = vmatpush1.msra.mxu0 0.0
    %1053 = vmatprep.subr.mxu0 0.0
    %1054 = vmatpush1.msra.mxu0 0.0
    %1055 = vmatprep.subr.mxu0 0.0
    %1056 = vmatpush1.msra.mxu0 0.0
    %1057 = vmatprep.subr.mxu0 0.0
    %1058 = vmatpush1.msra.mxu0 0.0
    %1059 = vmatprep.subr.mxu0 0.0
    %1060 = vmatpush1.msra.mxu0 0.0
    %1061 = vmatprep.subr.mxu0 0.0
    %1062 = vmatpush1.msra.mxu0 0.0
    %1063 = vmatprep.subr.mxu0 0.0
    %1064 = vmatpush1.msra.mxu0 0.0
    %1065 = vmatprep.subr.mxu0 0.0
    %1066 = vmatpush1.msra.mxu0 0.0
    %1067 = vmatprep.subr.mxu0 0.0
    %1068 = vmatpush1.msra.mxu0 0.0
    %1069 = vmatprep.subr.mxu0 0.0
    %1070 = vmatpush1.msra.mxu0 0.0
    %1071 = vmatprep.subr.mxu0 0.0
    %1072 = vmatpush1.msra.mxu0 0.0
    %1073 = vmatprep.subr.mxu0 0.0
    %1074 = vmatpush1.msra.mxu0 0.0
    %1075 = vmatprep.subr.mxu0 0.0
    %1076 = vmatpush1.msra.mxu0 0.0
    %1077 = vmatprep.subr.mxu0 0.0
    %1078 = vmatpush1.msra.mxu0 0.0
    %1079 = vmatprep.subr.mxu0 0.0
    %1080 = vmatpush1.msra.mxu0 0.0
    %1081 = vmatprep.subr.mxu0 0.0
    %1082 = vmatpush1.msra.mxu0 0.0
    %1083 = vmatprep.subr.mxu0 0.0
    %1084 = vmatpush1.msra.mxu0 0.0
    %1085 = vmatprep.subr.mxu0 0.0
    %1086 = vmatpush1.msra.mxu0 0.0
    %1087 = vmatprep.subr.mxu0 0.0
    %1088 = vmatpush1.msra.mxu0 0.0
    %1089 = vmatprep.subr.mxu0 0.0
    %1090 = vmatpush1.msra.mxu0 0.0
    %1091 = vmatprep.subr.mxu0 0.0
    %1092 = vmatpush1.msra.mxu0 0.0
    %1093 = vmatprep.subr.mxu0 0.0
    %1094 = vmatpush1.msra.mxu0 0.0
    %1095 = vmatprep.subr.mxu0 0.0
    %1096 = vmatpush1.msra.mxu0 0.0
    %1097 = vmatprep.subr.mxu0 0.0
    %1098 = vmatpush1.msra.mxu0 0.0
    %1099 = vmatprep.subr.mxu0 0.0
    %1100 = vmatpush1.msra.mxu0 0.0
    %1101 = vmatprep.subr.mxu0 0.0
    %1102 = vmatpush1.msra.mxu0 0.0
    %1103 = vmatprep.subr.mxu0 0.0
    %1104 = vmatpush1.msra.mxu0 0.0
    %1105 = vmatprep.subr.mxu0 0.0
    %1106 = vmatpush1.msra.mxu0 0.0
    %1107 = vmatprep.subr.mxu0 0.0
    %1108 = vmatpush1.msra.mxu0 0.0
    %1109 = vmatprep.subr.mxu0 0.0
    %1110 = vmatpush1.msra.mxu0 0.0
    %1111 = vmatprep.subr.mxu0 0.0
    %1112 = vmatpush1.msra.mxu0 0.0
    %1113 = vmatprep.mubr.f32.mxu0 0.0
    %1114 = vmatmul.mubr.f32.gmra.mrb[0].mxu0 %v1047
    %v1115 = vpop.f32.mrb[0].mxu0
    %v1116 = vadd.f32 0.0, %v1115
    %v1117 = vpop.f32.mrb[0].mxu0
    %1118 = vdwg.mxu0
    %1119 = vrot.lane.b32.xlu0 %v283, 96
    %v1120 = vpop.permute.xlu0 %1119
    %v1123 = vsel %vm824, %v888, 0
    %1125 = vmatprep.subr.mxu0 0.0
    %1126 = vmatpush1.msra.mxu0 %v1120
    %1127 = vmatprep.subr.mxu0 0.0
    %1128 = vmatpush1.msra.mxu0 0.0
    %1129 = vmatprep.subr.mxu0 0.0
    %1130 = vmatpush1.msra.mxu0 0.0
    %1131 = vmatprep.subr.mxu0 0.0
    %1132 = vmatpush1.msra.mxu0 0.0
    %1133 = vmatprep.subr.mxu0 0.0
    %1134 = vmatpush1.msra.mxu0 0.0
    %1135 = vmatprep.subr.mxu0 0.0
    %1136 = vmatpush1.msra.mxu0 0.0
    %1137 = vmatprep.subr.mxu0 0.0
    %1138 = vmatpush1.msra.mxu0 0.0
    %1139 = vmatprep.subr.mxu0 0.0
    %1140 = vmatpush1.msra.mxu0 0.0
    %1141 = vmatprep.subr.mxu0 0.0
    %1142 = vmatpush1.msra.mxu0 0.0
    %1143 = vmatprep.subr.mxu0 0.0
    %1144 = vmatpush1.msra.mxu0 0.0
    %1145 = vmatprep.subr.mxu0 0.0
    %1146 = vmatpush1.msra.mxu0 0.0
    %1147 = vmatprep.subr.mxu0 0.0
    %1148 = vmatpush1.msra.mxu0 0.0
    %1149 = vmatprep.subr.mxu0 0.0
    %1150 = vmatpush1.msra.mxu0 0.0
    %1151 = vmatprep.subr.mxu0 0.0
    %1152 = vmatpush1.msra.mxu0 0.0
    %1153 = vmatprep.subr.mxu0 0.0
    %1154 = vmatpush1.msra.mxu0 0.0
    %1155 = vmatprep.subr.mxu0 0.0
    %1156 = vmatpush1.msra.mxu0 0.0
    %1157 = vmatprep.subr.mxu0 0.0
    %1158 = vmatpush1.msra.mxu0 0.0
    %1159 = vmatprep.subr.mxu0 0.0
    %1160 = vmatpush1.msra.mxu0 0.0
    %1161 = vmatprep.subr.mxu0 0.0
    %1162 = vmatpush1.msra.mxu0 0.0
    %1163 = vmatprep.subr.mxu0 0.0
    %1164 = vmatpush1.msra.mxu0 0.0
    %1165 = vmatprep.subr.mxu0 0.0
    %1166 = vmatpush1.msra.mxu0 0.0
    %1167 = vmatprep.subr.mxu0 0.0
    %1168 = vmatpush1.msra.mxu0 0.0
    %1169 = vmatprep.subr.mxu0 0.0
    %1170 = vmatpush1.msra.mxu0 0.0
    %1171 = vmatprep.subr.mxu0 0.0
    %1172 = vmatpush1.msra.mxu0 0.0
    %1173 = vmatprep.subr.mxu0 0.0
    %1174 = vmatpush1.msra.mxu0 0.0
    %1175 = vmatprep.subr.mxu0 0.0
    %1176 = vmatpush1.msra.mxu0 0.0
    %1177 = vmatprep.subr.mxu0 0.0
    %1178 = vmatpush1.msra.mxu0 0.0
    %1179 = vmatprep.subr.mxu0 0.0
    %1180 = vmatpush1.msra.mxu0 0.0
    %1181 = vmatprep.subr.mxu0 0.0
    %1182 = vmatpush1.msra.mxu0 0.0
    %1183 = vmatprep.subr.mxu0 0.0
    %1184 = vmatpush1.msra.mxu0 0.0
    %1185 = vmatprep.subr.mxu0 0.0
    %1186 = vmatpush1.msra.mxu0 0.0
    %1187 = vmatprep.subr.mxu0 0.0
    %1188 = vmatpush1.msra.mxu0 0.0
    %1189 = vmatprep.mubr.f32.mxu0 0.0
    %1190 = vmatmul.mubr.f32.gmra.mrb[0].mxu0 %v1123
    %v1191 = vpop.f32.mrb[0].mxu0
    %v1192 = vadd.f32 0.0, %v1191
    %v1193 = vpop.f32.mrb[0].mxu0
    %1194 = vdwg.mxu0
    %1195 = vrot.lane.b32.xlu0 %v353, 96
    %v1196 = vpop.permute.xlu0 %1195
    %v1199 = vsel %vm824, %v889, 0
    %1201 = vmatprep.subr.mxu0 0.0
    %1202 = vmatpush1.msra.mxu0 %v1196
    %1203 = vmatprep.subr.mxu0 0.0
    %1204 = vmatpush1.msra.mxu0 0.0
    %1205 = vmatprep.subr.mxu0 0.0
    %1206 = vmatpush1.msra.mxu0 0.0
    %1207 = vmatprep.subr.mxu0 0.0
    %1208 = vmatpush1.msra.mxu0 0.0
    %1209 = vmatprep.subr.mxu0 0.0
    %1210 = vmatpush1.msra.mxu0 0.0
    %1211 = vmatprep.subr.mxu0 0.0
    %1212 = vmatpush1.msra.mxu0 0.0
    %1213 = vmatprep.subr.mxu0 0.0
    %1214 = vmatpush1.msra.mxu0 0.0
    %1215 = vmatprep.subr.mxu0 0.0
    %1216 = vmatpush1.msra.mxu0 0.0
    %1217 = vmatprep.subr.mxu0 0.0
    %1218 = vmatpush1.msra.mxu0 0.0
    %1219 = vmatprep.subr.mxu0 0.0
    %1220 = vmatpush1.msra.mxu0 0.0
    %1221 = vmatprep.subr.mxu0 0.0
    %1222 = vmatpush1.msra.mxu0 0.0
    %1223 = vmatprep.subr.mxu0 0.0
    %1224 = vmatpush1.msra.mxu0 0.0
    %1225 = vmatprep.subr.mxu0 0.0
    %1226 = vmatpush1.msra.mxu0 0.0
    %1227 = vmatprep.subr.mxu0 0.0
    %1228 = vmatpush1.msra.mxu0 0.0
    %1229 = vmatprep.subr.mxu0 0.0
    %1230 = vmatpush1.msra.mxu0 0.0
    %1231 = vmatprep.subr.mxu0 0.0
    %1232 = vmatpush1.msra.mxu0 0.0
    %1233 = vmatprep.subr.mxu0 0.0
    %1234 = vmatpush1.msra.mxu0 0.0
    %1235 = vmatprep.subr.mxu0 0.0
    %1236 = vmatpush1.msra.mxu0 0.0
    %1237 = vmatprep.subr.mxu0 0.0
    %1238 = vmatpush1.msra.mxu0 0.0
    %1239 = vmatprep.subr.mxu0 0.0
    %1240 = vmatpush1.msra.mxu0 0.0
    %1241 = vmatprep.subr.mxu0 0.0
    %1242 = vmatpush1.msra.mxu0 0.0
    %1243 = vmatprep.subr.mxu0 0.0
    %1244 = vmatpush1.msra.mxu0 0.0
    %1245 = vmatprep.subr.mxu0 0.0
    %1246 = vmatpush1.msra.mxu0 0.0
    %1247 = vmatprep.subr.mxu0 0.0
    %1248 = vmatpush1.msra.mxu0 0.0
    %1249 = vmatprep.subr.mxu0 0.0
    %1250 = vmatpush1.msra.mxu0 0.0
    %1251 = vmatprep.subr.mxu0 0.0
    %1252 = vmatpush1.msra.mxu0 0.0
    %1253 = vmatprep.subr.mxu0 0.0
    %1254 = vmatpush1.msra.mxu0 0.0
    %1255 = vmatprep.subr.mxu0 0.0
    %1256 = vmatpush1.msra.mxu0 0.0
    %1257 = vmatprep.subr.mxu0 0.0
    %1258 = vmatpush1.msra.mxu0 0.0
    %1259 = vmatprep.subr.mxu0 0.0
    %1260 = vmatpush1.msra.mxu0 0.0
    %1261 = vmatprep.subr.mxu0 0.0
    %1262 = vmatpush1.msra.mxu0 0.0
    %1263 = vmatprep.subr.mxu0 0.0
    %1264 = vmatpush1.msra.mxu0 0.0
    %1265 = vmatprep.mubr.f32.mxu0 0.0
    %1266 = vmatmul.mubr.f32.gmra.mrb[0].mxu0 %v1199
    %v1267 = vpop.f32.mrb[0].mxu0
    %v1268 = vadd.f32 0.0, %v1267
    %v1269 = vpop.f32.mrb[0].mxu0
    %1270 = vdwg.mxu0
    %1271 = vrot.lane.b32.xlu0 %v358, 96
    %v1272 = vpop.permute.xlu0 %1271
    %v1275 = vsel %vm824, %v890, 0
    %1277 = vmatprep.subr.mxu0 0.0
    %1278 = vmatpush1.msra.mxu0 %v1272
    %1279 = vmatprep.subr.mxu0 0.0
    %1280 = vmatpush1.msra.mxu0 0.0
    %1281 = vmatprep.subr.mxu0 0.0
    %1282 = vmatpush1.msra.mxu0 0.0
    %1283 = vmatprep.subr.mxu0 0.0
    %1284 = vmatpush1.msra.mxu0 0.0
    %1285 = vmatprep.subr.mxu0 0.0
    %1286 = vmatpush1.msra.mxu0 0.0
    %1287 = vmatprep.subr.mxu0 0.0
    %1288 = vmatpush1.msra.mxu0 0.0
    %1289 = vmatprep.subr.mxu0 0.0
    %1290 = vmatpush1.msra.mxu0 0.0
    %1291 = vmatprep.subr.mxu0 0.0
    %1292 = vmatpush1.msra.mxu0 0.0
    %1293 = vmatprep.subr.mxu0 0.0
    %1294 = vmatpush1.msra.mxu0 0.0
    %1295 = vmatprep.subr.mxu0 0.0
    %1296 = vmatpush1.msra.mxu0 0.0
    %1297 = vmatprep.subr.mxu0 0.0
    %1298 = vmatpush1.msra.mxu0 0.0
    %1299 = vmatprep.subr.mxu0 0.0
    %1300 = vmatpush1.msra.mxu0 0.0
    %1301 = vmatprep.subr.mxu0 0.0
    %1302 = vmatpush1.msra.mxu0 0.0
    %1303 = vmatprep.subr.mxu0 0.0
    %1304 = vmatpush1.msra.mxu0 0.0
    %1305 = vmatprep.subr.mxu0 0.0
    %1306 = vmatpush1.msra.mxu0 0.0
    %1307 = vmatprep.subr.mxu0 0.0
    %1308 = vmatpush1.msra.mxu0 0.0
    %1309 = vmatprep.subr.mxu0 0.0
    %1310 = vmatpush1.msra.mxu0 0.0
    %1311 = vmatprep.subr.mxu0 0.0
    %1312 = vmatpush1.msra.mxu0 0.0
    %1313 = vmatprep.subr.mxu0 0.0
    %1314 = vmatpush1.msra.mxu0 0.0
    %1315 = vmatprep.subr.mxu0 0.0
    %1316 = vmatpush1.msra.mxu0 0.0
    %1317 = vmatprep.subr.mxu0 0.0
    %1318 = vmatpush1.msra.mxu0 0.0
    %1319 = vmatprep.subr.mxu0 0.0
    %1320 = vmatpush1.msra.mxu0 0.0
    %1321 = vmatprep.subr.mxu0 0.0
    %1322 = vmatpush1.msra.mxu0 0.0
    %1323 = vmatprep.subr.mxu0 0.0
    %1324 = vmatpush1.msra.mxu0 0.0
    %1325 = vmatprep.subr.mxu0 0.0
    %1326 = vmatpush1.msra.mxu0 0.0
    %1327 = vmatprep.subr.mxu0 0.0
    %1328 = vmatpush1.msra.mxu0 0.0
    %1329 = vmatprep.subr.mxu0 0.0
    %1330 = vmatpush1.msra.mxu0 0.0
    %1331 = vmatprep.subr.mxu0 0.0
    %1332 = vmatpush1.msra.mxu0 0.0
    %1333 = vmatprep.subr.mxu0 0.0
    %1334 = vmatpush1.msra.mxu0 0.0
    %1335 = vmatprep.subr.mxu0 0.0
    %1336 = vmatpush1.msra.mxu0 0.0
    %1337 = vmatprep.subr.mxu0 0.0
    %1338 = vmatpush1.msra.mxu0 0.0
    %1339 = vmatprep.subr.mxu0 0.0
    %1340 = vmatpush1.msra.mxu0 0.0
    %1341 = vmatprep.mubr.f32.mxu0 0.0
    %1342 = vmatmul.mubr.f32.gmra.mrb[0].mxu0 %v1275
    %v1343 = vpop.f32.mrb[0].mxu0
    %v1344 = vadd.f32 0.0, %v1343
    %v1345 = vpop.f32.mrb[0].mxu0
    %1346 = vdwg.mxu0
    %v1347 = vld [vmem:[%s4] sm:$0xff]
    %v1348 = vld [vmem:[%s4 + $0x8] sm:$0xff]
    %v1349 = vld [vmem:[%s4 + $0x10] sm:$0xff]
    %v1350 = vld [vmem:[%s4 + $0x18] sm:$0xff]
    %v1351 = vld [vmem:[%s4 + $0x20] sm:$0xff]
    %v1352 = vld [vmem:[%s4 + $0x28] sm:$0xff]
    %v1353 = vld [vmem:[%s5] sm:$0x1]
    %v1355 = vsel %vm364, %v964, 0
    %v1358 = vsel %vm364, %v1040, 0
    %1360 = vmatprep.subr.mxu0 0.0
    %1361 = vmatpush1.msra.mxu0 %v1347
    %1362 = vmatprep.subr.mxu0 0.0
    %1363 = vmatpush1.msra.mxu0 %v1348
    %1364 = vmatprep.subr.mxu0 0.0
    %1365 = vmatpush1.msra.mxu0 0.0
    %1366 = vmatprep.subr.mxu0 0.0
    %1367 = vmatpush1.msra.mxu0 0.0
    %1368 = vmatprep.subr.mxu0 0.0
    %1369 = vmatpush1.msra.mxu0 0.0
    %1370 = vmatprep.subr.mxu0 0.0
    %1371 = vmatpush1.msra.mxu0 0.0
    %1372 = vmatprep.subr.mxu0 0.0
    %1373 = vmatpush1.msra.mxu0 0.0
    %1374 = vmatprep.subr.mxu0 0.0
    %1375 = vmatpush1.msra.mxu0 0.0
    %1376 = vmatprep.subr.mxu0 0.0
    %1377 = vmatpush1.msra.mxu0 0.0
    %1378 = vmatprep.subr.mxu0 0.0
    %1379 = vmatpush1.msra.mxu0 0.0
    %1380 = vmatprep.subr.mxu0 0.0
    %1381 = vmatpush1.msra.mxu0 0.0
    %1382 = vmatprep.subr.mxu0 0.0
    %1383 = vmatpush1.msra.mxu0 0.0
    %1384 = vmatprep.subr.mxu0 0.0
    %1385 = vmatpush1.msra.mxu0 0.0
    %1386 = vmatprep.subr.mxu0 0.0
    %1387 = vmatpush1.msra.mxu0 0.0
    %1388 = vmatprep.subr.mxu0 0.0
    %1389 = vmatpush1.msra.mxu0 0.0
    %1390 = vmatprep.subr.mxu0 0.0
    %1391 = vmatpush1.msra.mxu0 0.0
    %1392 = vmatprep.subr.mxu0 0.0
    %1393 = vmatpush1.msra.mxu0 0.0
    %1394 = vmatprep.subr.mxu0 0.0
    %1395 = vmatpush1.msra.mxu0 0.0
    %1396 = vmatprep.subr.mxu0 0.0
    %1397 = vmatpush1.msra.mxu0 0.0
    %1398 = vmatprep.subr.mxu0 0.0
    %1399 = vmatpush1.msra.mxu0 0.0
    %1400 = vmatprep.subr.mxu0 0.0
    %1401 = vmatpush1.msra.mxu0 0.0
    %1402 = vmatprep.subr.mxu0 0.0
    %1403 = vmatpush1.msra.mxu0 0.0
    %1404 = vmatprep.subr.mxu0 0.0
    %1405 = vmatpush1.msra.mxu0 0.0
    %1406 = vmatprep.subr.mxu0 0.0
    %1407 = vmatpush1.msra.mxu0 0.0
    %1408 = vmatprep.subr.mxu0 0.0
    %1409 = vmatpush1.msra.mxu0 0.0
    %1410 = vmatprep.subr.mxu0 0.0
    %1411 = vmatpush1.msra.mxu0 0.0
    %1412 = vmatprep.subr.mxu0 0.0
    %1413 = vmatpush1.msra.mxu0 0.0
    %1414 = vmatprep.subr.mxu0 0.0
    %1415 = vmatpush1.msra.mxu0 0.0
    %1416 = vmatprep.subr.mxu0 0.0
    %1417 = vmatpush1.msra.mxu0 0.0
    %1418 = vmatprep.subr.mxu0 0.0
    %1419 = vmatpush1.msra.mxu0 0.0
    %1420 = vmatprep.subr.mxu0 0.0
    %1421 = vmatpush1.msra.mxu0 0.0
    %1422 = vmatprep.subr.mxu0 0.0
    %1423 = vmatpush1.msra.mxu0 0.0
    %1424 = vmatprep.mubr.f32.mxu0 0.0
    %1425 = vmatmul.mubr.f32.gmra.mrb[0].mxu0 %v1355
    %v1426 = vpop.f32.mrb[0].mxu0
    %v1427 = vadd.f32 0.0, %v1426
    %v1428 = vpop.f32.mrb[0].mxu0
    %1429 = vmatprep.mubr.f32.mxu0 0.0
    %1430 = vmatmul.mubr.f32.gmra.mrb[0].mxu0 %v1358
    %v1431 = vpop.f32.mrb[0].mxu0
    %v1432 = vadd.f32 0.0, %v1431
    %v1433 = vpop.f32.mrb[0].mxu0
    %1434 = vdwg.mxu0
    %v1436 = vlaneseq
    %v1437 = vshrl.u32 %v1436, 7
    %v1438 = vsub.s32 0, %v1437
    %v1439 = vrot.slane %v1353, %v1438
    %v1441 = vadd.f32 %v1439, %v1427
    %v1442 = vadd.f32 %v1439, %v1432
    %v1444 = vsel %vm364, %v1116, 0
    %v1447 = vsel %vm364, %v1192, 0
    %1449 = vmatprep.subr.mxu0 0.0
    %1450 = vmatpush1.msra.mxu0 %v1349
    %1451 = vmatprep.subr.mxu0 0.0
    %1452 = vmatpush1.msra.mxu0 %v1350
    %1453 = vmatprep.subr.mxu0 0.0
    %1454 = vmatpush1.msra.mxu0 0.0
    %1455 = vmatprep.subr.mxu0 0.0
    %1456 = vmatpush1.msra.mxu0 0.0
    %1457 = vmatprep.subr.mxu0 0.0
    %1458 = vmatpush1.msra.mxu0 0.0
    %1459 = vmatprep.subr.mxu0 0.0
    %1460 = vmatpush1.msra.mxu0 0.0
    %1461 = vmatprep.subr.mxu0 0.0
    %1462 = vmatpush1.msra.mxu0 0.0
    %1463 = vmatprep.subr.mxu0 0.0
    %1464 = vmatpush1.msra.mxu0 0.0
    %1465 = vmatprep.subr.mxu0 0.0
    %1466 = vmatpush1.msra.mxu0 0.0
    %1467 = vmatprep.subr.mxu0 0.0
    %1468 = vmatpush1.msra.mxu0 0.0
    %1469 = vmatprep.subr.mxu0 0.0
    %1470 = vmatpush1.msra.mxu0 0.0
    %1471 = vmatprep.subr.mxu0 0.0
    %1472 = vmatpush1.msra.mxu0 0.0
    %1473 = vmatprep.subr.mxu0 0.0
    %1474 = vmatpush1.msra.mxu0 0.0
    %1475 = vmatprep.subr.mxu0 0.0
    %1476 = vmatpush1.msra.mxu0 0.0
    %1477 = vmatprep.subr.mxu0 0.0
    %1478 = vmatpush1.msra.mxu0 0.0
    %1479 = vmatprep.subr.mxu0 0.0
    %1480 = vmatpush1.msra.mxu0 0.0
    %1481 = vmatprep.subr.mxu0 0.0
    %1482 = vmatpush1.msra.mxu0 0.0
    %1483 = vmatprep.subr.mxu0 0.0
    %1484 = vmatpush1.msra.mxu0 0.0
    %1485 = vmatprep.subr.mxu0 0.0
    %1486 = vmatpush1.msra.mxu0 0.0
    %1487 = vmatprep.subr.mxu0 0.0
    %1488 = vmatpush1.msra.mxu0 0.0
    %1489 = vmatprep.subr.mxu0 0.0
    %1490 = vmatpush1.msra.mxu0 0.0
    %1491 = vmatprep.subr.mxu0 0.0
    %1492 = vmatpush1.msra.mxu0 0.0
    %1493 = vmatprep.subr.mxu0 0.0
    %1494 = vmatpush1.msra.mxu0 0.0
    %1495 = vmatprep.subr.mxu0 0.0
    %1496 = vmatpush1.msra.mxu0 0.0
    %1497 = vmatprep.subr.mxu0 0.0
    %1498 = vmatpush1.msra.mxu0 0.0
    %1499 = vmatprep.subr.mxu0 0.0
    %1500 = vmatpush1.msra.mxu0 0.0
    %1501 = vmatprep.subr.mxu0 0.0
    %1502 = vmatpush1.msra.mxu0 0.0
    %1503 = vmatprep.subr.mxu0 0.0
    %1504 = vmatpush1.msra.mxu0 0.0
    %1505 = vmatprep.subr.mxu0 0.0
    %1506 = vmatpush1.msra.mxu0 0.0
    %1507 = vmatprep.subr.mxu0 0.0
    %1508 = vmatpush1.msra.mxu0 0.0
    %1509 = vmatprep.subr.mxu0 0.0
    %1510 = vmatpush1.msra.mxu0 0.0
    %1511 = vmatprep.subr.mxu0 0.0
    %1512 = vmatpush1.msra.mxu0 0.0
    %1513 = vmatprep.mubr.f32.mxu0 0.0
    %1514 = vmatmul.mubr.f32.gmra.mrb[0].mxu0 %v1444
    %v1515 = vpop.f32.mrb[0].mxu0
    %v1516 = vadd.f32 0.0, %v1515
    %v1517 = vpop.f32.mrb[0].mxu0
    %1518 = vmatprep.mubr.f32.mxu0 0.0
    %1519 = vmatmul.mubr.f32.gmra.mrb[0].mxu0 %v1447
    %v1520 = vpop.f32.mrb[0].mxu0
    %v1521 = vadd.f32 0.0, %v1520
    %v1522 = vpop.f32.mrb[0].mxu0
    %1523 = vdwg.mxu0
    %v1524 = vadd.f32 %v1441, %v1516
    %v1525 = vadd.f32 %v1442, %v1521
    %v1527 = vsel %vm364, %v1268, 0
    %v1530 = vsel %vm364, %v1344, 0
    %1532 = vmatprep.subr.mxu0 0.0
    %1533 = vmatpush1.msra.mxu0 %v1351
    %1534 = vmatprep.subr.mxu0 0.0
    %1535 = vmatpush1.msra.mxu0 %v1352
    %1536 = vmatprep.subr.mxu0 0.0
    %1537 = vmatpush1.msra.mxu0 0.0
    %1538 = vmatprep.subr.mxu0 0.0
    %1539 = vmatpush1.msra.mxu0 0.0
    %1540 = vmatprep.subr.mxu0 0.0
    %1541 = vmatpush1.msra.mxu0 0.0
    %1542 = vmatprep.subr.mxu0 0.0
    %1543 = vmatpush1.msra.mxu0 0.0
    %1544 = vmatprep.subr.mxu0 0.0
    %1545 = vmatpush1.msra.mxu0 0.0
    %1546 = vmatprep.subr.mxu0 0.0
    %1547 = vmatpush1.msra.mxu0 0.0
    %1548 = vmatprep.subr.mxu0 0.0
    %1549 = vmatpush1.msra.mxu0 0.0
    %1550 = vmatprep.subr.mxu0 0.0
    %1551 = vmatpush1.msra.mxu0 0.0
    %1552 = vmatprep.subr.mxu0 0.0
    %1553 = vmatpush1.msra.mxu0 0.0
    %1554 = vmatprep.subr.mxu0 0.0
    %1555 = vmatpush1.msra.mxu0 0.0
    %1556 = vmatprep.subr.mxu0 0.0
    %1557 = vmatpush1.msra.mxu0 0.0
    %1558 = vmatprep.subr.mxu0 0.0
    %1559 = vmatpush1.msra.mxu0 0.0
    %1560 = vmatprep.subr.mxu0 0.0
    %1561 = vmatpush1.msra.mxu0 0.0
    %1562 = vmatprep.subr.mxu0 0.0
    %1563 = vmatpush1.msra.mxu0 0.0
    %1564 = vmatprep.subr.mxu0 0.0
    %1565 = vmatpush1.msra.mxu0 0.0
    %1566 = vmatprep.subr.mxu0 0.0
    %1567 = vmatpush1.msra.mxu0 0.0
    %1568 = vmatprep.subr.mxu0 0.0
    %1569 = vmatpush1.msra.mxu0 0.0
    %1570 = vmatprep.subr.mxu0 0.0
    %1571 = vmatpush1.msra.mxu0 0.0
    %1572 = vmatprep.subr.mxu0 0.0
    %1573 = vmatpush1.msra.mxu0 0.0
    %1574 = vmatprep.subr.mxu0 0.0
    %1575 = vmatpush1.msra.mxu0 0.0
    %1576 = vmatprep.subr.mxu0 0.0
    %1577 = vmatpush1.msra.mxu0 0.0
    %1578 = vmatprep.subr.mxu0 0.0
    %1579 = vmatpush1.msra.mxu0 0.0
    %1580 = vmatprep.subr.mxu0 0.0
    %1581 = vmatpush1.msra.mxu0 0.0
    %1582 = vmatprep.subr.mxu0 0.0
    %1583 = vmatpush1.msra.mxu0 0.0
    %1584 = vmatprep.subr.mxu0 0.0
    %1585 = vmatpush1.msra.mxu0 0.0
    %1586 = vmatprep.subr.mxu0 0.0
    %1587 = vmatpush1.msra.mxu0 0.0
    %1588 = vmatprep.subr.mxu0 0.0
    %1589 = vmatpush1.msra.mxu0 0.0
    %1590 = vmatprep.subr.mxu0 0.0
    %1591 = vmatpush1.msra.mxu0 0.0
    %1592 = vmatprep.subr.mxu0 0.0
    %1593 = vmatpush1.msra.mxu0 0.0
    %1594 = vmatprep.subr.mxu0 0.0
    %1595 = vmatpush1.msra.mxu0 0.0
    %1596 = vmatprep.mubr.f32.mxu0 0.0
    %1597 = vmatmul.mubr.f32.gmra.mrb[0].mxu0 %v1527
    %v1598 = vpop.f32.mrb[0].mxu0
    %v1599 = vadd.f32 0.0, %v1598
    %v1600 = vpop.f32.mrb[0].mxu0
    %1601 = vmatprep.mubr.f32.mxu0 0.0
    %1602 = vmatmul.mubr.f32.gmra.mrb[0].mxu0 %v1530
    %v1603 = vpop.f32.mrb[0].mxu0
    %v1604 = vadd.f32 0.0, %v1603
    %v1605 = vpop.f32.mrb[0].mxu0
    %1606 = vdwg.mxu0
    %v1607 = vadd.f32 %v1524, %v1599
    %v1608 = vadd.f32 %v1525, %v1604
    %v1609 = vadd.f32 %v70, %v1607
    %v1610 = vadd.f32 %v71, %v1608
    %v1611 = vld [vmem:[%s6] sm:$0x1]
    %v1612 = vld [vmem:[%s7] sm:$0x1]
    %v1613 = vsel %vm74, %v1609, 0.0
    %1614 = vadd.xlane.f32.xlu0 %v1613
    %v1615 = vpop.xlane.xlu0 %1614
    %v1616 = vsel %vm74, %v1610, 0.0
    %1617 = vadd.xlane.f32.xlu0 %v1616
    %v1618 = vpop.xlane.xlu0 %1617
    %v1619 = vmul.f32 %v1615, %v81
    %v1620 = vmul.f32 %v1618, %v81
    %v1621 = vsub.f32 %v1609, %v1619
    %v1622 = vsub.f32 %v1610, %v1620
    %v1623 = vmul.f32 %v1621, %v1621
    %v1624 = vmul.f32 %v1622, %v1622
    %v1625 = vsel %vm74, %v1623, 0.0
    %1626 = vadd.xlane.f32.xlu0 %v1625
    %v1627 = vpop.xlane.xlu0 %1626
    %v1628 = vsel %vm74, %v1624, 0.0
    %1629 = vadd.xlane.f32.xlu0 %v1628
    %v1630 = vpop.xlane.xlu0 %1629
    %v1631 = vmul.f32 %v1627, %v81
    %v1632 = vmul.f32 %v1630, %v81
    %v1633 = vadd.f32 %v1631, 1e-05
    %v1634 = vadd.f32 %v1632, 1e-05
    %v1635 = vrsqrt.pop %v1633
    %v1636 = vrsqrt.pop %v1634
    %v1637 = vmul.f32 %v1621, %v1635
    %v1638 = vmul.f32 %v1622, %v1636
    %v1640 = vlaneseq
    %v1641 = vshrl.u32 %v1640, 7
    %v1642 = vsub.s32 0, %v1641
    %v1643 = vrot.slane %v1611, %v1642
    %v1645 = vmul.f32 %v1637, %v1643
    %v1646 = vmul.f32 %v1638, %v1643
    %v1648 = vlaneseq
    %v1649 = vshrl.u32 %v1648, 7
    %v1650 = vsub.s32 0, %v1649
    %v1651 = vrot.slane %v1612, %v1650
    %v1653 = vadd.f32 %v1645, %v1651
    %v1654 = vadd.f32 %v1646, %v1651
    %v1655 = vld [vmem:[%s8] sm:$0xff]
    %v1656 = vld [vmem:[%s8 + $0x8] sm:$0xff]
    %v1657 = vld [vmem:[%s8 + $0x10] sm:$0xff]
    %v1658 = vld [vmem:[%s8 + $0x18] sm:$0xff]
    %v1659 = vld [vmem:[%s9] sm:$0x1]
    %v1661 = vlaneseq
    %v1662 = vshrl.u32 %v1661, 7
    %v1663 = vsub.s32 0, %v1662
    %v1664 = vrot.slane %v1659, %v1663
    %v1667 = vsel %vm74, %v1653, 0
    %v1670 = vsel %vm74, %v1654, 0
    %1672 = vmatprep.subr.mxu0 0.0
    %1673 = vmatpush1.msra.mxu0 %v1655
    %1674 = vmatprep.subr.mxu0 0.0
    %1675 = vmatpush1.msra.mxu0 %v1656
    %1676 = vmatprep.subr.mxu0 0.0
    %1677 = vmatpush1.msra.mxu0 %v1657
    %1678 = vmatprep.subr.mxu0 0.0
    %1679 = vmatpush1.msra.mxu0 %v1658
    %1680 = vmatprep.subr.mxu0 0.0
    %1681 = vmatpush1.msra.mxu0 0.0
    %1682 = vmatprep.subr.mxu0 0.0
    %1683 = vmatpush1.msra.mxu0 0.0
    %1684 = vmatprep.subr.mxu0 0.0
    %1685 = vmatpush1.msra.mxu0 0.0
    %1686 = vmatprep.subr.mxu0 0.0
    %1687 = vmatpush1.msra.mxu0 0.0
    %1688 = vmatprep.subr.mxu0 0.0
    %1689 = vmatpush1.msra.mxu0 0.0
    %1690 = vmatprep.subr.mxu0 0.0
    %1691 = vmatpush1.msra.mxu0 0.0
    %1692 = vmatprep.subr.mxu0 0.0
    %1693 = vmatpush1.msra.mxu0 0.0
    %1694 = vmatprep.subr.mxu0 0.0
    %1695 = vmatpush1.msra.mxu0 0.0
    %1696 = vmatprep.subr.mxu0 0.0
    %1697 = vmatpush1.msra.mxu0 0.0
    %1698 = vmatprep.subr.mxu0 0.0
    %1699 = vmatpush1.msra.mxu0 0.0
    %1700 = vmatprep.subr.mxu0 0.0
    %1701 = vmatpush1.msra.mxu0 0.0
    %1702 = vmatprep.subr.mxu0 0.0
    %1703 = vmatpush1.msra.mxu0 0.0
    %1704 = vmatprep.subr.mxu0 0.0
    %1705 = vmatpush1.msra.mxu0 0.0
    %1706 = vmatprep.subr.mxu0 0.0
    %1707 = vmatpush1.msra.mxu0 0.0
    %1708 = vmatprep.subr.mxu0 0.0
    %1709 = vmatpush1.msra.mxu0 0.0
    %1710 = vmatprep.subr.mxu0 0.0
    %1711 = vmatpush1.msra.mxu0 0.0
    %1712 = vmatprep.subr.mxu0 0.0
    %1713 = vmatpush1.msra.mxu0 0.0
    %1714 = vmatprep.subr.mxu0 0.0
    %1715 = vmatpush1.msra.mxu0 0.0
    %1716 = vmatprep.subr.mxu0 0.0
    %1717 = vmatpush1.msra.mxu0 0.0
    %1718 = vmatprep.subr.mxu0 0.0
    %1719 = vmatpush1.msra.mxu0 0.0
    %1720 = vmatprep.subr.mxu0 0.0
    %1721 = vmatpush1.msra.mxu0 0.0
    %1722 = vmatprep.subr.mxu0 0.0
    %1723 = vmatpush1.msra.mxu0 0.0
    %1724 = vmatprep.subr.mxu0 0.0
    %1725 = vmatpush1.msra.mxu0 0.0
    %1726 = vmatprep.subr.mxu0 0.0
    %1727 = vmatpush1.msra.mxu0 0.0
    %1728 = vmatprep.subr.mxu0 0.0
    %1729 = vmatpush1.msra.mxu0 0.0
    %1730 = vmatprep.subr.mxu0 0.0
    %1731 = vmatpush1.msra.mxu0 0.0
    %1732 = vmatprep.subr.mxu0 0.0
    %1733 = vmatpush1.msra.mxu0 0.0
    %1734 = vmatprep.subr.mxu0 0.0
    %1735 = vmatpush1.msra.mxu0 0.0
    %1736 = vmatprep.mubr.f32.mxu0 0.0
    %1737 = vmatmul.mubr.f32.gmra.mrb[0].mxu0 %v1667
    %v1738 = vpop.f32.mrb[0].mxu0
    %v1739 = vadd.f32 %v1664, %v1738
    %v1740 = vpop.f32.mrb[0].mxu0
    %1741 = vmatprep.mubr.f32.mxu0 0.0
    %1742 = vmatmul.mubr.f32.gmra.mrb[0].mxu0 %v1670
    %v1743 = vpop.f32.mrb[0].mxu0
    %v1744 = vadd.f32 %v1664, %v1743
    %v1745 = vpop.f32.mrb[0].mxu0
    %1746 = vdwg.mxu0
    %v1747 = vmul.f32 %v1739, 0.01
    %v1748 = vmul.f32 %v1744, 0.01
    %v1749 = vmax.f32 %v1739, %v1747
    %v1750 = vmax.f32 %v1744, %v1748
    %v1751 = vld [vmem:[%s10] sm:$0xff]
    %v1752 = vld [vmem:[%s10 + $0x8] sm:$0xff]
    %v1753 = vld [vmem:[%s10 + $0x10] sm:$0xff]
    %v1754 = vld [vmem:[%s10 + $0x18] sm:$0xff]
    %v1755 = vld [vmem:[%s10 + $0x20] sm:$0xff]
    %v1756 = vld [vmem:[%s10 + $0x28] sm:$0xff]
    %vm1757 = vcmask 392192
    %v1759 = vsel %vm1757, %v1749, 0
    %v1762 = vsel %vm1757, %v1750, 0
    %1764 = vmatprep.subr.mxu0 0.0
    %1765 = vmatpush1.msra.mxu0 %v1751
    %1766 = vmatprep.subr.mxu0 0.0
    %1767 = vmatpush1.msra.mxu0 %v1752
    %1768 = vmatprep.subr.mxu0 0.0
    %1769 = vmatpush1.msra.mxu0 %v1753
    %1770 = vmatprep.subr.mxu0 0.0
    %1771 = vmatpush1.msra.mxu0 %v1754
    %1772 = vmatprep.subr.mxu0 0.0
    %1773 = vmatpush1.msra.mxu0 %v1755
    %1774 = vmatprep.subr.mxu0 0.0
    %1775 = vmatpush1.msra.mxu0 %v1756
    %1776 = vmatprep.subr.mxu0 0.0
    %1777 = vmatpush1.msra.mxu0 0.0
    %1778 = vmatprep.subr.mxu0 0.0
    %1779 = vmatpush1.msra.mxu0 0.0
    %1780 = vmatprep.subr.mxu0 0.0
    %1781 = vmatpush1.msra.mxu0 0.0
    %1782 = vmatprep.subr.mxu0 0.0
    %1783 = vmatpush1.msra.mxu0 0.0
    %1784 = vmatprep.subr.mxu0 0.0
    %1785 = vmatpush1.msra.mxu0 0.0
    %1786 = vmatprep.subr.mxu0 0.0
    %1787 = vmatpush1.msra.mxu0 0.0
    %1788 = vmatprep.subr.mxu0 0.0
    %1789 = vmatpush1.msra.mxu0 0.0
    %1790 = vmatprep.subr.mxu0 0.0
    %1791 = vmatpush1.msra.mxu0 0.0
    %1792 = vmatprep.subr.mxu0 0.0
    %1793 = vmatpush1.msra.mxu0 0.0
    %1794 = vmatprep.subr.mxu0 0.0
    %1795 = vmatpush1.msra.mxu0 0.0
    %1796 = vmatprep.subr.mxu0 0.0
    %1797 = vmatpush1.msra.mxu0 0.0
    %1798 = vmatprep.subr.mxu0 0.0
    %1799 = vmatpush1.msra.mxu0 0.0
    %1800 = vmatprep.subr.mxu0 0.0
    %1801 = vmatpush1.msra.mxu0 0.0
    %1802 = vmatprep.subr.mxu0 0.0
    %1803 = vmatpush1.msra.mxu0 0.0
    %1804 = vmatprep.subr.mxu0 0.0
    %1805 = vmatpush1.msra.mxu0 0.0
    %1806 = vmatprep.subr.mxu0 0.0
    %1807 = vmatpush1.msra.mxu0 0.0
    %1808 = vmatprep.subr.mxu0 0.0
    %1809 = vmatpush1.msra.mxu0 0.0
    %1810 = vmatprep.subr.mxu0 0.0
    %1811 = vmatpush1.msra.mxu0 0.0
    %1812 = vmatprep.subr.mxu0 0.0
    %1813 = vmatpush1.msra.mxu0 0.0
    %1814 = vmatprep.subr.mxu0 0.0
    %1815 = vmatpush1.msra.mxu0 0.0
    %1816 = vmatprep.subr.mxu0 0.0
    %1817 = vmatpush1.msra.mxu0 0.0
    %1818 = vmatprep.subr.mxu0 0.0
    %1819 = vmatpush1.msra.mxu0 0.0
    %1820 = vmatprep.subr.mxu0 0.0
    %1821 = vmatpush1.msra.mxu0 0.0
    %1822 = vmatprep.subr.mxu0 0.0
    %1823 = vmatpush1.msra.mxu0 0.0
    %1824 = vmatprep.subr.mxu0 0.0
    %1825 = vmatpush1.msra.mxu0 0.0
    %1826 = vmatprep.subr.mxu0 0.0
    %1827 = vmatpush1.msra.mxu0 0.0
    %1828 = vmatprep.mubr.f32.mxu0 0.0
    %1829 = vmatmul.mubr.f32.gmra.mrb[0].mxu0 %v1759
    %v1830 = vpop.f32.mrb[0].mxu0
    %v1831 = vadd.f32 0.0, %v1830
    %v1832 = vpop.f32.mrb[0].mxu0
    %1833 = vmatprep.mubr.f32.mxu0 0.0
    %1834 = vmatmul.mubr.f32.gmra.mrb[0].mxu0 %v1762
    %v1835 = vpop.f32.mrb[0].mxu0
    %v1836 = vadd.f32 0.0, %v1835
    %v1837 = vpop.f32.mrb[0].mxu0
    %1838 = vdwg.mxu0
    %v1839 = vadd.f32 %v1609, %v1831
    %v1840 = vadd.f32 %v1610, %v1836
    %v1841 = vld [vmem:[%s11] sm:$0x1]
    %v1843 = vlaneseq
    %v1844 = vshrl.u32 %v1843, 7
    %v1845 = vsub.s32 0, %v1844
    %v1846 = vrot.slane %v1841, %v1845
    %v1848 = vadd.f32 %v1839, %v1846
    %v1849 = vadd.f32 %v1840, %v1846
    %s1850 = scalar_lea.vmem %s1, 1
    %v1851 = vld [vmem:[%s1850] sm:$0x1]
    %s1852 = scalar_lea.vmem %s2, 1
    %v1853 = vld [vmem:[%s1852] sm:$0x1]
    %v1854 = vsel %vm74, %v1848, 0.0
    %1855 = vadd.xlane.f32.xlu0 %v1854
    %v1856 = vpop.xlane.xlu0 %1855
    %v1857 = vsel %vm74, %v1849, 0.0
    %1858 = vadd.xlane.f32.xlu0 %v1857
    %v1859 = vpop.xlane.xlu0 %1858
    %v1860 = vmul.f32 %v1856, %v81
    %v1861 = vmul.f32 %v1859, %v81
    %v1862 = vsub.f32 %v1848, %v1860
    %v1863 = vsub.f32 %v1849, %v1861
    %v1864 = vmul.f32 %v1862, %v1862
    %v1865 = vmul.f32 %v1863, %v1863
    %v1866 = vsel %vm74, %v1864, 0.0
    %1867 = vadd.xlane.f32.xlu0 %v1866
    %v1868 = vpop.xlane.xlu0 %1867
    %v1869 = vsel %vm74, %v1865, 0.0
    %1870 = vadd.xlane.f32.xlu0 %v1869
    %v1871 = vpop.xlane.xlu0 %1870
    %v1872 = vmul.f32 %v1868, %v81
    %v1873 = vmul.f32 %v1871, %v81
    %v1874 = vadd.f32 %v1872, 1e-05
    %v1875 = vadd.f32 %v1873, 1e-05
    %v1876 = vrsqrt.pop %v1874
    %v1877 = vrsqrt.pop %v1875
    %v1878 = vmul.f32 %v1862, %v1876
    %v1879 = vmul.f32 %v1863, %v1877
    %v1881 = vlaneseq
    %v1882 = vshrl.u32 %v1881, 7
    %v1883 = vsub.s32 0, %v1882
    %v1884 = vrot.slane %v1851, %v1883
    %v1886 = vmul.f32 %v1878, %v1884
    %v1887 = vmul.f32 %v1879, %v1884
    %v1889 = vlaneseq
    %v1890 = vshrl.u32 %v1889, 7
    %v1891 = vsub.s32 0, %v1890
    %v1892 = vrot.slane %v1853, %v1891
    %v1894 = vadd.f32 %v1886, %v1892
    %v1895 = vadd.f32 %v1887, %v1892
    %s1896 = scalar_lea.vmem [#allocation5], 96
    %v1897 = vld [vmem:[%s1896] sm:$0xff]
    %v1898 = vld [vmem:[%s1896 + $0x8] sm:$0xff]
    %v1899 = vld [vmem:[%s1896 + $0x10] sm:$0xff]
    %v1900 = vld [vmem:[%s1896 + $0x18] sm:$0xff]
    %v1901 = vld [vmem:[%s1896 + $0x20] sm:$0xff]
    %v1902 = vld [vmem:[%s1896 + $0x28] sm:$0xff]
    %v1903 = vld [vmem:[%s1896 + $0x30] sm:$0xff]
    %v1904 = vld [vmem:[%s1896 + $0x38] sm:$0xff]
    %v1905 = vld [vmem:[%s1896 + $0x40] sm:$0xff]
    %v1906 = vld [vmem:[%s1896 + $0x48] sm:$0xff]
    %v1907 = vld [vmem:[%s1896 + $0x50] sm:$0xff]
    %v1908 = vld [vmem:[%s1896 + $0x58] sm:$0xff]
    %v1910 = vsel %vm74, %v1894, 0
    %v1913 = vsel %vm74, %v1895, 0
    %1915 = vmatprep.subr.mxu0 0.0
    %1916 = vmatpush1.msra.mxu0 %v1897
    %1917 = vmatprep.subr.mxu0 0.0
    %1918 = vmatpush1.msra.mxu0 %v1898
    %1919 = vmatprep.subr.mxu0 0.0
    %1920 = vmatpush1.msra.mxu0 %v1899
    %1921 = vmatprep.subr.mxu0 0.0
    %1922 = vmatpush1.msra.mxu0 %v1900
    %1923 = vmatprep.subr.mxu0 0.0
    %1924 = vmatpush1.msra.mxu0 0.0
    %1925 = vmatprep.subr.mxu0 0.0
    %1926 = vmatpush1.msra.mxu0 0.0
    %1927 = vmatprep.subr.mxu0 0.0
    %1928 = vmatpush1.msra.mxu0 0.0
    %1929 = vmatprep.subr.mxu0 0.0
    %1930 = vmatpush1.msra.mxu0 0.0
    %1931 = vmatprep.subr.mxu0 0.0
    %1932 = vmatpush1.msra.mxu0 0.0
    %1933 = vmatprep.subr.mxu0 0.0
    %1934 = vmatpush1.msra.mxu0 0.0
    %1935 = vmatprep.subr.mxu0 0.0
    %1936 = vmatpush1.msra.mxu0 0.0
    %1937 = vmatprep.subr.mxu0 0.0
    %1938 = vmatpush1.msra.mxu0 0.0
    %1939 = vmatprep.subr.mxu0 0.0
    %1940 = vmatpush1.msra.mxu0 0.0
    %1941 = vmatprep.subr.mxu0 0.0
    %1942 = vmatpush1.msra.mxu0 0.0
    %1943 = vmatprep.subr.mxu0 0.0
    %1944 = vmatpush1.msra.mxu0 0.0
    %1945 = vmatprep.subr.mxu0 0.0
    %1946 = vmatpush1.msra.mxu0 0.0
    %1947 = vmatprep.subr.mxu0 0.0
    %1948 = vmatpush1.msra.mxu0 0.0
    %1949 = vmatprep.subr.mxu0 0.0
    %1950 = vmatpush1.msra.mxu0 0.0
    %1951 = vmatprep.subr.mxu0 0.0
    %1952 = vmatpush1.msra.mxu0 0.0
    %1953 = vmatprep.subr.mxu0 0.0
    %1954 = vmatpush1.msra.mxu0 0.0
    %1955 = vmatprep.subr.mxu0 0.0
    %1956 = vmatpush1.msra.mxu0 0.0
    %1957 = vmatprep.subr.mxu0 0.0
    %1958 = vmatpush1.msra.mxu0 0.0
    %1959 = vmatprep.subr.mxu0 0.0
    %1960 = vmatpush1.msra.mxu0 0.0
    %1961 = vmatprep.subr.mxu0 0.0
    %1962 = vmatpush1.msra.mxu0 0.0
    %1963 = vmatprep.subr.mxu0 0.0
    %1964 = vmatpush1.msra.mxu0 0.0
    %1965 = vmatprep.subr.mxu0 0.0
    %1966 = vmatpush1.msra.mxu0 0.0
    %1967 = vmatprep.subr.mxu0 0.0
    %1968 = vmatpush1.msra.mxu0 0.0
    %1969 = vmatprep.subr.mxu0 0.0
    %1970 = vmatpush1.msra.mxu0 0.0
    %1971 = vmatprep.subr.mxu0 0.0
    %1972 = vmatpush1.msra.mxu0 0.0
    %1973 = vmatprep.subr.mxu0 0.0
    %1974 = vmatpush1.msra.mxu0 0.0
    %1975 = vmatprep.subr.mxu0 0.0
    %1976 = vmatpush1.msra.mxu0 0.0
    %1977 = vmatprep.subr.mxu0 0.0
    %1978 = vmatpush1.msra.mxu0 0.0
    %1979 = vmatprep.mubr.f32.mxu0 0.0
    %1980 = vmatmul.mubr.f32.gmra.mrb[0].mxu0 %v1910
    %v1981 = vpop.f32.mrb[0].mxu0
    %v1982 = vadd.f32 0.0, %v1981
    %v1983 = vpop.f32.mrb[0].mxu0
    %1984 = vmatprep.mubr.f32.mxu0 0.0
    %1985 = vmatmul.mubr.f32.gmra.mrb[0].mxu0 %v1913
    %v1986 = vpop.f32.mrb[0].mxu0
    %v1987 = vadd.f32 0.0, %v1986
    %v1988 = vpop.f32.mrb[0].mxu0
    %1989 = vdwg.mxu0
    %1990 = vmatprep.subr.mxu0 0.0
    %1991 = vmatpush1.msra.mxu0 %v1901
    %1992 = vmatprep.subr.mxu0 0.0
    %1993 = vmatpush1.msra.mxu0 %v1902
    %1994 = vmatprep.subr.mxu0 0.0
    %1995 = vmatpush1.msra.mxu0 %v1903
    %1996 = vmatprep.subr.mxu0 0.0
    %1997 = vmatpush1.msra.mxu0 %v1904
    %1998 = vmatprep.subr.mxu0 0.0
    %1999 = vmatpush1.msra.mxu0 0.0
    %2000 = vmatprep.subr.mxu0 0.0
    %2001 = vmatpush1.msra.mxu0 0.0
    %2002 = vmatprep.subr.mxu0 0.0
    %2003 = vmatpush1.msra.mxu0 0.0
    %2004 = vmatprep.subr.mxu0 0.0
    %2005 = vmatpush1.msra.mxu0 0.0
    %2006 = vmatprep.subr.mxu0 0.0
    %2007 = vmatpush1.msra.mxu0 0.0
    %2008 = vmatprep.subr.mxu0 0.0
    %2009 = vmatpush1.msra.mxu0 0.0
    %2010 = vmatprep.subr.mxu0 0.0
    %2011 = vmatpush1.msra.mxu0 0.0
    %2012 = vmatprep.subr.mxu0 0.0
    %2013 = vmatpush1.msra.mxu0 0.0
    %2014 = vmatprep.subr.mxu0 0.0
    %2015 = vmatpush1.msra.mxu0 0.0
    %2016 = vmatprep.subr.mxu0 0.0
    %2017 = vmatpush1.msra.mxu0 0.0
    %2018 = vmatprep.subr.mxu0 0.0
    %2019 = vmatpush1.msra.mxu0 0.0
    %2020 = vmatprep.subr.mxu0 0.0
    %2021 = vmatpush1.msra.mxu0 0.0
    %2022 = vmatprep.subr.mxu0 0.0
    %2023 = vmatpush1.msra.mxu0 0.0
    %2024 = vmatprep.subr.mxu0 0.0
    %2025 = vmatpush1.msra.mxu0 0.0
    %2026 = vmatprep.subr.mxu0 0.0
    %2027 = vmatpush1.msra.mxu0 0.0
    %2028 = vmatprep.subr.mxu0 0.0
    %2029 = vmatpush1.msra.mxu0 0.0
    %2030 = vmatprep.subr.mxu0 0.0
    %2031 = vmatpush1.msra.mxu0 0.0
    %2032 = vmatprep.subr.mxu0 0.0
    %2033 = vmatpush1.msra.mxu0 0.0
    %2034 = vmatprep.subr.mxu0 0.0
    %2035 = vmatpush1.msra.mxu0 0.0
    %2036 = vmatprep.subr.mxu0 0.0
    %2037 = vmatpush1.msra.mxu0 0.0
    %2038 = vmatprep.subr.mxu0 0.0
    %2039 = vmatpush1.msra.mxu0 0.0
    %2040 = vmatprep.subr.mxu0 0.0
    %2041 = vmatpush1.msra.mxu0 0.0
    %2042 = vmatprep.subr.mxu0 0.0
    %2043 = vmatpush1.msra.mxu0 0.0
    %2044 = vmatprep.subr.mxu0 0.0
    %2045 = vmatpush1.msra.mxu0 0.0
    %2046 = vmatprep.subr.mxu0 0.0
    %2047 = vmatpush1.msra.mxu0 0.0
    %2048 = vmatprep.subr.mxu0 0.0
    %2049 = vmatpush1.msra.mxu0 0.0
    %2050 = vmatprep.subr.mxu0 0.0
    %2051 = vmatpush1.msra.mxu0 0.0
    %2052 = vmatprep.subr.mxu0 0.0
    %2053 = vmatpush1.msra.mxu0 0.0
    %2054 = vmatprep.mubr.f32.mxu0 0.0
    %2055 = vmatmul.mubr.f32.gmra.mrb[0].mxu0 %v1910
    %v2056 = vpop.f32.mrb[0].mxu0
    %v2057 = vadd.f32 0.0, %v2056
    %v2058 = vpop.f32.mrb[0].mxu0
    %2059 = vmatprep.mubr.f32.mxu0 0.0
    %2060 = vmatmul.mubr.f32.gmra.mrb[0].mxu0 %v1913
    %v2061 = vpop.f32.mrb[0].mxu0
    %v2062 = vadd.f32 0.0, %v2061
    %v2063 = vpop.f32.mrb[0].mxu0
    %2064 = vdwg.mxu0
    %2065 = vmatprep.subr.mxu0 0.0
    %2066 = vmatpush1.msra.mxu0 %v1905
    %2067 = vmatprep.subr.mxu0 0.0
    %2068 = vmatpush1.msra.mxu0 %v1906
    %2069 = vmatprep.subr.mxu0 0.0
    %2070 = vmatpush1.msra.mxu0 %v1907
    %2071 = vmatprep.subr.mxu0 0.0
    %2072 = vmatpush1.msra.mxu0 %v1908
    %2073 = vmatprep.subr.mxu0 0.0
    %2074 = vmatpush1.msra.mxu0 0.0
    %2075 = vmatprep.subr.mxu0 0.0
    %2076 = vmatpush1.msra.mxu0 0.0
    %2077 = vmatprep.subr.mxu0 0.0
    %2078 = vmatpush1.msra.mxu0 0.0
    %2079 = vmatprep.subr.mxu0 0.0
    %2080 = vmatpush1.msra.mxu0 0.0
    %2081 = vmatprep.subr.mxu0 0.0
    %2082 = vmatpush1.msra.mxu0 0.0
    %2083 = vmatprep.subr.mxu0 0.0
    %2084 = vmatpush1.msra.mxu0 0.0
    %2085 = vmatprep.subr.mxu0 0.0
    %2086 = vmatpush1.msra.mxu0 0.0
    %2087 = vmatprep.subr.mxu0 0.0
    %2088 = vmatpush1.msra.mxu0 0.0
    %2089 = vmatprep.subr.mxu0 0.0
    %2090 = vmatpush1.msra.mxu0 0.0
    %2091 = vmatprep.subr.mxu0 0.0
    %2092 = vmatpush1.msra.mxu0 0.0
    %2093 = vmatprep.subr.mxu0 0.0
    %2094 = vmatpush1.msra.mxu0 0.0
    %2095 = vmatprep.subr.mxu0 0.0
    %2096 = vmatpush1.msra.mxu0 0.0
    %2097 = vmatprep.subr.mxu0 0.0
    %2098 = vmatpush1.msra.mxu0 0.0
    %2099 = vmatprep.subr.mxu0 0.0
    %2100 = vmatpush1.msra.mxu0 0.0
    %2101 = vmatprep.subr.mxu0 0.0
    %2102 = vmatpush1.msra.mxu0 0.0
    %2103 = vmatprep.subr.mxu0 0.0
    %2104 = vmatpush1.msra.mxu0 0.0
    %2105 = vmatprep.subr.mxu0 0.0
    %2106 = vmatpush1.msra.mxu0 0.0
    %2107 = vmatprep.subr.mxu0 0.0
    %2108 = vmatpush1.msra.mxu0 0.0
    %2109 = vmatprep.subr.mxu0 0.0
    %2110 = vmatpush1.msra.mxu0 0.0
    %2111 = vmatprep.subr.mxu0 0.0
    %2112 = vmatpush1.msra.mxu0 0.0
    %2113 = vmatprep.subr.mxu0 0.0
    %2114 = vmatpush1.msra.mxu0 0.0
    %2115 = vmatprep.subr.mxu0 0.0
    %2116 = vmatpush1.msra.mxu0 0.0
    %2117 = vmatprep.subr.mxu0 0.0
    %2118 = vmatpush1.msra.mxu0 0.0
    %2119 = vmatprep.subr.mxu0 0.0
    %2120 = vmatpush1.msra.mxu0 0.0
    %2121 = vmatprep.subr.mxu0 0.0
    %2122 = vmatpush1.msra.mxu0 0.0
    %2123 = vmatprep.subr.mxu0 0.0
    %2124 = vmatpush1.msra.mxu0 0.0
    %2125 = vmatprep.subr.mxu0 0.0
    %2126 = vmatpush1.msra.mxu0 0.0
    %2127 = vmatprep.subr.mxu0 0.0
    %2128 = vmatpush1.msra.mxu0 0.0
    %2129 = vmatprep.mubr.f32.mxu0 0.0
    %2130 = vmatmul.mubr.f32.gmra.mrb[0].mxu0 %v1910
    %v2131 = vpop.f32.mrb[0].mxu0
    %v2132 = vadd.f32 0.0, %v2131
    %v2133 = vpop.f32.mrb[0].mxu0
    %2134 = vmatprep.mubr.f32.mxu0 0.0
    %2135 = vmatmul.mubr.f32.gmra.mrb[0].mxu0 %v1913
    %v2136 = vpop.f32.mrb[0].mxu0
    %v2137 = vadd.f32 0.0, %v2136
    %v2138 = vpop.f32.mrb[0].mxu0
    %2139 = vdwg.mxu0
    %2141 = vrot.lane.b32.xlu0 %v1982, 112
    %v2142 = vpop.permute.xlu0 %2141
    %v2143 = vsel %vm364, %v1982, 0
    %v2145 = vsel %vm364, %v2142, 0
    %2147 = vmatprep.subr.mxu0 0.0
    %2148 = vmatpush1.xpose.msra.mxu0 %v2145
    %2149 = vmatprep.subr.mxu0 0.0
    %2150 = vmatpush1.xpose.msra.mxu0 0.0
    %2151 = vmatprep.subr.mxu0 0.0
    %2152 = vmatpush1.xpose.msra.mxu0 0.0
    %2153 = vmatprep.subr.mxu0 0.0
    %2154 = vmatpush1.xpose.msra.mxu0 0.0
    %2155 = vmatprep.subr.mxu0 0.0
    %2156 = vmatpush1.xpose.msra.mxu0 0.0
    %2157 = vmatprep.subr.mxu0 0.0
    %2158 = vmatpush1.xpose.msra.mxu0 0.0
    %2159 = vmatprep.subr.mxu0 0.0
    %2160 = vmatpush1.xpose.msra.mxu0 0.0
    %2161 = vmatprep.subr.mxu0 0.0
    %2162 = vmatpush1.xpose.msra.mxu0 0.0
    %2163 = vmatprep.subr.mxu0 0.0
    %2164 = vmatpush1.xpose.msra.mxu0 0.0
    %2165 = vmatprep.subr.mxu0 0.0
    %2166 = vmatpush1.xpose.msra.mxu0 0.0
    %2167 = vmatprep.subr.mxu0 0.0
    %2168 = vmatpush1.xpose.msra.mxu0 0.0
    %2169 = vmatprep.subr.mxu0 0.0
    %2170 = vmatpush1.xpose.msra.mxu0 0.0
    %2171 = vmatprep.subr.mxu0 0.0
    %2172 = vmatpush1.xpose.msra.mxu0 0.0
    %2173 = vmatprep.subr.mxu0 0.0
    %2174 = vmatpush1.xpose.msra.mxu0 0.0
    %2175 = vmatprep.subr.mxu0 0.0
    %2176 = vmatpush1.xpose.msra.mxu0 0.0
    %2177 = vmatprep.subr.mxu0 0.0
    %2178 = vmatpush1.xpose.msra.mxu0 0.0
    %2179 = vmatprep.subr.mxu0 0.0
    %2180 = vmatpush1.xpose.msra.mxu0 0.0
    %2181 = vmatprep.subr.mxu0 0.0
    %2182 = vmatpush1.xpose.msra.mxu0 0.0
    %2183 = vmatprep.subr.mxu0 0.0
    %2184 = vmatpush1.xpose.msra.mxu0 0.0
    %2185 = vmatprep.subr.mxu0 0.0
    %2186 = vmatpush1.xpose.msra.mxu0 0.0
    %2187 = vmatprep.subr.mxu0 0.0
    %2188 = vmatpush1.xpose.msra.mxu0 0.0
    %2189 = vmatprep.subr.mxu0 0.0
    %2190 = vmatpush1.xpose.msra.mxu0 0.0
    %2191 = vmatprep.subr.mxu0 0.0
    %2192 = vmatpush1.xpose.msra.mxu0 0.0
    %2193 = vmatprep.subr.mxu0 0.0
    %2194 = vmatpush1.xpose.msra.mxu0 0.0
    %2195 = vmatprep.subr.mxu0 0.0
    %2196 = vmatpush1.xpose.msra.mxu0 0.0
    %2197 = vmatprep.subr.mxu0 0.0
    %2198 = vmatpush1.xpose.msra.mxu0 0.0
    %2199 = vmatprep.subr.mxu0 0.0
    %2200 = vmatpush1.xpose.msra.mxu0 0.0
    %2201 = vmatprep.subr.mxu0 0.0
    %2202 = vmatpush1.xpose.msra.mxu0 0.0
    %2203 = vmatprep.subr.mxu0 0.0
    %2204 = vmatpush1.xpose.msra.mxu0 0.0
    %2205 = vmatprep.subr.mxu0 0.0
    %2206 = vmatpush1.xpose.msra.mxu0 0.0
    %2207 = vmatprep.subr.mxu0 0.0
    %2208 = vmatpush1.xpose.msra.mxu0 0.0
    %2209 = vmatprep.subr.mxu0 0.0
    %2210 = vmatpush1.xpose.msra.mxu0 0.0
    %2211 = vmatprep.mubr.f32.mxu0 0.0
    %2212 = vmatmul.mubr.f32.gmra.mrb[0].mxu0 %v2143
    %v2213 = vpop.f32.mrb[0].mxu0
    %v2214 = vadd.f32 0.0, %v2213
    %v2215 = vpop.f32.mrb[0].mxu0
    %2216 = vdwg.mxu0
    %2218 = vrot.lane.b32.xlu0 %v1987, 112
    %v2219 = vpop.permute.xlu0 %2218
    %v2220 = vsel %vm364, %v1987, 0
    %v2222 = vsel %vm364, %v2219, 0
    %2224 = vmatprep.subr.mxu0 0.0
    %2225 = vmatpush1.xpose.msra.mxu0 %v2222
    %2226 = vmatprep.subr.mxu0 0.0
    %2227 = vmatpush1.xpose.msra.mxu0 0.0
    %2228 = vmatprep.subr.mxu0 0.0
    %2229 = vmatpush1.xpose.msra.mxu0 0.0
    %2230 = vmatprep.subr.mxu0 0.0
    %2231 = vmatpush1.xpose.msra.mxu0 0.0
    %2232 = vmatprep.subr.mxu0 0.0
    %2233 = vmatpush1.xpose.msra.mxu0 0.0
    %2234 = vmatprep.subr.mxu0 0.0
    %2235 = vmatpush1.xpose.msra.mxu0 0.0
    %2236 = vmatprep.subr.mxu0 0.0
    %2237 = vmatpush1.xpose.msra.mxu0 0.0
    %2238 = vmatprep.subr.mxu0 0.0
    %2239 = vmatpush1.xpose.msra.mxu0 0.0
    %2240 = vmatprep.subr.mxu0 0.0
    %2241 = vmatpush1.xpose.msra.mxu0 0.0
    %2242 = vmatprep.subr.mxu0 0.0
    %2243 = vmatpush1.xpose.msra.mxu0 0.0
    %2244 = vmatprep.subr.mxu0 0.0
    %2245 = vmatpush1.xpose.msra.mxu0 0.0
    %2246 = vmatprep.subr.mxu0 0.0
    %2247 = vmatpush1.xpose.msra.mxu0 0.0
    %2248 = vmatprep.subr.mxu0 0.0
    %2249 = vmatpush1.xpose.msra.mxu0 0.0
    %2250 = vmatprep.subr.mxu0 0.0
    %2251 = vmatpush1.xpose.msra.mxu0 0.0
    %2252 = vmatprep.subr.mxu0 0.0
    %2253 = vmatpush1.xpose.msra.mxu0 0.0
    %2254 = vmatprep.subr.mxu0 0.0
    %2255 = vmatpush1.xpose.msra.mxu0 0.0
    %2256 = vmatprep.subr.mxu0 0.0
    %2257 = vmatpush1.xpose.msra.mxu0 0.0
    %2258 = vmatprep.subr.mxu0 0.0
    %2259 = vmatpush1.xpose.msra.mxu0 0.0
    %2260 = vmatprep.subr.mxu0 0.0
    %2261 = vmatpush1.xpose.msra.mxu0 0.0
    %2262 = vmatprep.subr.mxu0 0.0
    %2263 = vmatpush1.xpose.msra.mxu0 0.0
    %2264 = vmatprep.subr.mxu0 0.0
    %2265 = vmatpush1.xpose.msra.mxu0 0.0
    %2266 = vmatprep.subr.mxu0 0.0
    %2267 = vmatpush1.xpose.msra.mxu0 0.0
    %2268 = vmatprep.subr.mxu0 0.0
    %2269 = vmatpush1.xpose.msra.mxu0 0.0
    %2270 = vmatprep.subr.mxu0 0.0
    %2271 = vmatpush1.xpose.msra.mxu0 0.0
    %2272 = vmatprep.subr.mxu0 0.0
    %2273 = vmatpush1.xpose.msra.mxu0 0.0
    %2274 = vmatprep.subr.mxu0 0.0
    %2275 = vmatpush1.xpose.msra.mxu0 0.0
    %2276 = vmatprep.subr.mxu0 0.0
    %2277 = vmatpush1.xpose.msra.mxu0 0.0
    %2278 = vmatprep.subr.mxu0 0.0
    %2279 = vmatpush1.xpose.msra.mxu0 0.0
    %2280 = vmatprep.subr.mxu0 0.0
    %2281 = vmatpush1.xpose.msra.mxu0 0.0
    %2282 = vmatprep.subr.mxu0 0.0
    %2283 = vmatpush1.xpose.msra.mxu0 0.0
    %2284 = vmatprep.subr.mxu0 0.0
    %2285 = vmatpush1.xpose.msra.mxu0 0.0
    %2286 = vmatprep.subr.mxu0 0.0
    %2287 = vmatpush1.xpose.msra.mxu0 0.0
    %2288 = vmatprep.mubr.f32.mxu0 0.0
    %2289 = vmatmul.mubr.f32.gmra.mrb[0].mxu0 %v2220
    %v2290 = vpop.f32.mrb[0].mxu0
    %v2291 = vadd.f32 0.0, %v2290
    %v2292 = vpop.f32.mrb[0].mxu0
    %2293 = vdwg.mxu0
    %2295 = vrot.lane.b32.xlu0 %v2057, 112
    %v2296 = vpop.permute.xlu0 %2295
    %v2297 = vsel %vm364, %v2057, 0
    %v2299 = vsel %vm364, %v2296, 0
    %2301 = vmatprep.subr.mxu0 0.0
    %2302 = vmatpush1.xpose.msra.mxu0 %v2299
    %2303 = vmatprep.subr.mxu0 0.0
    %2304 = vmatpush1.xpose.msra.mxu0 0.0
    %2305 = vmatprep.subr.mxu0 0.0
    %2306 = vmatpush1.xpose.msra.mxu0 0.0
    %2307 = vmatprep.subr.mxu0 0.0
    %2308 = vmatpush1.xpose.msra.mxu0 0.0
    %2309 = vmatprep.subr.mxu0 0.0
    %2310 = vmatpush1.xpose.msra.mxu0 0.0
    %2311 = vmatprep.subr.mxu0 0.0
    %2312 = vmatpush1.xpose.msra.mxu0 0.0
    %2313 = vmatprep.subr.mxu0 0.0
    %2314 = vmatpush1.xpose.msra.mxu0 0.0
    %2315 = vmatprep.subr.mxu0 0.0
    %2316 = vmatpush1.xpose.msra.mxu0 0.0
    %2317 = vmatprep.subr.mxu0 0.0
    %2318 = vmatpush1.xpose.msra.mxu0 0.0
    %2319 = vmatprep.subr.mxu0 0.0
    %2320 = vmatpush1.xpose.msra.mxu0 0.0
    %2321 = vmatprep.subr.mxu0 0.0
    %2322 = vmatpush1.xpose.msra.mxu0 0.0
    %2323 = vmatprep.subr.mxu0 0.0
    %2324 = vmatpush1.xpose.msra.mxu0 0.0
    %2325 = vmatprep.subr.mxu0 0.0
    %2326 = vmatpush1.xpose.msra.mxu0 0.0
    %2327 = vmatprep.subr.mxu0 0.0
    %2328 = vmatpush1.xpose.msra.mxu0 0.0
    %2329 = vmatprep.subr.mxu0 0.0
    %2330 = vmatpush1.xpose.msra.mxu0 0.0
    %2331 = vmatprep.subr.mxu0 0.0
    %2332 = vmatpush1.xpose.msra.mxu0 0.0
    %2333 = vmatprep.subr.mxu0 0.0
    %2334 = vmatpush1.xpose.msra.mxu0 0.0
    %2335 = vmatprep.subr.mxu0 0.0
    %2336 = vmatpush1.xpose.msra.mxu0 0.0
    %2337 = vmatprep.subr.mxu0 0.0
    %2338 = vmatpush1.xpose.msra.mxu0 0.0
    %2339 = vmatprep.subr.mxu0 0.0
    %2340 = vmatpush1.xpose.msra.mxu0 0.0
    %2341 = vmatprep.subr.mxu0 0.0
    %2342 = vmatpush1.xpose.msra.mxu0 0.0
    %2343 = vmatprep.subr.mxu0 0.0
    %2344 = vmatpush1.xpose.msra.mxu0 0.0
    %2345 = vmatprep.subr.mxu0 0.0
    %2346 = vmatpush1.xpose.msra.mxu0 0.0
    %2347 = vmatprep.subr.mxu0 0.0
    %2348 = vmatpush1.xpose.msra.mxu0 0.0
    %2349 = vmatprep.subr.mxu0 0.0
    %2350 = vmatpush1.xpose.msra.mxu0 0.0
    %2351 = vmatprep.subr.mxu0 0.0
    %2352 = vmatpush1.xpose.msra.mxu0 0.0
    %2353 = vmatprep.subr.mxu0 0.0
    %2354 = vmatpush1.xpose.msra.mxu0 0.0
    %2355 = vmatprep.subr.mxu0 0.0
    %2356 = vmatpush1.xpose.msra.mxu0 0.0
    %2357 = vmatprep.subr.mxu0 0.0
    %2358 = vmatpush1.xpose.msra.mxu0 0.0
    %2359 = vmatprep.subr.mxu0 0.0
    %2360 = vmatpush1.xpose.msra.mxu0 0.0
    %2361 = vmatprep.subr.mxu0 0.0
    %2362 = vmatpush1.xpose.msra.mxu0 0.0
    %2363 = vmatprep.subr.mxu0 0.0
    %2364 = vmatpush1.xpose.msra.mxu0 0.0
    %2365 = vmatprep.mubr.f32.mxu0 0.0
    %2366 = vmatmul.mubr.f32.gmra.mrb[0].mxu0 %v2297
    %v2367 = vpop.f32.mrb[0].mxu0
    %v2368 = vadd.f32 0.0, %v2367
    %v2369 = vpop.f32.mrb[0].mxu0
    %2370 = vdwg.mxu0
    %2372 = vrot.lane.b32.xlu0 %v2062, 112
    %v2373 = vpop.permute.xlu0 %2372
    %v2374 = vsel %vm364, %v2062, 0
    %v2376 = vsel %vm364, %v2373, 0
    %2378 = vmatprep.subr.mxu0 0.0
    %2379 = vmatpush1.xpose.msra.mxu0 %v2376
    %2380 = vmatprep.subr.mxu0 0.0
    %2381 = vmatpush1.xpose.msra.mxu0 0.0
    %2382 = vmatprep.subr.mxu0 0.0
    %2383 = vmatpush1.xpose.msra.mxu0 0.0
    %2384 = vmatprep.subr.mxu0 0.0
    %2385 = vmatpush1.xpose.msra.mxu0 0.0
    %2386 = vmatprep.subr.mxu0 0.0
    %2387 = vmatpush1.xpose.msra.mxu0 0.0
    %2388 = vmatprep.subr.mxu0 0.0
    %2389 = vmatpush1.xpose.msra.mxu0 0.0
    %2390 = vmatprep.subr.mxu0 0.0
    %2391 = vmatpush1.xpose.msra.mxu0 0.0
    %2392 = vmatprep.subr.mxu0 0.0
    %2393 = vmatpush1.xpose.msra.mxu0 0.0
    %2394 = vmatprep.subr.mxu0 0.0
    %2395 = vmatpush1.xpose.msra.mxu0 0.0
    %2396 = vmatprep.subr.mxu0 0.0
    %2397 = vmatpush1.xpose.msra.mxu0 0.0
    %2398 = vmatprep.subr.mxu0 0.0
    %2399 = vmatpush1.xpose.msra.mxu0 0.0
    %2400 = vmatprep.subr.mxu0 0.0
    %2401 = vmatpush1.xpose.msra.mxu0 0.0
    %2402 = vmatprep.subr.mxu0 0.0
    %2403 = vmatpush1.xpose.msra.mxu0 0.0
    %2404 = vmatprep.subr.mxu0 0.0
    %2405 = vmatpush1.xpose.msra.mxu0 0.0
    %2406 = vmatprep.subr.mxu0 0.0
    %2407 = vmatpush1.xpose.msra.mxu0 0.0
    %2408 = vmatprep.subr.mxu0 0.0
    %2409 = vmatpush1.xpose.msra.mxu0 0.0
    %2410 = vmatprep.subr.mxu0 0.0
    %2411 = vmatpush1.xpose.msra.mxu0 0.0
    %2412 = vmatprep.subr.mxu0 0.0
    %2413 = vmatpush1.xpose.msra.mxu0 0.0
    %2414 = vmatprep.subr.mxu0 0.0
    %2415 = vmatpush1.xpose.msra.mxu0 0.0
    %2416 = vmatprep.subr.mxu0 0.0
    %2417 = vmatpush1.xpose.msra.mxu0 0.0
    %2418 = vmatprep.subr.mxu0 0.0
    %2419 = vmatpush1.xpose.msra.mxu0 0.0
    %2420 = vmatprep.subr.mxu0 0.0
    %2421 = vmatpush1.xpose.msra.mxu0 0.0
    %2422 = vmatprep.subr.mxu0 0.0
    %2423 = vmatpush1.xpose.msra.mxu0 0.0
    %2424 = vmatprep.subr.mxu0 0.0
    %2425 = vmatpush1.xpose.msra.mxu0 0.0
    %2426 = vmatprep.subr.mxu0 0.0
    %2427 = vmatpush1.xpose.msra.mxu0 0.0
    %2428 = vmatprep.subr.mxu0 0.0
    %2429 = vmatpush1.xpose.msra.mxu0 0.0
    %2430 = vmatprep.subr.mxu0 0.0
    %2431 = vmatpush1.xpose.msra.mxu0 0.0
    %2432 = vmatprep.subr.mxu0 0.0
    %2433 = vmatpush1.xpose.msra.mxu0 0.0
    %2434 = vmatprep.subr.mxu0 0.0
    %2435 = vmatpush1.xpose.msra.mxu0 0.0
    %2436 = vmatprep.subr.mxu0 0.0
    %2437 = vmatpush1.xpose.msra.mxu0 0.0
    %2438 = vmatprep.subr.mxu0 0.0
    %2439 = vmatpush1.xpose.msra.mxu0 0.0
    %2440 = vmatprep.subr.mxu0 0.0
    %2441 = vmatpush1.xpose.msra.mxu0 0.0
    %2442 = vmatprep.mubr.f32.mxu0 0.0
    %2443 = vmatmul.mubr.f32.gmra.mrb[0].mxu0 %v2374
    %v2444 = vpop.f32.mrb[0].mxu0
    %v2445 = vadd.f32 0.0, %v2444
    %v2446 = vpop.f32.mrb[0].mxu0
    %2447 = vdwg.mxu0
    %2449 = vrot.lane.b32.xlu0 %v2132, 112
    %v2450 = vpop.permute.xlu0 %2449
    %v2451 = vsel %vm364, %v2132, 0
    %v2453 = vsel %vm364, %v2450, 0
    %2455 = vmatprep.subr.mxu0 0.0
    %2456 = vmatpush1.xpose.msra.mxu0 %v2453
    %2457 = vmatprep.subr.mxu0 0.0
    %2458 = vmatpush1.xpose.msra.mxu0 0.0
    %2459 = vmatprep.subr.mxu0 0.0
    %2460 = vmatpush1.xpose.msra.mxu0 0.0
    %2461 = vmatprep.subr.mxu0 0.0
    %2462 = vmatpush1.xpose.msra.mxu0 0.0
    %2463 = vmatprep.subr.mxu0 0.0
    %2464 = vmatpush1.xpose.msra.mxu0 0.0
    %2465 = vmatprep.subr.mxu0 0.0
    %2466 = vmatpush1.xpose.msra.mxu0 0.0
    %2467 = vmatprep.subr.mxu0 0.0
    %2468 = vmatpush1.xpose.msra.mxu0 0.0
    %2469 = vmatprep.subr.mxu0 0.0
    %2470 = vmatpush1.xpose.msra.mxu0 0.0
    %2471 = vmatprep.subr.mxu0 0.0
    %2472 = vmatpush1.xpose.msra.mxu0 0.0
    %2473 = vmatprep.subr.mxu0 0.0
    %2474 = vmatpush1.xpose.msra.mxu0 0.0
    %2475 = vmatprep.subr.mxu0 0.0
    %2476 = vmatpush1.xpose.msra.mxu0 0.0
    %2477 = vmatprep.subr.mxu0 0.0
    %2478 = vmatpush1.xpose.msra.mxu0 0.0
    %2479 = vmatprep.subr.mxu0 0.0
    %2480 = vmatpush1.xpose.msra.mxu0 0.0
    %2481 = vmatprep.subr.mxu0 0.0
    %2482 = vmatpush1.xpose.msra.mxu0 0.0
    %2483 = vmatprep.subr.mxu0 0.0
    %2484 = vmatpush1.xpose.msra.mxu0 0.0
    %2485 = vmatprep.subr.mxu0 0.0
    %2486 = vmatpush1.xpose.msra.mxu0 0.0
    %2487 = vmatprep.subr.mxu0 0.0
    %2488 = vmatpush1.xpose.msra.mxu0 0.0
    %2489 = vmatprep.subr.mxu0 0.0
    %2490 = vmatpush1.xpose.msra.mxu0 0.0
    %2491 = vmatprep.subr.mxu0 0.0
    %2492 = vmatpush1.xpose.msra.mxu0 0.0
    %2493 = vmatprep.subr.mxu0 0.0
    %2494 = vmatpush1.xpose.msra.mxu0 0.0
    %2495 = vmatprep.subr.mxu0 0.0
    %2496 = vmatpush1.xpose.msra.mxu0 0.0
    %2497 = vmatprep.subr.mxu0 0.0
    %2498 = vmatpush1.xpose.msra.mxu0 0.0
    %2499 = vmatprep.subr.mxu0 0.0
    %2500 = vmatpush1.xpose.msra.mxu0 0.0
    %2501 = vmatprep.subr.mxu0 0.0
    %2502 = vmatpush1.xpose.msra.mxu0 0.0
    %2503 = vmatprep.subr.mxu0 0.0
    %2504 = vmatpush1.xpose.msra.mxu0 0.0
    %2505 = vmatprep.subr.mxu0 0.0
    %2506 = vmatpush1.xpose.msra.mxu0 0.0
    %2507 = vmatprep.subr.mxu0 0.0
    %2508 = vmatpush1.xpose.msra.mxu0 0.0
    %2509 = vmatprep.subr.mxu0 0.0
    %2510 = vmatpush1.xpose.msra.mxu0 0.0
    %2511 = vmatprep.subr.mxu0 0.0
    %2512 = vmatpush1.xpose.msra.mxu0 0.0
    %2513 = vmatprep.subr.mxu0 0.0
    %2514 = vmatpush1.xpose.msra.mxu0 0.0
    %2515 = vmatprep.subr.mxu0 0.0
    %2516 = vmatpush1.xpose.msra.mxu0 0.0
    %2517 = vmatprep.subr.mxu0 0.0
    %2518 = vmatpush1.xpose.msra.mxu0 0.0
    %2519 = vmatprep.mubr.f32.mxu0 0.0
    %2520 = vmatmul.mubr.f32.gmra.mrb[0].mxu0 %v2451
    %v2521 = vpop.f32.mrb[0].mxu0
    %v2522 = vadd.f32 0.0, %v2521
    %v2523 = vpop.f32.mrb[0].mxu0
    %2524 = vdwg.mxu0
    %2526 = vrot.lane.b32.xlu0 %v2137, 112
    %v2527 = vpop.permute.xlu0 %2526
    %v2528 = vsel %vm364, %v2137, 0
    %v2530 = vsel %vm364, %v2527, 0
    %2532 = vmatprep.subr.mxu0 0.0
    %2533 = vmatpush1.xpose.msra.mxu0 %v2530
    %2534 = vmatprep.subr.mxu0 0.0
    %2535 = vmatpush1.xpose.msra.mxu0 0.0
    %2536 = vmatprep.subr.mxu0 0.0
    %2537 = vmatpush1.xpose.msra.mxu0 0.0
    %2538 = vmatprep.subr.mxu0 0.0
    %2539 = vmatpush1.xpose.msra.mxu0 0.0
    %2540 = vmatprep.subr.mxu0 0.0
    %2541 = vmatpush1.xpose.msra.mxu0 0.0
    %2542 = vmatprep.subr.mxu0 0.0
    %2543 = vmatpush1.xpose.msra.mxu0 0.0
    %2544 = vmatprep.subr.mxu0 0.0
    %2545 = vmatpush1.xpose.msra.mxu0 0.0
    %2546 = vmatprep.subr.mxu0 0.0
    %2547 = vmatpush1.xpose.msra.mxu0 0.0
    %2548 = vmatprep.subr.mxu0 0.0
    %2549 = vmatpush1.xpose.msra.mxu0 0.0
    %2550 = vmatprep.subr.mxu0 0.0
    %2551 = vmatpush1.xpose.msra.mxu0 0.0
    %2552 = vmatprep.subr.mxu0 0.0
    %2553 = vmatpush1.xpose.msra.mxu0 0.0
    %2554 = vmatprep.subr.mxu0 0.0
    %2555 = vmatpush1.xpose.msra.mxu0 0.0
    %2556 = vmatprep.subr.mxu0 0.0
    %2557 = vmatpush1.xpose.msra.mxu0 0.0
    %2558 = vmatprep.subr.mxu0 0.0
    %2559 = vmatpush1.xpose.msra.mxu0 0.0
    %2560 = vmatprep.subr.mxu0 0.0
    %2561 = vmatpush1.xpose.msra.mxu0 0.0
    %2562 = vmatprep.subr.mxu0 0.0
    %2563 = vmatpush1.xpose.msra.mxu0 0.0
    %2564 = vmatprep.subr.mxu0 0.0
    %2565 = vmatpush1.xpose.msra.mxu0 0.0
    %2566 = vmatprep.subr.mxu0 0.0
    %2567 = vmatpush1.xpose.msra.mxu0 0.0
    %2568 = vmatprep.subr.mxu0 0.0
    %2569 = vmatpush1.xpose.msra.mxu0 0.0
    %2570 = vmatprep.subr.mxu0 0.0
    %2571 = vmatpush1.xpose.msra.mxu0 0.0
    %2572 = vmatprep.subr.mxu0 0.0
    %2573 = vmatpush1.xpose.msra.mxu0 0.0
    %2574 = vmatprep.subr.mxu0 0.0
    %2575 = vmatpush1.xpose.msra.mxu0 0.0
    %2576 = vmatprep.subr.mxu0 0.0
    %2577 = vmatpush1.xpose.msra.mxu0 0.0
    %2578 = vmatprep.subr.mxu0 0.0
    %2579 = vmatpush1.xpose.msra.mxu0 0.0
    %2580 = vmatprep.subr.mxu0 0.0
    %2581 = vmatpush1.xpose.msra.mxu0 0.0
    %2582 = vmatprep.subr.mxu0 0.0
    %2583 = vmatpush1.xpose.msra.mxu0 0.0
    %2584 = vmatprep.subr.mxu0 0.0
    %2585 = vmatpush1.xpose.msra.mxu0 0.0
    %2586 = vmatprep.subr.mxu0 0.0
    %2587 = vmatpush1.xpose.msra.mxu0 0.0
    %2588 = vmatprep.subr.mxu0 0.0
    %2589 = vmatpush1.xpose.msra.mxu0 0.0
    %2590 = vmatprep.subr.mxu0 0.0
    %2591 = vmatpush1.xpose.msra.mxu0 0.0
    %2592 = vmatprep.subr.mxu0 0.0
    %2593 = vmatpush1.xpose.msra.mxu0 0.0
    %2594 = vmatprep.subr.mxu0 0.0
    %2595 = vmatpush1.xpose.msra.mxu0 0.0
    %2596 = vmatprep.mubr.f32.mxu0 0.0
    %2597 = vmatmul.mubr.f32.gmra.mrb[0].mxu0 %v2528
    %v2598 = vpop.f32.mrb[0].mxu0
    %v2599 = vadd.f32 0.0, %v2598
    %v2600 = vpop.f32.mrb[0].mxu0
    %2601 = vdwg.mxu0
    %v2602 = vsel %vm824, %v2214, -inf
    %2603 = vmax.xlane.f32.xlu0 %v2602
    %v2604 = vpop.xlane.xlu0 %2603
    %v2605 = vsel %vm824, %v2291, -inf
    %2606 = vmax.xlane.f32.xlu0 %v2605
    %v2607 = vpop.xlane.xlu0 %2606
    %v2608 = vsel %vm824, %v2368, -inf
    %2609 = vmax.xlane.f32.xlu0 %v2608
    %v2610 = vpop.xlane.xlu0 %2609
    %v2611 = vsel %vm824, %v2445, -inf
    %2612 = vmax.xlane.f32.xlu0 %v2611
    %v2613 = vpop.xlane.xlu0 %2612
    %v2614 = vsel %vm824, %v2522, -inf
    %2615 = vmax.xlane.f32.xlu0 %v2614
    %v2616 = vpop.xlane.xlu0 %2615
    %v2617 = vsel %vm824, %v2599, -inf
    %2618 = vmax.xlane.f32.xlu0 %v2617
    %v2619 = vpop.xlane.xlu0 %2618
    %v2620 = vsub.f32 %v2214, %v2604
    %v2621 = vsub.f32 %v2291, %v2607
    %v2622 = vsub.f32 %v2368, %v2610
    %v2623 = vsub.f32 %v2445, %v2613
    %v2624 = vsub.f32 %v2522, %v2616
    %v2625 = vsub.f32 %v2599, %v2619
    %v2626 = vmul.f32 %v2620, 1.442695
    %v2627 = vpow.pop %v2626
    %v2628 = vmul.f32 %v2621, 1.442695
    %v2629 = vpow.pop %v2628
    %v2630 = vmul.f32 %v2622, 1.442695
    %v2631 = vpow.pop %v2630
    %v2632 = vmul.f32 %v2623, 1.442695
    %v2633 = vpow.pop %v2632
    %v2634 = vmul.f32 %v2624, 1.442695
    %v2635 = vpow.pop %v2634
    %v2636 = vmul.f32 %v2625, 1.442695
    %v2637 = vpow.pop %v2636
    %v2638 = vsel %vm824, %v2627, 0.0
    %2639 = vadd.xlane.f32.xlu0 %v2638
    %v2640 = vpop.xlane.xlu0 %2639
    %v2641 = vsel %vm824, %v2629, 0.0
    %2642 = vadd.xlane.f32.xlu0 %v2641
    %v2643 = vpop.xlane.xlu0 %2642
    %v2644 = vsel %vm824, %v2631, 0.0
    %2645 = vadd.xlane.f32.xlu0 %v2644
    %v2646 = vpop.xlane.xlu0 %2645
    %v2647 = vsel %vm824, %v2633, 0.0
    %2648 = vadd.xlane.f32.xlu0 %v2647
    %v2649 = vpop.xlane.xlu0 %2648
    %v2650 = vsel %vm824, %v2635, 0.0
    %2651 = vadd.xlane.f32.xlu0 %v2650
    %v2652 = vpop.xlane.xlu0 %2651
    %v2653 = vsel %vm824, %v2637, 0.0
    %2654 = vadd.xlane.f32.xlu0 %v2653
    %v2655 = vpop.xlane.xlu0 %2654
    %v2656 = vrcp.pop %v2640
    %v2657 = vrcp.pop %v2643
    %v2658 = vrcp.pop %v2646
    %v2659 = vrcp.pop %v2649
    %v2660 = vrcp.pop %v2652
    %v2661 = vrcp.pop %v2655
    %v2662 = vmul.f32 %v2627, %v2656
    %v2663 = vmul.f32 %v2629, %v2657
    %v2664 = vmul.f32 %v2631, %v2658
    %v2665 = vmul.f32 %v2633, %v2659
    %v2666 = vmul.f32 %v2635, %v2660
    %v2667 = vmul.f32 %v2637, %v2661
    %2668 = vrot.lane.b32.xlu0 %v1982, 96
    %v2669 = vpop.permute.xlu0 %2668
    %v2672 = vsel %vm824, %v2662, 0
    %2674 = vmatprep.subr.mxu0 0.0
    %2675 = vmatpush1.msra.mxu0 %v2669
    %2676 = vmatprep.subr.mxu0 0.0
    %2677 = vmatpush1.msra.mxu0 0.0
    %2678 = vmatprep.subr.mxu0 0.0
    %2679 = vmatpush1.msra.mxu0 0.0
    %2680 = vmatprep.subr.mxu0 0.0
    %2681 = vmatpush1.msra.mxu0 0.0
    %2682 = vmatprep.subr.mxu0 0.0
    %2683 = vmatpush1.msra.mxu0 0.0
    %2684 = vmatprep.subr.mxu0 0.0
    %2685 = vmatpush1.msra.mxu0 0.0
    %2686 = vmatprep.subr.mxu0 0.0
    %2687 = vmatpush1.msra.mxu0 0.0
    %2688 = vmatprep.subr.mxu0 0.0
    %2689 = vmatpush1.msra.mxu0 0.0
    %2690 = vmatprep.subr.mxu0 0.0
    %2691 = vmatpush1.msra.mxu0 0.0
    %2692 = vmatprep.subr.mxu0 0.0
    %2693 = vmatpush1.msra.mxu0 0.0
    %2694 = vmatprep.subr.mxu0 0.0
    %2695 = vmatpush1.msra.mxu0 0.0
    %2696 = vmatprep.subr.mxu0 0.0
    %2697 = vmatpush1.msra.mxu0 0.0
    %2698 = vmatprep.subr.mxu0 0.0
    %2699 = vmatpush1.msra.mxu0 0.0
    %2700 = vmatprep.subr.mxu0 0.0
    %2701 = vmatpush1.msra.mxu0 0.0
    %2702 = vmatprep.subr.mxu0 0.0
    %2703 = vmatpush1.msra.mxu0 0.0
    %2704 = vmatprep.subr.mxu0 0.0
    %2705 = vmatpush1.msra.mxu0 0.0
    %2706 = vmatprep.subr.mxu0 0.0
    %2707 = vmatpush1.msra.mxu0 0.0
    %2708 = vmatprep.subr.mxu0 0.0
    %2709 = vmatpush1.msra.mxu0 0.0
    %2710 = vmatprep.subr.mxu0 0.0
    %2711 = vmatpush1.msra.mxu0 0.0
    %2712 = vmatprep.subr.mxu0 0.0
    %2713 = vmatpush1.msra.mxu0 0.0
    %2714 = vmatprep.subr.mxu0 0.0
    %2715 = vmatpush1.msra.mxu0 0.0
    %2716 = vmatprep.subr.mxu0 0.0
    %2717 = vmatpush1.msra.mxu0 0.0
    %2718 = vmatprep.subr.mxu0 0.0
    %2719 = vmatpush1.msra.mxu0 0.0
    %2720 = vmatprep.subr.mxu0 0.0
    %2721 = vmatpush1.msra.mxu0 0.0
    %2722 = vmatprep.subr.mxu0 0.0
    %2723 = vmatpush1.msra.mxu0 0.0
    %2724 = vmatprep.subr.mxu0 0.0
    %2725 = vmatpush1.msra.mxu0 0.0
    %2726 = vmatprep.subr.mxu0 0.0
    %2727 = vmatpush1.msra.mxu0 0.0
    %2728 = vmatprep.subr.mxu0 0.0
    %2729 = vmatpush1.msra.mxu0 0.0
    %2730 = vmatprep.subr.mxu0 0.0
    %2731 = vmatpush1.msra.mxu0 0.0
    %2732 = vmatprep.subr.mxu0 0.0
    %2733 = vmatpush1.msra.mxu0 0.0
    %2734 = vmatprep.subr.mxu0 0.0
    %2735 = vmatpush1.msra.mxu0 0.0
    %2736 = vmatprep.subr.mxu0 0.0
    %2737 = vmatpush1.msra.mxu0 0.0
    %2738 = vmatprep.mubr.f32.mxu0 0.0
    %2739 = vmatmul.mubr.f32.gmra.mrb[0].mxu0 %v2672
    %v2740 = vpop.f32.mrb[0].mxu0
    %v2741 = vadd.f32 0.0, %v2740
    %v2742 = vpop.f32.mrb[0].mxu0
    %2743 = vdwg.mxu0
    %2744 = vrot.lane.b32.xlu0 %v1987, 96
    %v2745 = vpop.permute.xlu0 %2744
    %v2748 = vsel %vm824, %v2663, 0
    %2750 = vmatprep.subr.mxu0 0.0
    %2751 = vmatpush1.msra.mxu0 %v2745
    %2752 = vmatprep.subr.mxu0 0.0
    %2753 = vmatpush1.msra.mxu0 0.0
    %2754 = vmatprep.subr.mxu0 0.0
    %2755 = vmatpush1.msra.mxu0 0.0
    %2756 = vmatprep.subr.mxu0 0.0
    %2757 = vmatpush1.msra.mxu0 0.0
    %2758 = vmatprep.subr.mxu0 0.0
    %2759 = vmatpush1.msra.mxu0 0.0
    %2760 = vmatprep.subr.mxu0 0.0
    %2761 = vmatpush1.msra.mxu0 0.0
    %2762 = vmatprep.subr.mxu0 0.0
    %2763 = vmatpush1.msra.mxu0 0.0
    %2764 = vmatprep.subr.mxu0 0.0
    %2765 = vmatpush1.msra.mxu0 0.0
    %2766 = vmatprep.subr.mxu0 0.0
    %2767 = vmatpush1.msra.mxu0 0.0
    %2768 = vmatprep.subr.mxu0 0.0
    %2769 = vmatpush1.msra.mxu0 0.0
    %2770 = vmatprep.subr.mxu0 0.0
    %2771 = vmatpush1.msra.mxu0 0.0
    %2772 = vmatprep.subr.mxu0 0.0
    %2773 = vmatpush1.msra.mxu0 0.0
    %2774 = vmatprep.subr.mxu0 0.0
    %2775 = vmatpush1.msra.mxu0 0.0
    %2776 = vmatprep.subr.mxu0 0.0
    %2777 = vmatpush1.msra.mxu0 0.0
    %2778 = vmatprep.subr.mxu0 0.0
    %2779 = vmatpush1.msra.mxu0 0.0
    %2780 = vmatprep.subr.mxu0 0.0
    %2781 = vmatpush1.msra.mxu0 0.0
    %2782 = vmatprep.subr.mxu0 0.0
    %2783 = vmatpush1.msra.mxu0 0.0
    %2784 = vmatprep.subr.mxu0 0.0
    %2785 = vmatpush1.msra.mxu0 0.0
    %2786 = vmatprep.subr.mxu0 0.0
    %2787 = vmatpush1.msra.mxu0 0.0
    %2788 = vmatprep.subr.mxu0 0.0
    %2789 = vmatpush1.msra.mxu0 0.0
    %2790 = vmatprep.subr.mxu0 0.0
    %2791 = vmatpush1.msra.mxu0 0.0
    %2792 = vmatprep.subr.mxu0 0.0
    %2793 = vmatpush1.msra.mxu0 0.0
    %2794 = vmatprep.subr.mxu0 0.0
    %2795 = vmatpush1.msra.mxu0 0.0
    %2796 = vmatprep.subr.mxu0 0.0
    %2797 = vmatpush1.msra.mxu0 0.0
    %2798 = vmatprep.subr.mxu0 0.0
    %2799 = vmatpush1.msra.mxu0 0.0
    %2800 = vmatprep.subr.mxu0 0.0
    %2801 = vmatpush1.msra.mxu0 0.0
    %2802 = vmatprep.subr.mxu0 0.0
    %2803 = vmatpush1.msra.mxu0 0.0
    %2804 = vmatprep.subr.mxu0 0.0
    %2805 = vmatpush1.msra.mxu0 0.0
    %2806 = vmatprep.subr.mxu0 0.0
    %2807 = vmatpush1.msra.mxu0 0.0
    %2808 = vmatprep.subr.mxu0 0.0
    %2809 = vmatpush1.msra.mxu0 0.0
    %2810 = vmatprep.subr.mxu0 0.0
    %2811 = vmatpush1.msra.mxu0 0.0
    %2812 = vmatprep.subr.mxu0 0.0
    %2813 = vmatpush1.msra.mxu0 0.0
    %2814 = vmatprep.mubr.f32.mxu0 0.0
    %2815 = vmatmul.mubr.f32.gmra.mrb[0].mxu0 %v2748
    %v2816 = vpop.f32.mrb[0].mxu0
    %v2817 = vadd.f32 0.0, %v2816
    %v2818 = vpop.f32.mrb[0].mxu0
    %2819 = vdwg.mxu0
    %2820 = vrot.lane.b32.xlu0 %v2057, 96
    %v2821 = vpop.permute.xlu0 %2820
    %v2824 = vsel %vm824, %v2664, 0
    %2826 = vmatprep.subr.mxu0 0.0
    %2827 = vmatpush1.msra.mxu0 %v2821
    %2828 = vmatprep.subr.mxu0 0.0
    %2829 = vmatpush1.msra.mxu0 0.0
    %2830 = vmatprep.subr.mxu0 0.0
    %2831 = vmatpush1.msra.mxu0 0.0
    %2832 = vmatprep.subr.mxu0 0.0
    %2833 = vmatpush1.msra.mxu0 0.0
    %2834 = vmatprep.subr.mxu0 0.0
    %2835 = vmatpush1.msra.mxu0 0.0
    %2836 = vmatprep.subr.mxu0 0.0
    %2837 = vmatpush1.msra.mxu0 0.0
    %2838 = vmatprep.subr.mxu0 0.0
    %2839 = vmatpush1.msra.mxu0 0.0
    %2840 = vmatprep.subr.mxu0 0.0
    %2841 = vmatpush1.msra.mxu0 0.0
    %2842 = vmatprep.subr.mxu0 0.0
    %2843 = vmatpush1.msra.mxu0 0.0
    %2844 = vmatprep.subr.mxu0 0.0
    %2845 = vmatpush1.msra.mxu0 0.0
    %2846 = vmatprep.subr.mxu0 0.0
    %2847 = vmatpush1.msra.mxu0 0.0
    %2848 = vmatprep.subr.mxu0 0.0
    %2849 = vmatpush1.msra.mxu0 0.0
    %2850 = vmatprep.subr.mxu0 0.0
    %2851 = vmatpush1.msra.mxu0 0.0
    %2852 = vmatprep.subr.mxu0 0.0
    %2853 = vmatpush1.msra.mxu0 0.0
    %2854 = vmatprep.subr.mxu0 0.0
    %2855 = vmatpush1.msra.mxu0 0.0
    %2856 = vmatprep.subr.mxu0 0.0
    %2857 = vmatpush1.msra.mxu0 0.0
    %2858 = vmatprep.subr.mxu0 0.0
    %2859 = vmatpush1.msra.mxu0 0.0
    %2860 = vmatprep.subr.mxu0 0.0
    %2861 = vmatpush1.msra.mxu0 0.0
    %2862 = vmatprep.subr.mxu0 0.0
    %2863 = vmatpush1.msra.mxu0 0.0
    %2864 = vmatprep.subr.mxu0 0.0
    %2865 = vmatpush1.msra.mxu0 0.0
    %2866 = vmatprep.subr.mxu0 0.0
    %2867 = vmatpush1.msra.mxu0 0.0
    %2868 = vmatprep.subr.mxu0 0.0
    %2869 = vmatpush1.msra.mxu0 0.0
    %2870 = vmatprep.subr.mxu0 0.0
    %2871 = vmatpush1.msra.mxu0 0.0
    %2872 = vmatprep.subr.mxu0 0.0
    %2873 = vmatpush1.msra.mxu0 0.0
    %2874 = vmatprep.subr.mxu0 0.0
    %2875 = vmatpush1.msra.mxu0 0.0
    %2876 = vmatprep.subr.mxu0 0.0
    %2877 = vmatpush1.msra.mxu0 0.0
    %2878 = vmatprep.subr.mxu0 0.0
    %2879 = vmatpush1.msra.mxu0 0.0
    %2880 = vmatprep.subr.mxu0 0.0
    %2881 = vmatpush1.msra.mxu0 0.0
    %2882 = vmatprep.subr.mxu0 0.0
    %2883 = vmatpush1.msra.mxu0 0.0
    %2884 = vmatprep.subr.mxu0 0.0
    %2885 = vmatpush1.msra.mxu0 0.0
    %2886 = vmatprep.subr.mxu0 0.0
    %2887 = vmatpush1.msra.mxu0 0.0
    %2888 = vmatprep.subr.mxu0 0.0
    %2889 = vmatpush1.msra.mxu0 0.0
    %2890 = vmatprep.mubr.f32.mxu0 0.0
    %2891 = vmatmul.mubr.f32.gmra.mrb[0].mxu0 %v2824
    %v2892 = vpop.f32.mrb[0].mxu0
    %v2893 = vadd.f32 0.0, %v2892
    %v2894 = vpop.f32.mrb[0].mxu0
    %2895 = vdwg.mxu0
    %2896 = vrot.lane.b32.xlu0 %v2062, 96
    %v2897 = vpop.permute.xlu0 %2896
    %v2900 = vsel %vm824, %v2665, 0
    %2902 = vmatprep.subr.mxu0 0.0
    %2903 = vmatpush1.msra.mxu0 %v2897
    %2904 = vmatprep.subr.mxu0 0.0
    %2905 = vmatpush1.msra.mxu0 0.0
    %2906 = vmatprep.subr.mxu0 0.0
    %2907 = vmatpush1.msra.mxu0 0.0
    %2908 = vmatprep.subr.mxu0 0.0
    %2909 = vmatpush1.msra.mxu0 0.0
    %2910 = vmatprep.subr.mxu0 0.0
    %2911 = vmatpush1.msra.mxu0 0.0
    %2912 = vmatprep.subr.mxu0 0.0
    %2913 = vmatpush1.msra.mxu0 0.0
    %2914 = vmatprep.subr.mxu0 0.0
    %2915 = vmatpush1.msra.mxu0 0.0
    %2916 = vmatprep.subr.mxu0 0.0
    %2917 = vmatpush1.msra.mxu0 0.0
    %2918 = vmatprep.subr.mxu0 0.0
    %2919 = vmatpush1.msra.mxu0 0.0
    %2920 = vmatprep.subr.mxu0 0.0
    %2921 = vmatpush1.msra.mxu0 0.0
    %2922 = vmatprep.subr.mxu0 0.0
    %2923 = vmatpush1.msra.mxu0 0.0
    %2924 = vmatprep.subr.mxu0 0.0
    %2925 = vmatpush1.msra.mxu0 0.0
    %2926 = vmatprep.subr.mxu0 0.0
    %2927 = vmatpush1.msra.mxu0 0.0
    %2928 = vmatprep.subr.mxu0 0.0
    %2929 = vmatpush1.msra.mxu0 0.0
    %2930 = vmatprep.subr.mxu0 0.0
    %2931 = vmatpush1.msra.mxu0 0.0
    %2932 = vmatprep.subr.mxu0 0.0
    %2933 = vmatpush1.msra.mxu0 0.0
    %2934 = vmatprep.subr.mxu0 0.0
    %2935 = vmatpush1.msra.mxu0 0.0
    %2936 = vmatprep.subr.mxu0 0.0
    %2937 = vmatpush1.msra.mxu0 0.0
    %2938 = vmatprep.subr.mxu0 0.0
    %2939 = vmatpush1.msra.mxu0 0.0
    %2940 = vmatprep.subr.mxu0 0.0
    %2941 = vmatpush1.msra.mxu0 0.0
    %2942 = vmatprep.subr.mxu0 0.0
    %2943 = vmatpush1.msra.mxu0 0.0
    %2944 = vmatprep.subr.mxu0 0.0
    %2945 = vmatpush1.msra.mxu0 0.0
    %2946 = vmatprep.subr.mxu0 0.0
    %2947 = vmatpush1.msra.mxu0 0.0
    %2948 = vmatprep.subr.mxu0 0.0
    %2949 = vmatpush1.msra.mxu0 0.0
    %2950 = vmatprep.subr.mxu0 0.0
    %2951 = vmatpush1.msra.mxu0 0.0
    %2952 = vmatprep.subr.mxu0 0.0
    %2953 = vmatpush1.msra.mxu0 0.0
    %2954 = vmatprep.subr.mxu0 0.0
    %2955 = vmatpush1.msra.mxu0 0.0
    %2956 = vmatprep.subr.mxu0 0.0
    %2957 = vmatpush1.msra.mxu0 0.0
    %2958 = vmatprep.subr.mxu0 0.0
    %2959 = vmatpush1.msra.mxu0 0.0
    %2960 = vmatprep.subr.mxu0 0.0
    %2961 = vmatpush1.msra.mxu0 0.0
    %2962 = vmatprep.subr.mxu0 0.0
    %2963 = vmatpush1.msra.mxu0 0.0
    %2964 = vmatprep.subr.mxu0 0.0
    %2965 = vmatpush1.msra.mxu0 0.0
    %2966 = vmatprep.mubr.f32.mxu0 0.0
    %2967 = vmatmul.mubr.f32.gmra.mrb[0].mxu0 %v2900
    %v2968 = vpop.f32.mrb[0].mxu0
    %v2969 = vadd.f32 0.0, %v2968
    %v2970 = vpop.f32.mrb[0].mxu0
    %2971 = vdwg.mxu0
    %2972 = vrot.lane.b32.xlu0 %v2132, 96
    %v2973 = vpop.permute.xlu0 %2972
    %v2976 = vsel %vm824, %v2666, 0
    %2978 = vmatprep.subr.mxu0 0.0
    %2979 = vmatpush1.msra.mxu0 %v2973
    %2980 = vmatprep.subr.mxu0 0.0
    %2981 = vmatpush1.msra.mxu0 0.0
    %2982 = vmatprep.subr.mxu0 0.0
    %2983 = vmatpush1.msra.mxu0 0.0
    %2984 = vmatprep.subr.mxu0 0.0
    %2985 = vmatpush1.msra.mxu0 0.0
    %2986 = vmatprep.subr.mxu0 0.0
    %2987 = vmatpush1.msra.mxu0 0.0
    %2988 = vmatprep.subr.mxu0 0.0
    %2989 = vmatpush1.msra.mxu0 0.0
    %2990 = vmatprep.subr.mxu0 0.0
    %2991 = vmatpush1.msra.mxu0 0.0
    %2992 = vmatprep.subr.mxu0 0.0
    %2993 = vmatpush1.msra.mxu0 0.0
    %2994 = vmatprep.subr.mxu0 0.0
    %2995 = vmatpush1.msra.mxu0 0.0
    %2996 = vmatprep.subr.mxu0 0.0
    %2997 = vmatpush1.msra.mxu0 0.0
    %2998 = vmatprep.subr.mxu0 0.0
    %2999 = vmatpush1.msra.mxu0 0.0
    %3000 = vmatprep.subr.mxu0 0.0
    %3001 = vmatpush1.msra.mxu0 0.0
    %3002 = vmatprep.subr.mxu0 0.0
    %3003 = vmatpush1.msra.mxu0 0.0
    %3004 = vmatprep.subr.mxu0 0.0
    %3005 = vmatpush1.msra.mxu0 0.0
    %3006 = vmatprep.subr.mxu0 0.0
    %3007 = vmatpush1.msra.mxu0 0.0
    %3008 = vmatprep.subr.mxu0 0.0
    %3009 = vmatpush1.msra.mxu0 0.0
    %3010 = vmatprep.subr.mxu0 0.0
    %3011 = vmatpush1.msra.mxu0 0.0
    %3012 = vmatprep.subr.mxu0 0.0
    %3013 = vmatpush1.msra.mxu0 0.0
    %3014 = vmatprep.subr.mxu0 0.0
    %3015 = vmatpush1.msra.mxu0 0.0
    %3016 = vmatprep.subr.mxu0 0.0
    %3017 = vmatpush1.msra.mxu0 0.0
    %3018 = vmatprep.subr.mxu0 0.0
    %3019 = vmatpush1.msra.mxu0 0.0
    %3020 = vmatprep.subr.mxu0 0.0
    %3021 = vmatpush1.msra.mxu0 0.0
    %3022 = vmatprep.subr.mxu0 0.0
    %3023 = vmatpush1.msra.mxu0 0.0
    %3024 = vmatprep.subr.mxu0 0.0
    %3025 = vmatpush1.msra.mxu0 0.0
    %3026 = vmatprep.subr.mxu0 0.0
    %3027 = vmatpush1.msra.mxu0 0.0
    %3028 = vmatprep.subr.mxu0 0.0
    %3029 = vmatpush1.msra.mxu0 0.0
    %3030 = vmatprep.subr.mxu0 0.0
    %3031 = vmatpush1.msra.mxu0 0.0
    %3032 = vmatprep.subr.mxu0 0.0
    %3033 = vmatpush1.msra.mxu0 0.0
    %3034 = vmatprep.subr.mxu0 0.0
    %3035 = vmatpush1.msra.mxu0 0.0
    %3036 = vmatprep.subr.mxu0 0.0
    %3037 = vmatpush1.msra.mxu0 0.0
    %3038 = vmatprep.subr.mxu0 0.0
    %3039 = vmatpush1.msra.mxu0 0.0
    %3040 = vmatprep.subr.mxu0 0.0
    %3041 = vmatpush1.msra.mxu0 0.0
    %3042 = vmatprep.mubr.f32.mxu0 0.0
    %3043 = vmatmul.mubr.f32.gmra.mrb[0].mxu0 %v2976
    %v3044 = vpop.f32.mrb[0].mxu0
    %v3045 = vadd.f32 0.0, %v3044
    %v3046 = vpop.f32.mrb[0].mxu0
    %3047 = vdwg.mxu0
    %3048 = vrot.lane.b32.xlu0 %v2137, 96
    %v3049 = vpop.permute.xlu0 %3048
    %v3052 = vsel %vm824, %v2667, 0
    %3054 = vmatprep.subr.mxu0 0.0
    %3055 = vmatpush1.msra.mxu0 %v3049
    %3056 = vmatprep.subr.mxu0 0.0
    %3057 = vmatpush1.msra.mxu0 0.0
    %3058 = vmatprep.subr.mxu0 0.0
    %3059 = vmatpush1.msra.mxu0 0.0
    %3060 = vmatprep.subr.mxu0 0.0
    %3061 = vmatpush1.msra.mxu0 0.0
    %3062 = vmatprep.subr.mxu0 0.0
    %3063 = vmatpush1.msra.mxu0 0.0
    %3064 = vmatprep.subr.mxu0 0.0
    %3065 = vmatpush1.msra.mxu0 0.0
    %3066 = vmatprep.subr.mxu0 0.0
    %3067 = vmatpush1.msra.mxu0 0.0
    %3068 = vmatprep.subr.mxu0 0.0
    %3069 = vmatpush1.msra.mxu0 0.0
    %3070 = vmatprep.subr.mxu0 0.0
    %3071 = vmatpush1.msra.mxu0 0.0
    %3072 = vmatprep.subr.mxu0 0.0
    %3073 = vmatpush1.msra.mxu0 0.0
    %3074 = vmatprep.subr.mxu0 0.0
    %3075 = vmatpush1.msra.mxu0 0.0
    %3076 = vmatprep.subr.mxu0 0.0
    %3077 = vmatpush1.msra.mxu0 0.0
    %3078 = vmatprep.subr.mxu0 0.0
    %3079 = vmatpush1.msra.mxu0 0.0
    %3080 = vmatprep.subr.mxu0 0.0
    %3081 = vmatpush1.msra.mxu0 0.0
    %3082 = vmatprep.subr.mxu0 0.0
    %3083 = vmatpush1.msra.mxu0 0.0
    %3084 = vmatprep.subr.mxu0 0.0
    %3085 = vmatpush1.msra.mxu0 0.0
    %3086 = vmatprep.subr.mxu0 0.0
    %3087 = vmatpush1.msra.mxu0 0.0
    %3088 = vmatprep.subr.mxu0 0.0
    %3089 = vmatpush1.msra.mxu0 0.0
    %3090 = vmatprep.subr.mxu0 0.0
    %3091 = vmatpush1.msra.mxu0 0.0
    %3092 = vmatprep.subr.mxu0 0.0
    %3093 = vmatpush1.msra.mxu0 0.0
    %3094 = vmatprep.subr.mxu0 0.0
    %3095 = vmatpush1.msra.mxu0 0.0
    %3096 = vmatprep.subr.mxu0 0.0
    %3097 = vmatpush1.msra.mxu0 0.0
    %3098 = vmatprep.subr.mxu0 0.0
    %3099 = vmatpush1.msra.mxu0 0.0
    %3100 = vmatprep.subr.mxu0 0.0
    %3101 = vmatpush1.msra.mxu0 0.0
    %3102 = vmatprep.subr.mxu0 0.0
    %3103 = vmatpush1.msra.mxu0 0.0
    %3104 = vmatprep.subr.mxu0 0.0
    %3105 = vmatpush1.msra.mxu0 0.0
    %3106 = vmatprep.subr.mxu0 0.0
    %3107 = vmatpush1.msra.mxu0 0.0
    %3108 = vmatprep.subr.mxu0 0.0
    %3109 = vmatpush1.msra.mxu0 0.0
    %3110 = vmatprep.subr.mxu0 0.0
    %3111 = vmatpush1.msra.mxu0 0.0
    %3112 = vmatprep.subr.mxu0 0.0
    %3113 = vmatpush1.msra.mxu0 0.0
    %3114 = vmatprep.subr.mxu0 0.0
    %3115 = vmatpush1.msra.mxu0 0.0
    %3116 = vmatprep.subr.mxu0 0.0
    %3117 = vmatpush1.msra.mxu0 0.0
    %3118 = vmatprep.mubr.f32.mxu0 0.0
    %3119 = vmatmul.mubr.f32.gmra.mrb[0].mxu0 %v3052
    %v3120 = vpop.f32.mrb[0].mxu0
    %v3121 = vadd.f32 0.0, %v3120
    %v3122 = vpop.f32.mrb[0].mxu0
    %3123 = vdwg.mxu0
    %s3124 = scalar_lea.vmem %s4, 48
    %v3125 = vld [vmem:[%s3124] sm:$0xff]
    %v3126 = vld [vmem:[%s3124 + $0x8] sm:$0xff]
    %v3127 = vld [vmem:[%s3124 + $0x10] sm:$0xff]
    %v3128 = vld [vmem:[%s3124 + $0x18] sm:$0xff]
    %v3129 = vld [vmem:[%s3124 + $0x20] sm:$0xff]
    %v3130 = vld [vmem:[%s3124 + $0x28] sm:$0xff]
    %s3131 = scalar_lea.vmem %s5, 1
    %v3132 = vld [vmem:[%s3131] sm:$0x1]
    %v3134 = vsel %vm364, %v2741, 0
    %v3137 = vsel %vm364, %v2817, 0
    %3139 = vmatprep.subr.mxu0 0.0
    %3140 = vmatpush1.msra.mxu0 %v3125
    %3141 = vmatprep.subr.mxu0 0.0
    %3142 = vmatpush1.msra.mxu0 %v3126
    %3143 = vmatprep.subr.mxu0 0.0
    %3144 = vmatpush1.msra.mxu0 0.0
    %3145 = vmatprep.subr.mxu0 0.0
    %3146 = vmatpush1.msra.mxu0 0.0
    %3147 = vmatprep.subr.mxu0 0.0
    %3148 = vmatpush1.msra.mxu0 0.0
    %3149 = vmatprep.subr.mxu0 0.0
    %3150 = vmatpush1.msra.mxu0 0.0
    %3151 = vmatprep.subr.mxu0 0.0
    %3152 = vmatpush1.msra.mxu0 0.0
    %3153 = vmatprep.subr.mxu0 0.0
    %3154 = vmatpush1.msra.mxu0 0.0
    %3155 = vmatprep.subr.mxu0 0.0
    %3156 = vmatpush1.msra.mxu0 0.0
    %3157 = vmatprep.subr.mxu0 0.0
    %3158 = vmatpush1.msra.mxu0 0.0
    %3159 = vmatprep.subr.mxu0 0.0
    %3160 = vmatpush1.msra.mxu0 0.0
    %3161 = vmatprep.subr.mxu0 0.0
    %3162 = vmatpush1.msra.mxu0 0.0
    %3163 = vmatprep.subr.mxu0 0.0
    %3164 = vmatpush1.msra.mxu0 0.0
    %3165 = vmatprep.subr.mxu0 0.0
    %3166 = vmatpush1.msra.mxu0 0.0
    %3167 = vmatprep.subr.mxu0 0.0
    %3168 = vmatpush1.msra.mxu0 0.0
    %3169 = vmatprep.subr.mxu0 0.0
    %3170 = vmatpush1.msra.mxu0 0.0
    %3171 = vmatprep.subr.mxu0 0.0
    %3172 = vmatpush1.msra.mxu0 0.0
    %3173 = vmatprep.subr.mxu0 0.0
    %3174 = vmatpush1.msra.mxu0 0.0
    %3175 = vmatprep.subr.mxu0 0.0
    %3176 = vmatpush1.msra.mxu0 0.0
    %3177 = vmatprep.subr.mxu0 0.0
    %3178 = vmatpush1.msra.mxu0 0.0
    %3179 = vmatprep.subr.mxu0 0.0
    %3180 = vmatpush1.msra.mxu0 0.0
    %3181 = vmatprep.subr.mxu0 0.0
    %3182 = vmatpush1.msra.mxu0 0.0
    %3183 = vmatprep.subr.mxu0 0.0
    %3184 = vmatpush1.msra.mxu0 0.0
    %3185 = vmatprep.subr.mxu0 0.0
    %3186 = vmatpush1.msra.mxu0 0.0
    %3187 = vmatprep.subr.mxu0 0.0
    %3188 = vmatpush1.msra.mxu0 0.0
    %3189 = vmatprep.subr.mxu0 0.0
    %3190 = vmatpush1.msra.mxu0 0.0
    %3191 = vmatprep.subr.mxu0 0.0
    %3192 = vmatpush1.msra.mxu0 0.0
    %3193 = vmatprep.subr.mxu0 0.0
    %3194 = vmatpush1.msra.mxu0 0.0
    %3195 = vmatprep.subr.mxu0 0.0
    %3196 = vmatpush1.msra.mxu0 0.0
    %3197 = vmatprep.subr.mxu0 0.0
    %3198 = vmatpush1.msra.mxu0 0.0
    %3199 = vmatprep.subr.mxu0 0.0
    %3200 = vmatpush1.msra.mxu0 0.0
    %3201 = vmatprep.subr.mxu0 0.0
    %3202 = vmatpush1.msra.mxu0 0.0
    %3203 = vmatprep.mubr.f32.mxu0 0.0
    %3204 = vmatmul.mubr.f32.gmra.mrb[0].mxu0 %v3134
    %v3205 = vpop.f32.mrb[0].mxu0
    %v3206 = vadd.f32 0.0, %v3205
    %v3207 = vpop.f32.mrb[0].mxu0
    %3208 = vmatprep.mubr.f32.mxu0 0.0
    %3209 = vmatmul.mubr.f32.gmra.mrb[0].mxu0 %v3137
    %v3210 = vpop.f32.mrb[0].mxu0
    %v3211 = vadd.f32 0.0, %v3210
    %v3212 = vpop.f32.mrb[0].mxu0
    %3213 = vdwg.mxu0
    %v3215 = vlaneseq
    %v3216 = vshrl.u32 %v3215, 7
    %v3217 = vsub.s32 0, %v3216
    %v3218 = vrot.slane %v3132, %v3217
    %v3220 = vadd.f32 %v3218, %v3206
    %v3221 = vadd.f32 %v3218, %v3211
    %v3223 = vsel %vm364, %v2893, 0
    %v3226 = vsel %vm364, %v2969, 0
    %3228 = vmatprep.subr.mxu0 0.0
    %3229 = vmatpush1.msra.mxu0 %v3127
    %3230 = vmatprep.subr.mxu0 0.0
    %3231 = vmatpush1.msra.mxu0 %v3128
    %3232 = vmatprep.subr.mxu0 0.0
    %3233 = vmatpush1.msra.mxu0 0.0
    %3234 = vmatprep.subr.mxu0 0.0
    %3235 = vmatpush1.msra.mxu0 0.0
    %3236 = vmatprep.subr.mxu0 0.0
    %3237 = vmatpush1.msra.mxu0 0.0
    %3238 = vmatprep.subr.mxu0 0.0
    %3239 = vmatpush1.msra.mxu0 0.0
    %3240 = vmatprep.subr.mxu0 0.0
    %3241 = vmatpush1.msra.mxu0 0.0
    %3242 = vmatprep.subr.mxu0 0.0
    %3243 = vmatpush1.msra.mxu0 0.0
    %3244 = vmatprep.subr.mxu0 0.0
    %3245 = vmatpush1.msra.mxu0 0.0
    %3246 = vmatprep.subr.mxu0 0.0
    %3247 = vmatpush1.msra.mxu0 0.0
    %3248 = vmatprep.subr.mxu0 0.0
    %3249 = vmatpush1.msra.mxu0 0.0
    %3250 = vmatprep.subr.mxu0 0.0
    %3251 = vmatpush1.msra.mxu0 0.0
    %3252 = vmatprep.subr.mxu0 0.0
    %3253 = vmatpush1.msra.mxu0 0.0
    %3254 = vmatprep.subr.mxu0 0.0
    %3255 = vmatpush1.msra.mxu0 0.0
    %3256 = vmatprep.subr.mxu0 0.0
    %3257 = vmatpush1.msra.mxu0 0.0
    %3258 = vmatprep.subr.mxu0 0.0
    %3259 = vmatpush1.msra.mxu0 0.0
    %3260 = vmatprep.subr.mxu0 0.0
    %3261 = vmatpush1.msra.mxu0 0.0
    %3262 = vmatprep.subr.mxu0 0.0
    %3263 = vmatpush1.msra.mxu0 0.0
    %3264 = vmatprep.subr.mxu0 0.0
    %3265 = vmatpush1.msra.mxu0 0.0
    %3266 = vmatprep.subr.mxu0 0.0
    %3267 = vmatpush1.msra.mxu0 0.0
    %3268 = vmatprep.subr.mxu0 0.0
    %3269 = vmatpush1.msra.mxu0 0.0
    %3270 = vmatprep.subr.mxu0 0.0
    %3271 = vmatpush1.msra.mxu0 0.0
    %3272 = vmatprep.subr.mxu0 0.0
    %3273 = vmatpush1.msra.mxu0 0.0
    %3274 = vmatprep.subr.mxu0 0.0
    %3275 = vmatpush1.msra.mxu0 0.0
    %3276 = vmatprep.subr.mxu0 0.0
    %3277 = vmatpush1.msra.mxu0 0.0
    %3278 = vmatprep.subr.mxu0 0.0
    %3279 = vmatpush1.msra.mxu0 0.0
    %3280 = vmatprep.subr.mxu0 0.0
    %3281 = vmatpush1.msra.mxu0 0.0
    %3282 = vmatprep.subr.mxu0 0.0
    %3283 = vmatpush1.msra.mxu0 0.0
    %3284 = vmatprep.subr.mxu0 0.0
    %3285 = vmatpush1.msra.mxu0 0.0
    %3286 = vmatprep.subr.mxu0 0.0
    %3287 = vmatpush1.msra.mxu0 0.0
    %3288 = vmatprep.subr.mxu0 0.0
    %3289 = vmatpush1.msra.mxu0 0.0
    %3290 = vmatprep.subr.mxu0 0.0
    %3291 = vmatpush1.msra.mxu0 0.0
    %3292 = vmatprep.mubr.f32.mxu0 0.0
    %3293 = vmatmul.mubr.f32.gmra.mrb[0].mxu0 %v3223
    %v3294 = vpop.f32.mrb[0].mxu0
    %v3295 = vadd.f32 0.0, %v3294
    %v3296 = vpop.f32.mrb[0].mxu0
    %3297 = vmatprep.mubr.f32.mxu0 0.0
    %3298 = vmatmul.mubr.f32.gmra.mrb[0].mxu0 %v3226
    %v3299 = vpop.f32.mrb[0].mxu0
    %v3300 = vadd.f32 0.0, %v3299
    %v3301 = vpop.f32.mrb[0].mxu0
    %3302 = vdwg.mxu0
    %v3303 = vadd.f32 %v3220, %v3295
    %v3304 = vadd.f32 %v3221, %v3300
    %v3306 = vsel %vm364, %v3045, 0
    %v3309 = vsel %vm364, %v3121, 0
    %3311 = vmatprep.subr.mxu0 0.0
    %3312 = vmatpush1.msra.mxu0 %v3129
    %3313 = vmatprep.subr.mxu0 0.0
    %3314 = vmatpush1.msra.mxu0 %v3130
    %3315 = vmatprep.subr.mxu0 0.0
    %3316 = vmatpush1.msra.mxu0 0.0
    %3317 = vmatprep.subr.mxu0 0.0
    %3318 = vmatpush1.msra.mxu0 0.0
    %3319 = vmatprep.subr.mxu0 0.0
    %3320 = vmatpush1.msra.mxu0 0.0
    %3321 = vmatprep.subr.mxu0 0.0
    %3322 = vmatpush1.msra.mxu0 0.0
    %3323 = vmatprep.subr.mxu0 0.0
    %3324 = vmatpush1.msra.mxu0 0.0
    %3325 = vmatprep.subr.mxu0 0.0
    %3326 = vmatpush1.msra.mxu0 0.0
    %3327 = vmatprep.subr.mxu0 0.0
    %3328 = vmatpush1.msra.mxu0 0.0
    %3329 = vmatprep.subr.mxu0 0.0
    %3330 = vmatpush1.msra.mxu0 0.0
    %3331 = vmatprep.subr.mxu0 0.0
    %3332 = vmatpush1.msra.mxu0 0.0
    %3333 = vmatprep.subr.mxu0 0.0
    %3334 = vmatpush1.msra.mxu0 0.0
    %3335 = vmatprep.subr.mxu0 0.0
    %3336 = vmatpush1.msra.mxu0 0.0
    %3337 = vmatprep.subr.mxu0 0.0
    %3338 = vmatpush1.msra.mxu0 0.0
    %3339 = vmatprep.subr.mxu0 0.0
    %3340 = vmatpush1.msra.mxu0 0.0
    %3341 = vmatprep.subr.mxu0 0.0
    %3342 = vmatpush1.msra.mxu0 0.0
    %3343 = vmatprep.subr.mxu0 0.0
    %3344 = vmatpush1.msra.mxu0 0.0
    %3345 = vmatprep.subr.mxu0 0.0
    %3346 = vmatpush1.msra.mxu0 0.0
    %3347 = vmatprep.subr.mxu0 0.0
    %3348 = vmatpush1.msra.mxu0 0.0
    %3349 = vmatprep.subr.mxu0 0.0
    %3350 = vmatpush1.msra.mxu0 0.0
    %3351 = vmatprep.subr.mxu0 0.0
    %3352 = vmatpush1.msra.mxu0 0.0
    %3353 = vmatprep.subr.mxu0 0.0
    %3354 = vmatpush1.msra.mxu0 0.0
    %3355 = vmatprep.subr.mxu0 0.0
    %3356 = vmatpush1.msra.mxu0 0.0
    %3357 = vmatprep.subr.mxu0 0.0
    %3358 = vmatpush1.msra.mxu0 0.0
    %3359 = vmatprep.subr.mxu0 0.0
    %3360 = vmatpush1.msra.mxu0 0.0
    %3361 = vmatprep.subr.mxu0 0.0
    %3362 = vmatpush1.msra.mxu0 0.0
    %3363 = vmatprep.subr.mxu0 0.0
    %3364 = vmatpush1.msra.mxu0 0.0
    %3365 = vmatprep.subr.mxu0 0.0
    %3366 = vmatpush1.msra.mxu0 0.0
    %3367 = vmatprep.subr.mxu0 0.0
    %3368 = vmatpush1.msra.mxu0 0.0
    %3369 = vmatprep.subr.mxu0 0.0
    %3370 = vmatpush1.msra.mxu0 0.0
    %3371 = vmatprep.subr.mxu0 0.0
    %3372 = vmatpush1.msra.mxu0 0.0
    %3373 = vmatprep.subr.mxu0 0.0
    %3374 = vmatpush1.msra.mxu0 0.0
    %3375 = vmatprep.mubr.f32.mxu0 0.0
    %3376 = vmatmul.mubr.f32.gmra.mrb[0].mxu0 %v3306
    %v3377 = vpop.f32.mrb[0].mxu0
    %v3378 = vadd.f32 0.0, %v3377
    %v3379 = vpop.f32.mrb[0].mxu0
    %3380 = vmatprep.mubr.f32.mxu0 0.0
    %3381 = vmatmul.mubr.f32.gmra.mrb[0].mxu0 %v3309
    %v3382 = vpop.f32.mrb[0].mxu0
    %v3383 = vadd.f32 0.0, %v3382
    %v3384 = vpop.f32.mrb[0].mxu0
    %3385 = vdwg.mxu0
    %v3386 = vadd.f32 %v3303, %v3378
    %v3387 = vadd.f32 %v3304, %v3383
    %v3388 = vadd.f32 %v1848, %v3386
    %v3389 = vadd.f32 %v1849, %v3387
    %s3390 = scalar_lea.vmem %s6, 1
    %v3391 = vld [vmem:[%s3390] sm:$0x1]
    %s3392 = scalar_lea.vmem %s7, 1
    %v3393 = vld [vmem:[%s3392] sm:$0x1]
    %v3394 = vsel %vm74, %v3388, 0.0
    %3395 = vadd.xlane.f32.xlu0 %v3394
    %v3396 = vpop.xlane.xlu0 %3395
    %v3397 = vsel %vm74, %v3389, 0.0
    %3398 = vadd.xlane.f32.xlu0 %v3397
    %v3399 = vpop.xlane.xlu0 %3398
    %v3400 = vmul.f32 %v3396, %v81
    %v3401 = vmul.f32 %v3399, %v81
    %v3402 = vsub.f32 %v3388, %v3400
    %v3403 = vsub.f32 %v3389, %v3401
    %v3404 = vmul.f32 %v3402, %v3402
    %v3405 = vmul.f32 %v3403, %v3403
    %v3406 = vsel %vm74, %v3404, 0.0
    %3407 = vadd.xlane.f32.xlu0 %v3406
    %v3408 = vpop.xlane.xlu0 %3407
    %v3409 = vsel %vm74, %v3405, 0.0
    %3410 = vadd.xlane.f32.xlu0 %v3409
    %v3411 = vpop.xlane.xlu0 %3410
    %v3412 = vmul.f32 %v3408, %v81
    %v3413 = vmul.f32 %v3411, %v81
    %v3414 = vadd.f32 %v3412, 1e-05
    %v3415 = vadd.f32 %v3413, 1e-05
    %v3416 = vrsqrt.pop %v3414
    %v3417 = vrsqrt.pop %v3415
    %v3418 = vmul.f32 %v3402, %v3416
    %v3419 = vmul.f32 %v3403, %v3417
    %v3421 = vlaneseq
    %v3422 = vshrl.u32 %v3421, 7
    %v3423 = vsub.s32 0, %v3422
    %v3424 = vrot.slane %v3391, %v3423
    %v3426 = vmul.f32 %v3418, %v3424
    %v3427 = vmul.f32 %v3419, %v3424
    %v3429 = vlaneseq
    %v3430 = vshrl.u32 %v3429, 7
    %v3431 = vsub.s32 0, %v3430
    %v3432 = vrot.slane %v3393, %v3431
    %v3434 = vadd.f32 %v3426, %v3432
    %v3435 = vadd.f32 %v3427, %v3432
    %s3436 = scalar_lea.vmem %s8, 32
    %v3437 = vld [vmem:[%s3436] sm:$0xff]
    %v3438 = vld [vmem:[%s3436 + $0x8] sm:$0xff]
    %v3439 = vld [vmem:[%s3436 + $0x10] sm:$0xff]
    %v3440 = vld [vmem:[%s3436 + $0x18] sm:$0xff]
    %s3441 = scalar_lea.vmem %s9, 1
    %v3442 = vld [vmem:[%s3441] sm:$0x1]
    %v3444 = vlaneseq
    %v3445 = vshrl.u32 %v3444, 7
    %v3446 = vsub.s32 0, %v3445
    %v3447 = vrot.slane %v3442, %v3446
    %v3450 = vsel %vm74, %v3434, 0
    %v3453 = vsel %vm74, %v3435, 0
    %3455 = vmatprep.subr.mxu0 0.0
    %3456 = vmatpush1.msra.mxu0 %v3437
    %3457 = vmatprep.subr.mxu0 0.0
    %3458 = vmatpush1.msra.mxu0 %v3438
    %3459 = vmatprep.subr.mxu0 0.0
    %3460 = vmatpush1.msra.mxu0 %v3439
    %3461 = vmatprep.subr.mxu0 0.0
    %3462 = vmatpush1.msra.mxu0 %v3440
    %3463 = vmatprep.subr.mxu0 0.0
    %3464 = vmatpush1.msra.mxu0 0.0
    %3465 = vmatprep.subr.mxu0 0.0
    %3466 = vmatpush1.msra.mxu0 0.0
    %3467 = vmatprep.subr.mxu0 0.0
    %3468 = vmatpush1.msra.mxu0 0.0
    %3469 = vmatprep.subr.mxu0 0.0
    %3470 = vmatpush1.msra.mxu0 0.0
    %3471 = vmatprep.subr.mxu0 0.0
    %3472 = vmatpush1.msra.mxu0 0.0
    %3473 = vmatprep.subr.mxu0 0.0
    %3474 = vmatpush1.msra.mxu0 0.0
    %3475 = vmatprep.subr.mxu0 0.0
    %3476 = vmatpush1.msra.mxu0 0.0
    %3477 = vmatprep.subr.mxu0 0.0
    %3478 = vmatpush1.msra.mxu0 0.0
    %3479 = vmatprep.subr.mxu0 0.0
    %3480 = vmatpush1.msra.mxu0 0.0
    %3481 = vmatprep.subr.mxu0 0.0
    %3482 = vmatpush1.msra.mxu0 0.0
    %3483 = vmatprep.subr.mxu0 0.0
    %3484 = vmatpush1.msra.mxu0 0.0
    %3485 = vmatprep.subr.mxu0 0.0
    %3486 = vmatpush1.msra.mxu0 0.0
    %3487 = vmatprep.subr.mxu0 0.0
    %3488 = vmatpush1.msra.mxu0 0.0
    %3489 = vmatprep.subr.mxu0 0.0
    %3490 = vmatpush1.msra.mxu0 0.0
    %3491 = vmatprep.subr.mxu0 0.0
    %3492 = vmatpush1.msra.mxu0 0.0
    %3493 = vmatprep.subr.mxu0 0.0
    %3494 = vmatpush1.msra.mxu0 0.0
    %3495 = vmatprep.subr.mxu0 0.0
    %3496 = vmatpush1.msra.mxu0 0.0
    %3497 = vmatprep.subr.mxu0 0.0
    %3498 = vmatpush1.msra.mxu0 0.0
    %3499 = vmatprep.subr.mxu0 0.0
    %3500 = vmatpush1.msra.mxu0 0.0
    %3501 = vmatprep.subr.mxu0 0.0
    %3502 = vmatpush1.msra.mxu0 0.0
    %3503 = vmatprep.subr.mxu0 0.0
    %3504 = vmatpush1.msra.mxu0 0.0
    %3505 = vmatprep.subr.mxu0 0.0
    %3506 = vmatpush1.msra.mxu0 0.0
    %3507 = vmatprep.subr.mxu0 0.0
    %3508 = vmatpush1.msra.mxu0 0.0
    %3509 = vmatprep.subr.mxu0 0.0
    %3510 = vmatpush1.msra.mxu0 0.0
    %3511 = vmatprep.subr.mxu0 0.0
    %3512 = vmatpush1.msra.mxu0 0.0
    %3513 = vmatprep.subr.mxu0 0.0
    %3514 = vmatpush1.msra.mxu0 0.0
    %3515 = vmatprep.subr.mxu0 0.0
    %3516 = vmatpush1.msra.mxu0 0.0
    %3517 = vmatprep.subr.mxu0 0.0
    %3518 = vmatpush1.msra.mxu0 0.0
    %3519 = vmatprep.mubr.f32.mxu0 0.0
    %3520 = vmatmul.mubr.f32.gmra.mrb[0].mxu0 %v3450
    %v3521 = vpop.f32.mrb[0].mxu0
    %v3522 = vadd.f32 %v3447, %v3521
    %v3523 = vpop.f32.mrb[0].mxu0
    %3524 = vmatprep.mubr.f32.mxu0 0.0
    %3525 = vmatmul.mubr.f32.gmra.mrb[0].mxu0 %v3453
    %v3526 = vpop.f32.mrb[0].mxu0
    %v3527 = vadd.f32 %v3447, %v3526
    %v3528 = vpop.f32.mrb[0].mxu0
    %3529 = vdwg.mxu0
    %v3530 = vmul.f32 %v3522, 0.01
    %v3531 = vmul.f32 %v3527, 0.01
    %v3532 = vmax.f32 %v3522, %v3530
    %v3533 = vmax.f32 %v3527, %v3531
    %s3534 = scalar_lea.vmem %s10, 48
    %v3535 = vld [vmem:[%s3534] sm:$0xff]
    %v3536 = vld [vmem:[%s3534 + $0x8] sm:$0xff]
    %v3537 = vld [vmem:[%s3534 + $0x10] sm:$0xff]
    %v3538 = vld [vmem:[%s3534 + $0x18] sm:$0xff]
    %v3539 = vld [vmem:[%s3534 + $0x20] sm:$0xff]
    %v3540 = vld [vmem:[%s3534 + $0x28] sm:$0xff]
    %v3542 = vsel %vm1757, %v3532, 0
    %v3545 = vsel %vm1757, %v3533, 0
    %3547 = vmatprep.subr.mxu0 0.0
    %3548 = vmatpush1.msra.mxu0 %v3535
    %3549 = vmatprep.subr.mxu0 0.0
    %3550 = vmatpush1.msra.mxu0 %v3536
    %3551 = vmatprep.subr.mxu0 0.0
    %3552 = vmatpush1.msra.mxu0 %v3537
    %3553 = vmatprep.subr.mxu0 0.0
    %3554 = vmatpush1.msra.mxu0 %v3538
    %3555 = vmatprep.subr.mxu0 0.0
    %3556 = vmatpush1.msra.mxu0 %v3539
    %3557 = vmatprep.subr.mxu0 0.0
    %3558 = vmatpush1.msra.mxu0 %v3540
    %3559 = vmatprep.subr.mxu0 0.0
    %3560 = vmatpush1.msra.mxu0 0.0
    %3561 = vmatprep.subr.mxu0 0.0
    %3562 = vmatpush1.msra.mxu0 0.0
    %3563 = vmatprep.subr.mxu0 0.0
    %3564 = vmatpush1.msra.mxu0 0.0
    %3565 = vmatprep.subr.mxu0 0.0
    %3566 = vmatpush1.msra.mxu0 0.0
    %3567 = vmatprep.subr.mxu0 0.0
    %3568 = vmatpush1.msra.mxu0 0.0
    %3569 = vmatprep.subr.mxu0 0.0
    %3570 = vmatpush1.msra.mxu0 0.0
    %3571 = vmatprep.subr.mxu0 0.0
    %3572 = vmatpush1.msra.mxu0 0.0
    %3573 = vmatprep.subr.mxu0 0.0
    %3574 = vmatpush1.msra.mxu0 0.0
    %3575 = vmatprep.subr.mxu0 0.0
    %3576 = vmatpush1.msra.mxu0 0.0
    %3577 = vmatprep.subr.mxu0 0.0
    %3578 = vmatpush1.msra.mxu0 0.0
    %3579 = vmatprep.subr.mxu0 0.0
    %3580 = vmatpush1.msra.mxu0 0.0
    %3581 = vmatprep.subr.mxu0 0.0
    %3582 = vmatpush1.msra.mxu0 0.0
    %3583 = vmatprep.subr.mxu0 0.0
    %3584 = vmatpush1.msra.mxu0 0.0
    %3585 = vmatprep.subr.mxu0 0.0
    %3586 = vmatpush1.msra.mxu0 0.0
    %3587 = vmatprep.subr.mxu0 0.0
    %3588 = vmatpush1.msra.mxu0 0.0
    %3589 = vmatprep.subr.mxu0 0.0
    %3590 = vmatpush1.msra.mxu0 0.0
    %3591 = vmatprep.subr.mxu0 0.0
    %3592 = vmatpush1.msra.mxu0 0.0
    %3593 = vmatprep.subr.mxu0 0.0
    %3594 = vmatpush1.msra.mxu0 0.0
    %3595 = vmatprep.subr.mxu0 0.0
    %3596 = vmatpush1.msra.mxu0 0.0
    %3597 = vmatprep.subr.mxu0 0.0
    %3598 = vmatpush1.msra.mxu0 0.0
    %3599 = vmatprep.subr.mxu0 0.0
    %3600 = vmatpush1.msra.mxu0 0.0
    %3601 = vmatprep.subr.mxu0 0.0
    %3602 = vmatpush1.msra.mxu0 0.0
    %3603 = vmatprep.subr.mxu0 0.0
    %3604 = vmatpush1.msra.mxu0 0.0
    %3605 = vmatprep.subr.mxu0 0.0
    %3606 = vmatpush1.msra.mxu0 0.0
    %3607 = vmatprep.subr.mxu0 0.0
    %3608 = vmatpush1.msra.mxu0 0.0
    %3609 = vmatprep.subr.mxu0 0.0
    %3610 = vmatpush1.msra.mxu0 0.0
    %3611 = vmatprep.mubr.f32.mxu0 0.0
    %3612 = vmatmul.mubr.f32.gmra.mrb[0].mxu0 %v3542
    %v3613 = vpop.f32.mrb[0].mxu0
    %v3614 = vadd.f32 0.0, %v3613
    %v3615 = vpop.f32.mrb[0].mxu0
    %3616 = vmatprep.mubr.f32.mxu0 0.0
    %3617 = vmatmul.mubr.f32.gmra.mrb[0].mxu0 %v3545
    %v3618 = vpop.f32.mrb[0].mxu0
    %v3619 = vadd.f32 0.0, %v3618
    %v3620 = vpop.f32.mrb[0].mxu0
    %3621 = vdwg.mxu0
    %v3622 = vadd.f32 %v3388, %v3614
    %v3623 = vadd.f32 %v3389, %v3619
    %s3624 = scalar_lea.vmem %s11, 1
    %v3625 = vld [vmem:[%s3624] sm:$0x1]
    %v3627 = vlaneseq
    %v3628 = vshrl.u32 %v3627, 7
    %v3629 = vsub.s32 0, %v3628
    %v3630 = vrot.slane %v3625, %v3629
    %v3632 = vadd.f32 %v3622, %v3630
    %v3633 = vadd.f32 %v3623, %v3630
    %3634 = vst.msk [vmem:[#allocation7] sm:$0xff] %vm74, %v3632
    %3635 = vst.msk [vmem:[#allocation7 + $0x8] sm:$0xff] %vm74, %v3633
    // Predicated region
    $region58: #{tpu_custom_call.1} parent=1 // pred_check
      _
    $region59: #{tpu_custom_call.1} parent=1 // pred_check_branch
      %3637 = sbr.rel (0) target = $region61
    $region60: #{tpu_custom_call.1} parent=1 // pred_region
      %s3639 = ssub.s32 256, 256
      %3640 = vsyncadd [#allocation4], %s3639
      %s3641 = sshll.u32 [#allocation7], 4
      %s3642 = int_to_ptr.vmem [resolvable:$true] %s3641
      %3647 = dma.vmem_to_hbm [thread:$0]  %s3642, 256, %s12, [#allocation4], 128, 128, 8
    $region61: #{tpu_custom_call.1} parent=1 // pred_fallthru
      _
    // Predicated region
    $region62: #{tpu_custom_call.1} parent=1 // pred_check
      _
    $region63: #{tpu_custom_call.1} parent=1 // pred_check_branch
      %3649 = sbr.rel (0) target = $region65
    $region64: #{tpu_custom_call.1} parent=1 // pred_region
      %3650 = dma.done [#allocation4], 256
    $region65: #{tpu_custom_call.1} parent=1 // pred_fallthru
      _
    %3651 = vsyncpa [#allocation3], 1
    %3652 = vsyncpa [#allocation6], 1
    %3653 = vsyncpa [#allocation4], 1

</llo_original>
